<compile_context>
chip_gen: v7x
topology: tpu7x:2x2x1
jax: 0.10.0
libtpu: 0.0.40
codegen_flags: <defaults>
</compile_context>

<pallas_src>
import math
import functools

import jax
import jax.numpy as jnp
from jax import lax
from jax.experimental import pallas as pl
from jax.experimental.pallas import tpu as pltpu


def _layernorm_f32(x, gamma, beta, eps=1e-5):
    """LayerNorm with f32 statistics; gamma/beta are (1, E) and broadcast."""
    mu = jnp.mean(x, axis=-1, keepdims=True)
    var = jnp.mean((x - mu) ** 2, axis=-1, keepdims=True)
    return (x - mu) * lax.rsqrt(var + eps) * gamma + beta


def transformer_block_kernel(
    x_ref,                               # (1, T, E)  full sequence of this batch
    g1_ref, b1_ref,                      # norm1 gamma/beta (1, E)
    wq_ref, bq_ref,                      # queries  W:(E,E) b:(1,E)  (scale pre-folded)
    wk_ref, bk_ref,                      # keys
    wv_ref, bv_ref,                      # values
    wu_ref, bu_ref,                      # unify_heads
    g2_ref, b2_ref,                      # norm2 gamma/beta
    wf1_ref, bf1_ref,                    # ffn linear1 (E, F*E)
    wf2_ref, bf2_ref,                    # ffn linear2 (F*E, E)
    o_ref,                               # (1, tQ, E)
    kh_sc, vh_sc,                        # (H, T, d) VMEM scratch, persistent per batch
    *, num_heads, q_block, kv_block, ffn_chunk, compute_dtype,
):
    f32 = jnp.float32
    T = x_ref.shape[1]
    E = x_ref.shape[2]
    tQ = q_block
    tK = kv_block
    H = num_heads
    d = E // H
    q_idx = pl.program_id(1)

    g1 = g1_ref[...]                     # (1, E) f32, broadcasts over rows
    b1 = b1_ref[...]

    # ---------------- K/V path: once per batch, reused across all query tiles ---------
    @pl.when(q_idx == 0)
    def _():
        x_f = x_ref[0].astype(f32)                                   # (T, E)
        ln1_f = _layernorm_f32(x_f, g1, b1).astype(compute_dtype)
        k = jnp.dot(ln1_f, wk_ref[...], preferred_element_type=f32) + bk_ref[...]
        v = jnp.dot(ln1_f, wv_ref[...], preferred_element_type=f32) + bv_ref[...]
        # Head split (columns are already grouped per head): (T, E) -> (H, T, d).
        kh_sc[...] = k.astype(kh_sc.dtype).reshape(T, H, d).transpose(1, 0, 2)
        vh_sc[...] = v.astype(vh_sc.dtype).reshape(T, H, d).transpose(1, 0, 2)

    # ---------------- query tile ------------------------------------------------------
    row0 = pl.multiple_of(q_idx * tQ, tQ)
    x_q = x_ref[0, pl.ds(row0, tQ), :].astype(f32)                   # (tQ, E) residual
    ln1_q = _layernorm_f32(x_q, g1, b1).astype(compute_dtype)
    # 1/sqrt(E) already folded into wq / bq by the wrapper.
    q = jnp.dot(ln1_q, wq_ref[...], preferred_element_type=f32) + bq_ref[...]
    qh = q.astype(compute_dtype).reshape(tQ, H, d).transpose(1, 0, 2)  # (H, tQ, d)

    # ---------------- flash-style attention over K/V chunks (online softmax) ----------
    n_kv = T // tK

    def kv_step(i, carry):
        m, l, acc = carry
        s0 = pl.multiple_of(i * tK, tK)
        kc = kh_sc[:, pl.ds(s0, tK), :]                              # (H, tK, d)
        vc = vh_sc[:, pl.ds(s0, tK), :]
        e = jnp.einsum("hqd,hkd->hqk", qh, kc,
                       preferred_element_type=f32)                   # (H, tQ, tK)
        m_new = jnp.maximum(m, jnp.max(e, axis=-1, keepdims=True))
        alpha = jnp.exp(m - m_new)                                   # f32 exp (EUP)
        p = jnp.exp(e - m_new)
        l_new = alpha * l + jnp.sum(p, axis=-1, keepdims=True)
        acc_new = alpha * acc + jnp.einsum("hqk,hkd->hqd",
                                           p.astype(compute_dtype), vc,
                                           preferred_element_type=f32)
        return m_new, l_new, acc_new

    m0 = jnp.full((H, tQ, 1), -jnp.inf, f32)
    l0 = jnp.zeros((H, tQ, 1), f32)
    acc0 = jnp.zeros((H, tQ, d), f32)
    _, l, acc = lax.fori_loop(0, n_kv, kv_step, (m0, l0, acc0))

    # Exact reciprocal on the f32 precision-check path; approx (EUP) on the bf16 path.
    approx = compute_dtype != jnp.float32
    ctx = acc * pl.reciprocal(l, approx=approx)                      # (H, tQ, d)
    ctx = ctx.transpose(1, 0, 2).reshape(tQ, E)                      # merge heads

    attn_out = jnp.dot(ctx.astype(compute_dtype), wu_ref[...],
                       preferred_element_type=f32) + bu_ref[...]
    x1 = attn_out + x_q                                              # residual 1

    # ---------------- pre-norm 2 + feed-forward, chunked over the hidden dim ----------
    ln2 = _layernorm_f32(x1, g2_ref[...], b2_ref[...]).astype(compute_dtype)
    hidden = wf1_ref.shape[1]
    c_h = ffn_chunk
    n_h = hidden // c_h

    def ffn_step(c, ff):
        s = pl.multiple_of(c * c_h, c_h)
        h1 = jnp.dot(ln2, wf1_ref[:, pl.ds(s, c_h)], preferred_element_type=f32)
        h1 = jnp.maximum(h1 + bf1_ref[:, pl.ds(s, c_h)], 0.0)
        return ff + jnp.dot(h1.astype(compute_dtype), wf2_ref[pl.ds(s, c_h), :],
                            preferred_element_type=f32)

    ff = lax.fori_loop(0, n_h, ffn_step, jnp.zeros((tQ, E), f32), unroll=True)
    ff = ff + bf2_ref[...]

    o_ref[0] = (ff + x1).astype(o_ref.dtype)                         # residual 2


_WEIGHT_NAMES = ("wq", "wk", "wv", "wu", "wf1", "wf2")
_PARAM_ORDER = (
    "g1", "b1",
    "wq", "bq", "wk", "bk", "wv", "bv", "wu", "bu",
    "g2", "b2",
    "wf1", "bf1", "wf2", "bf2",
)


def _pick_chunk(n, candidates=(512, 256, 128)):
    """Largest lane-aligned chunk that divides n; falls back to n itself."""
    for c in candidates:
        if n >= c and n % c == 0:
            return c
    return n


def _vmem_budget():
    """Generation-dependent (vmem_limit_bytes, default query tile)."""
    try:
        cap = int(pltpu.get_tpu_info().vmem_capacity_bytes)
    except Exception:
        cap = 128 * 1024 * 1024
    if cap >= 96 * 1024 * 1024:          # v5e / v6e: 128 MiB physical VMEM
        return 100 * 1024 * 1024, 512
    return 48 * 1024 * 1024, 128         # v7x: 64 MiB physical VMEM


def transformer_block(x, params, num_heads, *, compute_dtype=jnp.bfloat16,
                      q_block=None, kv_block=None):
    """Fused pre-norm transformer block. compute_dtype controls the MXU input dtype
    (bf16 for performance, f32 for precision checks); accumulation is always f32."""
    B, T, E = x.shape
    assert E % num_heads == 0, "emb_size must be divisible by num_heads"
    d_head = E // num_heads

    vmem_limit, default_q = _vmem_budget()

    tQ = q_block if q_block is not None else default_q
    tQ = tQ if (T > tQ and T % tQ == 0) else T
    nQ = T // tQ

    tK = kv_block if kv_block is not None else 512
    tK = tK if (T > tK and T % tK == 0) else T

    hidden = params["wf1"].shape[1]
    c_h = _pick_chunk(hidden)

    # PyTorch module scales energy by 1/sqrt(emb_size) (full embedding, not head dim);
    # fold it into wq / bq on the host so the kernel does no extra multiply.
    scale = 1.0 / math.sqrt(float(E))

    def arg(name):
        p = params[name]
        if name in ("wq", "bq"):
            p = p * scale
        # Cast large weight matrices once in the wrapper (halves weight HBM traffic
        # in bf16); biases / LN parameters stay f32.
        return p.astype(compute_dtype) if name in _WEIGHT_NAMES else p

    def const_spec(shape):
        nd = len(shape)
        return pl.BlockSpec(shape, lambda b, q, _nd=nd: (0,) * _nd)

    in_specs = [pl.BlockSpec((1, T, E), lambda b, q: (b, 0, 0))]     # full sequence
    in_specs += [const_spec(params[name].shape) for name in _PARAM_ORDER]

    kernel = functools.partial(
        transformer_block_kernel,
        num_heads=num_heads, q_block=tQ, kv_block=tK, ffn_chunk=c_h,
        compute_dtype=compute_dtype,
    )

    return pl.pallas_call(
        kernel,
        out_shape=jax.ShapeDtypeStruct((B, T, E), x.dtype),
        grid_spec=pltpu.PrefetchScalarGridSpec(
            num_scalar_prefetch=0,
            grid=(B, nQ),
            in_specs=in_specs,
            out_specs=pl.BlockSpec((1, tQ, E), lambda b, q: (b, q, 0)),
            scratch_shapes=[
                pltpu.VMEM((num_heads, T, d_head), compute_dtype),   # K (head-split)
                pltpu.VMEM((num_heads, T, d_head), compute_dtype),   # V (head-split)
            ],
        ),
        compiler_params=pltpu.CompilerParams(
            # batch axis megacore-splittable; q axis must be "arbitrary" because the
            # K/V scratch written at q == 0 is reused by later q tiles of the batch.
            dimension_semantics=("parallel", "arbitrary"),
            vmem_limit_bytes=vmem_limit,
        ),
    )(x, *[arg(name) for name in _PARAM_ORDER])


def init_params(key, emb_size, forward_expansion):
    """Deterministic parameter init. Linear weights stored already transposed to
    (in, out) so the kernel computes y = x @ W + b (== torch x @ W.T + b)."""
    hidden = forward_expansion * emb_size
    keys = jax.random.split(key, 12)

    def lin(kw, kb, fan_in, fan_out):
        bound = 1.0 / math.sqrt(fan_in)
        w = jax.random.uniform(kw, (fan_in, fan_out), jnp.float32, -bound, bound)
        b = jax.random.uniform(kb, (1, fan_out), jnp.float32, -bound, bound)
        return w, b

    wq, bq = lin(keys[0], keys[1], emb_size, emb_size)
    wk, bk = lin(keys[2], keys[3], emb_size, emb_size)
    wv, bv = lin(keys[4], keys[5], emb_size, emb_size)
    wu, bu = lin(keys[6], keys[7], emb_size, emb_size)
    wf1, bf1 = lin(keys[8], keys[9], emb_size, hidden)
    wf2, bf2 = lin(keys[10], keys[11], hidden, emb_size)

    return {
        "g1": jnp.ones((1, emb_size), jnp.float32),
        "b1": jnp.zeros((1, emb_size), jnp.float32),
        "wq": wq, "bq": bq, "wk": wk, "bk": bk, "wv": wv, "bv": bv,
        "wu": wu, "bu": bu,
        "g2": jnp.ones((1, emb_size), jnp.float32),
        "b2": jnp.zeros((1, emb_size), jnp.float32),
        "wf1": wf1, "bf1": bf1, "wf2": wf2, "bf2": bf2,
    }


def reference(x, p, num_heads):
    """Pure-JAX f32 reference mirroring the PyTorch forward."""
    B, T, E = x.shape
    d = E // num_heads

    def ln(y, g, b):
        mu = jnp.mean(y, -1, keepdims=True)
        var = jnp.mean((y - mu) ** 2, -1, keepdims=True)
        return (y - mu) / jnp.sqrt(var + 1e-5) * g + b

    ln1 = ln(x, p["g1"][0], p["b1"][0])
    q = (ln1 @ p["wq"] + p["bq"][0]).reshape(B, T, num_heads, d).transpose(0, 2, 1, 3)
    k = (ln1 @ p["wk"] + p["bk"][0]).reshape(B, T, num_heads, d).transpose(0, 2, 1, 3)
    v = (ln1 @ p["wv"] + p["bv"][0]).reshape(B, T, num_heads, d).transpose(0, 2, 1, 3)
    energy = jnp.einsum("bhqd,bhkd->bhqk", q, k) / (E ** 0.5)
    attn = jax.nn.softmax(energy, axis=-1)
    out = jnp.einsum("bhqk,bhkd->bhqd", attn, v).transpose(0, 2, 1, 3).reshape(B, T, E)
    x1 = out @ p["wu"] + p["bu"][0] + x
    ln2 = ln(x1, p["g2"][0], p["b2"][0])
    ff = jnp.maximum(ln2 @ p["wf1"] + p["bf1"][0], 0.0) @ p["wf2"] + p["bf2"][0]
    return ff + x1


if __name__ == "__main__":
    emb_size = 32
    num_heads = 4
    forward_expansion = 4
    B, T = 2, 8

    key = jax.random.PRNGKey(0)
    kx, kp = jax.random.split(key)
    x = jax.random.normal(kx, (B, T, emb_size), jnp.float32)
    params = init_params(kp, emb_size, forward_expansion)

    ref = reference(x, params, num_heads)

    # Precision check: f32 MXU inputs, exact softmax reciprocal.
    out_f32 = jax.block_until_ready(
        transformer_block(x, params, num_heads, compute_dtype=jnp.float32)
    )
    assert out_f32.shape == (B, T, emb_size)
    err_f32 = float(jnp.max(jnp.abs(out_f32 - ref)))
    assert err_f32 < 1e-2, f"f32-path max err {err_f32}"

    # Performance configuration: bf16 MXU inputs, f32 accumulation / statistics.
    out_bf16 = jax.block_until_ready(
        transformer_block(x, params, num_heads, compute_dtype=jnp.bfloat16)
    )
    assert out_bf16.shape == (B, T, emb_size)
    err_bf16 = float(jnp.max(jnp.abs(out_bf16 - ref)))
    assert err_bf16 < 1e-1, f"bf16-path max err {err_bf16}"

    print("KERNEL_OK")
</pallas_src>

<mosaic_0001>
module attributes {stable_mosaic.version = 11 : i64} {
  func.func @transformer_block_kernel(%arg0: i32, %arg1: i32, %arg2: memref<1x8x32xf32, #tpu.memory_space<vmem>>, %arg3: memref<1x32xf32, #tpu.memory_space<vmem>>, %arg4: memref<1x32xf32, #tpu.memory_space<vmem>>, %arg5: memref<32x32xf32, #tpu.memory_space<vmem>>, %arg6: memref<1x32xf32, #tpu.memory_space<vmem>>, %arg7: memref<32x32xf32, #tpu.memory_space<vmem>>, %arg8: memref<1x32xf32, #tpu.memory_space<vmem>>, %arg9: memref<32x32xf32, #tpu.memory_space<vmem>>, %arg10: memref<1x32xf32, #tpu.memory_space<vmem>>, %arg11: memref<32x32xf32, #tpu.memory_space<vmem>>, %arg12: memref<1x32xf32, #tpu.memory_space<vmem>>, %arg13: memref<1x32xf32, #tpu.memory_space<vmem>>, %arg14: memref<1x32xf32, #tpu.memory_space<vmem>>, %arg15: memref<32x128xf32, #tpu.memory_space<vmem>>, %arg16: memref<1x128xf32, #tpu.memory_space<vmem>>, %arg17: memref<128x32xf32, #tpu.memory_space<vmem>>, %arg18: memref<1x32xf32, #tpu.memory_space<vmem>>, %arg19: memref<1x8x32xf32, #tpu.memory_space<vmem>>, %arg20: memref<4x8x8xf32, #tpu.memory_space<vmem>>, %arg21: memref<4x8x8xf32, #tpu.memory_space<vmem>>) attributes {dimension_semantics = [#tpu.dimension_semantics<parallel>, #tpu.dimension_semantics<arbitrary>], iteration_bounds = array<i64: 2, 1>, scalar_prefetch = 0 : i64, scratch_operands = 2 : i64, tpu.core_type = #tpu.core_type<tc>, window_params = [{transform_indices = @transform_0, window_bounds = array<i64: 1, 8, 32>}, {pipeline_mode = #tpu.pipeline_mode<synchronous>, transform_indices = @transform_1, window_bounds = array<i64: 1, 32>}, {pipeline_mode = #tpu.pipeline_mode<synchronous>, transform_indices = @transform_2, window_bounds = array<i64: 1, 32>}, {pipeline_mode = #tpu.pipeline_mode<synchronous>, transform_indices = @transform_3, window_bounds = array<i64: 32, 32>}, {pipeline_mode = #tpu.pipeline_mode<synchronous>, transform_indices = @transform_4, window_bounds = array<i64: 1, 32>}, {pipeline_mode = #tpu.pipeline_mode<synchronous>, transform_indices = @transform_5, window_bounds = array<i64: 32, 32>}, {pipeline_mode = #tpu.pipeline_mode<synchronous>, transform_indices = @transform_6, window_bounds = array<i64: 1, 32>}, {pipeline_mode = #tpu.pipeline_mode<synchronous>, transform_indices = @transform_7, window_bounds = array<i64: 32, 32>}, {pipeline_mode = #tpu.pipeline_mode<synchronous>, transform_indices = @transform_8, window_bounds = array<i64: 1, 32>}, {pipeline_mode = #tpu.pipeline_mode<synchronous>, transform_indices = @transform_9, window_bounds = array<i64: 32, 32>}, {pipeline_mode = #tpu.pipeline_mode<synchronous>, transform_indices = @transform_10, window_bounds = array<i64: 1, 32>}, {pipeline_mode = #tpu.pipeline_mode<synchronous>, transform_indices = @transform_11, window_bounds = array<i64: 1, 32>}, {pipeline_mode = #tpu.pipeline_mode<synchronous>, transform_indices = @transform_12, window_bounds = array<i64: 1, 32>}, {pipeline_mode = #tpu.pipeline_mode<synchronous>, transform_indices = @transform_13, window_bounds = array<i64: 32, 128>}, {pipeline_mode = #tpu.pipeline_mode<synchronous>, transform_indices = @transform_14, window_bounds = array<i64: 1, 128>}, {pipeline_mode = #tpu.pipeline_mode<synchronous>, transform_indices = @transform_15, window_bounds = array<i64: 128, 32>}, {pipeline_mode = #tpu.pipeline_mode<synchronous>, transform_indices = @transform_16, window_bounds = array<i64: 1, 32>}, {transform_indices = @transform_17, window_bounds = array<i64: 1, 8, 32>}]} {
    %c0 = arith.constant 0 : index
    %c0_0 = arith.constant 0 : index
    %0 = vector.load %arg3[%c0, %c0_0] : memref<1x32xf32, #tpu.memory_space<vmem>>, vector<1x32xf32>
    %c0_1 = arith.constant 0 : index
    %c0_2 = arith.constant 0 : index
    %1 = vector.load %arg4[%c0_1, %c0_2] : memref<1x32xf32, #tpu.memory_space<vmem>>, vector<1x32xf32>
    %c0_i32 = arith.constant 0 : i32
    %2 = arith.cmpi eq, %arg1, %c0_i32 : i32
    %3 = arith.extui %2 : i1 to i32
    %c0_i32_3 = arith.constant 0 : i32
    %4 = arith.cmpi ne, %3, %c0_i32_3 : i32
    scf.if %4 {
      %c0_56 = arith.constant 0 : index
      %c0_57 = arith.constant 0 : index
      %c0_58 = arith.constant 0 : index
      %123 = vector.load %arg2[%c0_56, %c0_57, %c0_58] : memref<1x8x32xf32, #tpu.memory_space<vmem>>, vector<1x8x32xf32>
      %124 = vector.shape_cast %123 : vector<1x8x32xf32> to vector<8x32xf32>
      %cst_59 = arith.constant dense<0.000000e+00> : vector<8xf32>
      %125 = vector.multi_reduction <add>, %124, %cst_59 [1] : vector<8x32xf32> to vector<8xf32>
      %126 = vector.shape_cast %125 : vector<8xf32> to vector<8x1xf32>
      %cst_60 = arith.constant 3.200000e+01 : f32
      %127 = vector.broadcast %cst_60 : f32 to vector<8x1xf32>
      %128 = arith.divf %126, %127 : vector<8x1xf32>
      %129 = vector.broadcast %128 : vector<8x1xf32> to vector<8x32xf32>
      %130 = arith.subf %124, %129 : vector<8x32xf32>
      %131 = arith.mulf %130, %130 : vector<8x32xf32>
      %cst_61 = arith.constant dense<0.000000e+00> : vector<8xf32>
      %132 = vector.multi_reduction <add>, %131, %cst_61 [1] : vector<8x32xf32> to vector<8xf32>
      %133 = vector.shape_cast %132 : vector<8xf32> to vector<8x1xf32>
      %cst_62 = arith.constant 3.200000e+01 : f32
      %134 = vector.broadcast %cst_62 : f32 to vector<8x1xf32>
      %135 = arith.divf %133, %134 : vector<8x1xf32>
      %136 = vector.broadcast %128 : vector<8x1xf32> to vector<8x32xf32>
      %137 = arith.subf %124, %136 : vector<8x32xf32>
      %cst_63 = arith.constant 9.99999974E-6 : f32
      %138 = vector.broadcast %cst_63 : f32 to vector<8x1xf32>
      %139 = arith.addf %135, %138 : vector<8x1xf32>
      %140 = math.rsqrt %139 : vector<8x1xf32>
      %141 = vector.broadcast %140 : vector<8x1xf32> to vector<8x32xf32>
      %142 = arith.mulf %137, %141 : vector<8x32xf32>
      %143 = vector.broadcast %0 : vector<1x32xf32> to vector<8x32xf32>
      %144 = arith.mulf %142, %143 : vector<8x32xf32>
      %145 = vector.broadcast %1 : vector<1x32xf32> to vector<8x32xf32>
      %146 = arith.addf %144, %145 : vector<8x32xf32>
      %c0_64 = arith.constant 0 : index
      %c0_65 = arith.constant 0 : index
      %147 = vector.load %arg7[%c0_64, %c0_65] : memref<32x32xf32, #tpu.memory_space<vmem>>, vector<32x32xf32>
      %cst_66 = arith.constant dense<0.000000e+00> : vector<8x32xf32>
      %148 = tpu.matmul %146, %147, %cst_66 {dimension_numbers = #tpu.dot_dimension_numbers<[1], [0], [0], [1], [0, 0, 1, 1], [], []>} : vector<8x32xf32>, vector<32x32xf32>, vector<8x32xf32> -> vector<8x32xf32>
      %c0_67 = arith.constant 0 : index
      %c0_68 = arith.constant 0 : index
      %149 = vector.load %arg8[%c0_67, %c0_68] : memref<1x32xf32, #tpu.memory_space<vmem>>, vector<1x32xf32>
      %150 = vector.broadcast %149 : vector<1x32xf32> to vector<8x32xf32>
      %151 = arith.addf %148, %150 : vector<8x32xf32>
      %c0_69 = arith.constant 0 : index
      %c0_70 = arith.constant 0 : index
      %152 = vector.load %arg9[%c0_69, %c0_70] : memref<32x32xf32, #tpu.memory_space<vmem>>, vector<32x32xf32>
      %cst_71 = arith.constant dense<0.000000e+00> : vector<8x32xf32>
      %153 = tpu.matmul %146, %152, %cst_71 {dimension_numbers = #tpu.dot_dimension_numbers<[1], [0], [0], [1], [0, 0, 1, 1], [], []>} : vector<8x32xf32>, vector<32x32xf32>, vector<8x32xf32> -> vector<8x32xf32>
      %c0_72 = arith.constant 0 : index
      %c0_73 = arith.constant 0 : index
      %154 = vector.load %arg10[%c0_72, %c0_73] : memref<1x32xf32, #tpu.memory_space<vmem>>, vector<1x32xf32>
      %155 = vector.broadcast %154 : vector<1x32xf32> to vector<8x32xf32>
      %156 = arith.addf %153, %155 : vector<8x32xf32>
      %157 = vector.shape_cast %151 : vector<8x32xf32> to vector<8x4x8xf32>
      %158 = tpu.transpose %157, [1, 0, 2] : vector<8x4x8xf32> -> vector<4x8x8xf32>
      %c0_74 = arith.constant 0 : index
      %c0_75 = arith.constant 0 : index
      %c0_76 = arith.constant 0 : index
      %159 = vector.load %arg20[%c0_74, %c0_75, %c0_76] : memref<4x8x8xf32, #tpu.memory_space<vmem>>, vector<4x8x8xf32>
      tpu.vector_store %arg20[%c0_74, %c0_75, %c0_76], %158 {strides = array<i32>} : memref<4x8x8xf32, #tpu.memory_space<vmem>>, vector<4x8x8xf32>,
      %160 = vector.shape_cast %156 : vector<8x32xf32> to vector<8x4x8xf32>
      %161 = tpu.transpose %160, [1, 0, 2] : vector<8x4x8xf32> -> vector<4x8x8xf32>
      %c0_77 = arith.constant 0 : index
      %c0_78 = arith.constant 0 : index
      %c0_79 = arith.constant 0 : index
      %162 = vector.load %arg21[%c0_77, %c0_78, %c0_79] : memref<4x8x8xf32, #tpu.memory_space<vmem>>, vector<4x8x8xf32>
      tpu.vector_store %arg21[%c0_77, %c0_78, %c0_79], %161 {strides = array<i32>} : memref<4x8x8xf32, #tpu.memory_space<vmem>>, vector<4x8x8xf32>,
    } else {
    }
    %c8_i32 = arith.constant 8 : i32
    %5 = arith.muli %arg1, %c8_i32 : i32
    %6 = tpu.assume_multiple %5, 8 : i32
    %c0_4 = arith.constant 0 : index
    %7 = arith.index_cast %6 : i32 to index
    %c0_5 = arith.constant 0 : index
    %8 = vector.load %arg2[%c0_4, %7, %c0_5] : memref<1x8x32xf32, #tpu.memory_space<vmem>>, vector<1x8x32xf32>
    %9 = vector.shape_cast %8 : vector<1x8x32xf32> to vector<8x32xf32>
    %cst = arith.constant dense<0.000000e+00> : vector<8xf32>
    %10 = vector.multi_reduction <add>, %9, %cst [1] : vector<8x32xf32> to vector<8xf32>
    %11 = vector.shape_cast %10 : vector<8xf32> to vector<8x1xf32>
    %cst_6 = arith.constant 3.200000e+01 : f32
    %12 = vector.broadcast %cst_6 : f32 to vector<8x1xf32>
    %13 = arith.divf %11, %12 : vector<8x1xf32>
    %14 = vector.broadcast %13 : vector<8x1xf32> to vector<8x32xf32>
    %15 = arith.subf %9, %14 : vector<8x32xf32>
    %16 = arith.mulf %15, %15 : vector<8x32xf32>
    %cst_7 = arith.constant dense<0.000000e+00> : vector<8xf32>
    %17 = vector.multi_reduction <add>, %16, %cst_7 [1] : vector<8x32xf32> to vector<8xf32>
    %18 = vector.shape_cast %17 : vector<8xf32> to vector<8x1xf32>
    %cst_8 = arith.constant 3.200000e+01 : f32
    %19 = vector.broadcast %cst_8 : f32 to vector<8x1xf32>
    %20 = arith.divf %18, %19 : vector<8x1xf32>
    %21 = vector.broadcast %13 : vector<8x1xf32> to vector<8x32xf32>
    %22 = arith.subf %9, %21 : vector<8x32xf32>
    %cst_9 = arith.constant 9.99999974E-6 : f32
    %23 = vector.broadcast %cst_9 : f32 to vector<8x1xf32>
    %24 = arith.addf %20, %23 : vector<8x1xf32>
    %25 = math.rsqrt %24 : vector<8x1xf32>
    %26 = vector.broadcast %25 : vector<8x1xf32> to vector<8x32xf32>
    %27 = arith.mulf %22, %26 : vector<8x32xf32>
    %28 = vector.broadcast %0 : vector<1x32xf32> to vector<8x32xf32>
    %29 = arith.mulf %27, %28 : vector<8x32xf32>
    %30 = vector.broadcast %1 : vector<1x32xf32> to vector<8x32xf32>
    %31 = arith.addf %29, %30 : vector<8x32xf32>
    %c0_10 = arith.constant 0 : index
    %c0_11 = arith.constant 0 : index
    %32 = vector.load %arg5[%c0_10, %c0_11] : memref<32x32xf32, #tpu.memory_space<vmem>>, vector<32x32xf32>
    %cst_12 = arith.constant dense<0.000000e+00> : vector<8x32xf32>
    %33 = tpu.matmul %31, %32, %cst_12 {dimension_numbers = #tpu.dot_dimension_numbers<[1], [0], [0], [1], [0, 0, 1, 1], [], []>} : vector<8x32xf32>, vector<32x32xf32>, vector<8x32xf32> -> vector<8x32xf32>
    %c0_13 = arith.constant 0 : index
    %c0_14 = arith.constant 0 : index
    %34 = vector.load %arg6[%c0_13, %c0_14] : memref<1x32xf32, #tpu.memory_space<vmem>>, vector<1x32xf32>
    %35 = vector.broadcast %34 : vector<1x32xf32> to vector<8x32xf32>
    %36 = arith.addf %33, %35 : vector<8x32xf32>
    %37 = vector.shape_cast %36 : vector<8x32xf32> to vector<8x4x8xf32>
    %38 = tpu.transpose %37, [1, 0, 2] : vector<8x4x8xf32> -> vector<4x8x8xf32>
    %cst_15 = arith.constant 0xFF800000 : f32
    %39 = vector.broadcast %cst_15 : f32 to vector<4x8x1xf32>
    %cst_16 = arith.constant 0.000000e+00 : f32
    %40 = vector.broadcast %cst_16 : f32 to vector<4x8x1xf32>
    %cst_17 = arith.constant 0.000000e+00 : f32
    %41 = vector.broadcast %cst_17 : f32 to vector<4x8x8xf32>
    %c0_i32_18 = arith.constant 0 : i32
    %c8_i32_19 = arith.constant 8 : i32
    %42 = arith.muli %c0_i32_18, %c8_i32_19 : i32
    %43 = tpu.assume_multiple %42, 8 : i32
    %c0_20 = arith.constant 0 : index
    %44 = arith.index_cast %43 : i32 to index
    %c0_21 = arith.constant 0 : index
    %45 = vector.load %arg20[%c0_20, %44, %c0_21] : memref<4x8x8xf32, #tpu.memory_space<vmem>>, vector<4x8x8xf32>
    %c0_22 = arith.constant 0 : index
    %46 = arith.index_cast %43 : i32 to index
    %c0_23 = arith.constant 0 : index
    %47 = vector.load %arg21[%c0_22, %46, %c0_23] : memref<4x8x8xf32, #tpu.memory_space<vmem>>, vector<4x8x8xf32>
    "tpu.trace_start"() <{level = 10 : i32, message = "hqd,hkd->hqk"}> : () -> ()
    %cst_24 = arith.constant dense<0.000000e+00> : vector<4x8x8xf32>
    %48 = tpu.matmul %38, %45, %cst_24 {dimension_numbers = #tpu.dot_dimension_numbers<[2], [2], [1], [1], [0, 0, 0, 1, 1, 1], [0], [0]>} : vector<4x8x8xf32>, vector<4x8x8xf32>, vector<4x8x8xf32> -> vector<4x8x8xf32>
    "tpu.trace_stop"() : () -> ()
    %cst_25 = arith.constant dense<0xFF800000> : vector<4x8xf32>
    %49 = vector.multi_reduction <maximumf>, %48, %cst_25 [2] : vector<4x8x8xf32> to vector<4x8xf32>
    %50 = vector.shape_cast %49 : vector<4x8xf32> to vector<4x8x1xf32>
    %51 = arith.maximumf %39, %50 : vector<4x8x1xf32>
    %52 = arith.subf %39, %51 : vector<4x8x1xf32>
    %53 = math.exp %52 : vector<4x8x1xf32>
    %54 = vector.broadcast %51 : vector<4x8x1xf32> to vector<4x8x8xf32>
    %55 = arith.subf %48, %54 : vector<4x8x8xf32>
    %56 = math.exp %55 : vector<4x8x8xf32>
    %57 = arith.mulf %53, %40 : vector<4x8x1xf32>
    %cst_26 = arith.constant dense<0.000000e+00> : vector<4x8xf32>
    %58 = vector.multi_reduction <add>, %56, %cst_26 [2] : vector<4x8x8xf32> to vector<4x8xf32>
    %59 = vector.shape_cast %58 : vector<4x8xf32> to vector<4x8x1xf32>
    %60 = arith.addf %57, %59 : vector<4x8x1xf32>
    %61 = vector.broadcast %53 : vector<4x8x1xf32> to vector<4x8x8xf32>
    %62 = arith.mulf %61, %41 : vector<4x8x8xf32>
    "tpu.trace_start"() <{level = 10 : i32, message = "hqk,hkd->hqd"}> : () -> ()
    %cst_27 = arith.constant dense<0.000000e+00> : vector<4x8x8xf32>
    %63 = tpu.matmul %56, %47, %cst_27 {dimension_numbers = #tpu.dot_dimension_numbers<[2], [1], [1], [2], [0, 0, 0, 1, 1, 2], [0], [0]>} : vector<4x8x8xf32>, vector<4x8x8xf32>, vector<4x8x8xf32> -> vector<4x8x8xf32>
    "tpu.trace_stop"() : () -> ()
    %64 = arith.addf %62, %63 : vector<4x8x8xf32>
    %c1_i32 = arith.constant 1 : i32
    %65 = tpu.reciprocal %60 : vector<4x8x1xf32> -> vector<4x8x1xf32>
    %66 = vector.broadcast %65 : vector<4x8x1xf32> to vector<4x8x8xf32>
    %67 = arith.mulf %64, %66 : vector<4x8x8xf32>
    %68 = tpu.transpose %67, [1, 0, 2] : vector<4x8x8xf32> -> vector<8x4x8xf32>
    %69 = vector.shape_cast %68 : vector<8x4x8xf32> to vector<8x32xf32>
    %c0_28 = arith.constant 0 : index
    %c0_29 = arith.constant 0 : index
    %70 = vector.load %arg11[%c0_28, %c0_29] : memref<32x32xf32, #tpu.memory_space<vmem>>, vector<32x32xf32>
    %cst_30 = arith.constant dense<0.000000e+00> : vector<8x32xf32>
    %71 = tpu.matmul %69, %70, %cst_30 {dimension_numbers = #tpu.dot_dimension_numbers<[1], [0], [0], [1], [0, 0, 1, 1], [], []>} : vector<8x32xf32>, vector<32x32xf32>, vector<8x32xf32> -> vector<8x32xf32>
    %c0_31 = arith.constant 0 : index
    %c0_32 = arith.constant 0 : index
    %72 = vector.load %arg12[%c0_31, %c0_32] : memref<1x32xf32, #tpu.memory_space<vmem>>, vector<1x32xf32>
    %73 = vector.broadcast %72 : vector<1x32xf32> to vector<8x32xf32>
    %74 = arith.addf %71, %73 : vector<8x32xf32>
    %75 = arith.addf %74, %9 : vector<8x32xf32>
    %c0_33 = arith.constant 0 : index
    %c0_34 = arith.constant 0 : index
    %76 = vector.load %arg13[%c0_33, %c0_34] : memref<1x32xf32, #tpu.memory_space<vmem>>, vector<1x32xf32>
    %c0_35 = arith.constant 0 : index
    %c0_36 = arith.constant 0 : index
    %77 = vector.load %arg14[%c0_35, %c0_36] : memref<1x32xf32, #tpu.memory_space<vmem>>, vector<1x32xf32>
    %cst_37 = arith.constant dense<0.000000e+00> : vector<8xf32>
    %78 = vector.multi_reduction <add>, %75, %cst_37 [1] : vector<8x32xf32> to vector<8xf32>
    %79 = vector.shape_cast %78 : vector<8xf32> to vector<8x1xf32>
    %cst_38 = arith.constant 3.200000e+01 : f32
    %80 = vector.broadcast %cst_38 : f32 to vector<8x1xf32>
    %81 = arith.divf %79, %80 : vector<8x1xf32>
    %82 = vector.broadcast %81 : vector<8x1xf32> to vector<8x32xf32>
    %83 = arith.subf %75, %82 : vector<8x32xf32>
    %84 = arith.mulf %83, %83 : vector<8x32xf32>
    %cst_39 = arith.constant dense<0.000000e+00> : vector<8xf32>
    %85 = vector.multi_reduction <add>, %84, %cst_39 [1] : vector<8x32xf32> to vector<8xf32>
    %86 = vector.shape_cast %85 : vector<8xf32> to vector<8x1xf32>
    %cst_40 = arith.constant 3.200000e+01 : f32
    %87 = vector.broadcast %cst_40 : f32 to vector<8x1xf32>
    %88 = arith.divf %86, %87 : vector<8x1xf32>
    %89 = vector.broadcast %81 : vector<8x1xf32> to vector<8x32xf32>
    %90 = arith.subf %75, %89 : vector<8x32xf32>
    %cst_41 = arith.constant 9.99999974E-6 : f32
    %91 = vector.broadcast %cst_41 : f32 to vector<8x1xf32>
    %92 = arith.addf %88, %91 : vector<8x1xf32>
    %93 = math.rsqrt %92 : vector<8x1xf32>
    %94 = vector.broadcast %93 : vector<8x1xf32> to vector<8x32xf32>
    %95 = arith.mulf %90, %94 : vector<8x32xf32>
    %96 = vector.broadcast %76 : vector<1x32xf32> to vector<8x32xf32>
    %97 = arith.mulf %95, %96 : vector<8x32xf32>
    %98 = vector.broadcast %77 : vector<1x32xf32> to vector<8x32xf32>
    %99 = arith.addf %97, %98 : vector<8x32xf32>
    %cst_42 = arith.constant 0.000000e+00 : f32
    %100 = vector.broadcast %cst_42 : f32 to vector<8x32xf32>
    %c0_i32_43 = arith.constant 0 : i32
    %c128_i32 = arith.constant 128 : i32
    %101 = arith.muli %c0_i32_43, %c128_i32 : i32
    %102 = tpu.assume_multiple %101, 128 : i32
    %c0_44 = arith.constant 0 : index
    %103 = arith.index_cast %102 : i32 to index
    %104 = vector.load %arg15[%c0_44, %103] : memref<32x128xf32, #tpu.memory_space<vmem>>, vector<32x128xf32>
    %cst_45 = arith.constant dense<0.000000e+00> : vector<8x128xf32>
    %105 = tpu.matmul %99, %104, %cst_45 {dimension_numbers = #tpu.dot_dimension_numbers<[1], [0], [0], [1], [0, 0, 1, 1], [], []>} : vector<8x32xf32>, vector<32x128xf32>, vector<8x128xf32> -> vector<8x128xf32>
    %c0_46 = arith.constant 0 : index
    %106 = arith.index_cast %102 : i32 to index
    %107 = vector.load %arg16[%c0_46, %106] : memref<1x128xf32, #tpu.memory_space<vmem>>, vector<1x128xf32>
    %108 = vector.broadcast %107 : vector<1x128xf32> to vector<8x128xf32>
    %109 = arith.addf %105, %108 : vector<8x128xf32>
    %cst_47 = arith.constant 0.000000e+00 : f32
    %110 = vector.broadcast %cst_47 : f32 to vector<8x128xf32>
    %111 = arith.maximumf %109, %110 : vector<8x128xf32>
    %112 = arith.index_cast %102 : i32 to index
    %c0_48 = arith.constant 0 : index
    %113 = vector.load %arg17[%112, %c0_48] : memref<128x32xf32, #tpu.memory_space<vmem>>, vector<128x32xf32>
    %cst_49 = arith.constant dense<0.000000e+00> : vector<8x32xf32>
    %114 = tpu.matmul %111, %113, %cst_49 {dimension_numbers = #tpu.dot_dimension_numbers<[1], [0], [0], [1], [0, 0, 1, 1], [], []>} : vector<8x128xf32>, vector<128x32xf32>, vector<8x32xf32> -> vector<8x32xf32>
    %115 = arith.addf %100, %114 : vector<8x32xf32>
    %c1_i32_50 = arith.constant 1 : i32
    %c0_51 = arith.constant 0 : index
    %c0_52 = arith.constant 0 : index
    %116 = vector.load %arg18[%c0_51, %c0_52] : memref<1x32xf32, #tpu.memory_space<vmem>>, vector<1x32xf32>
    %117 = vector.broadcast %116 : vector<1x32xf32> to vector<8x32xf32>
    %118 = arith.addf %115, %117 : vector<8x32xf32>
    %119 = arith.addf %118, %75 : vector<8x32xf32>
    %c0_53 = arith.constant 0 : index
    %c0_54 = arith.constant 0 : index
    %c0_55 = arith.constant 0 : index
    %120 = vector.load %arg19[%c0_53, %c0_54, %c0_55] : memref<1x8x32xf32, #tpu.memory_space<vmem>>, vector<1x8x32xf32>
    %121 = vector.shape_cast %120 : vector<1x8x32xf32> to vector<8x32xf32>
    %122 = vector.shape_cast %119 : vector<8x32xf32> to vector<1x8x32xf32>
    tpu.vector_store %arg19[%c0_53, %c0_54, %c0_55], %122 {strides = array<i32>} : memref<1x8x32xf32, #tpu.memory_space<vmem>>, vector<1x8x32xf32>,
    return
  }
  func.func @transform_0(%arg0: i32, %arg1: i32) -> (i32, i32, i32) {
    %c0_i32 = arith.constant 0 : i32
    %c0_i32_0 = arith.constant 0 : i32
    %c0_i32_1 = arith.constant 0 : i32
    return %arg0, %c0_i32, %c0_i32_0 : i32, i32, i32
  }
  func.func @transform_1(%arg0: i32, %arg1: i32) -> (i32, i32) {
    %c0_i32 = arith.constant 0 : i32
    %c0_i32_0 = arith.constant 0 : i32
    %c0_i32_1 = arith.constant 0 : i32
    return %c0_i32, %c0_i32_0 : i32, i32
  }
  func.func @transform_2(%arg0: i32, %arg1: i32) -> (i32, i32) {
    %c0_i32 = arith.constant 0 : i32
    %c0_i32_0 = arith.constant 0 : i32
    %c0_i32_1 = arith.constant 0 : i32
    return %c0_i32, %c0_i32_0 : i32, i32
  }
  func.func @transform_3(%arg0: i32, %arg1: i32) -> (i32, i32) {
    %c0_i32 = arith.constant 0 : i32
    %c0_i32_0 = arith.constant 0 : i32
    %c0_i32_1 = arith.constant 0 : i32
    return %c0_i32, %c0_i32_0 : i32, i32
  }
  func.func @transform_4(%arg0: i32, %arg1: i32) -> (i32, i32) {
    %c0_i32 = arith.constant 0 : i32
    %c0_i32_0 = arith.constant 0 : i32
    %c0_i32_1 = arith.constant 0 : i32
    return %c0_i32, %c0_i32_0 : i32, i32
  }
  func.func @transform_5(%arg0: i32, %arg1: i32) -> (i32, i32) {
    %c0_i32 = arith.constant 0 : i32
    %c0_i32_0 = arith.constant 0 : i32
    %c0_i32_1 = arith.constant 0 : i32
    return %c0_i32, %c0_i32_0 : i32, i32
  }
  func.func @transform_6(%arg0: i32, %arg1: i32) -> (i32, i32) {
    %c0_i32 = arith.constant 0 : i32
    %c0_i32_0 = arith.constant 0 : i32
    %c0_i32_1 = arith.constant 0 : i32
    return %c0_i32, %c0_i32_0 : i32, i32
  }
  func.func @transform_7(%arg0: i32, %arg1: i32) -> (i32, i32) {
    %c0_i32 = arith.constant 0 : i32
    %c0_i32_0 = arith.constant 0 : i32
    %c0_i32_1 = arith.constant 0 : i32
    return %c0_i32, %c0_i32_0 : i32, i32
  }
  func.func @transform_8(%arg0: i32, %arg1: i32) -> (i32, i32) {
    %c0_i32 = arith.constant 0 : i32
    %c0_i32_0 = arith.constant 0 : i32
    %c0_i32_1 = arith.constant 0 : i32
    return %c0_i32, %c0_i32_0 : i32, i32
  }
  func.func @transform_9(%arg0: i32, %arg1: i32) -> (i32, i32) {
    %c0_i32 = arith.constant 0 : i32
    %c0_i32_0 = arith.constant 0 : i32
    %c0_i32_1 = arith.constant 0 : i32
    return %c0_i32, %c0_i32_0 : i32, i32
  }
  func.func @transform_10(%arg0: i32, %arg1: i32) -> (i32, i32) {
    %c0_i32 = arith.constant 0 : i32
    %c0_i32_0 = arith.constant 0 : i32
    %c0_i32_1 = arith.constant 0 : i32
    return %c0_i32, %c0_i32_0 : i32, i32
  }
  func.func @transform_11(%arg0: i32, %arg1: i32) -> (i32, i32) {
    %c0_i32 = arith.constant 0 : i32
    %c0_i32_0 = arith.constant 0 : i32
    %c0_i32_1 = arith.constant 0 : i32
    return %c0_i32, %c0_i32_0 : i32, i32
  }
  func.func @transform_12(%arg0: i32, %arg1: i32) -> (i32, i32) {
    %c0_i32 = arith.constant 0 : i32
    %c0_i32_0 = arith.constant 0 : i32
    %c0_i32_1 = arith.constant 0 : i32
    return %c0_i32, %c0_i32_0 : i32, i32
  }
  func.func @transform_13(%arg0: i32, %arg1: i32) -> (i32, i32) {
    %c0_i32 = arith.constant 0 : i32
    %c0_i32_0 = arith.constant 0 : i32
    %c0_i32_1 = arith.constant 0 : i32
    return %c0_i32, %c0_i32_0 : i32, i32
  }
  func.func @transform_14(%arg0: i32, %arg1: i32) -> (i32, i32) {
    %c0_i32 = arith.constant 0 : i32
    %c0_i32_0 = arith.constant 0 : i32
    %c0_i32_1 = arith.constant 0 : i32
    return %c0_i32, %c0_i32_0 : i32, i32
  }
  func.func @transform_15(%arg0: i32, %arg1: i32) -> (i32, i32) {
    %c0_i32 = arith.constant 0 : i32
    %c0_i32_0 = arith.constant 0 : i32
    %c0_i32_1 = arith.constant 0 : i32
    return %c0_i32, %c0_i32_0 : i32, i32
  }
  func.func @transform_16(%arg0: i32, %arg1: i32) -> (i32, i32) {
    %c0_i32 = arith.constant 0 : i32
    %c0_i32_0 = arith.constant 0 : i32
    %c0_i32_1 = arith.constant 0 : i32
    return %c0_i32, %c0_i32_0 : i32, i32
  }
  func.func @transform_17(%arg0: i32, %arg1: i32) -> (i32, i32, i32) {
    %c0_i32 = arith.constant 0 : i32
    %c0_i32_0 = arith.constant 0 : i32
    return %arg0, %arg1, %c0_i32 : i32, i32, i32
  }
}

</mosaic_0001>

<llo_original>
// kernel: tpu_custom_call.1
$region0: #{tpu_custom_call.1}
  #allocation0 [shape = 'u32[]', space=smem, size = 0x4, offset = 0x4, fixed_abs, tag = 'smem constant byte address 0x4 - core index']
  #allocation1 [shape = 'u32[144,128]{1,0:T(1,128)}', space=vmem, size = 0x12000, scoped, tag = 'internal scratch']
  #allocation2 [shape = 'f32[4,8,8]{2,1,0:T(8,128)}', space=vmem, size = 0x4000, scoped, tag = 'scratch operand']
  #allocation3 [shape = 'f32[4,8,8]{2,1,0:T(8,128)}', space=vmem, size = 0x4000, scoped, tag = 'scratch operand']
  %s0 = inlined_call_operand.hbm [shape: f32[2,8,32], index: 0, kind: input, shape index: {}]
  %s1 = inlined_call_operand.hbm [shape: f32[1,32], index: 1, kind: input, shape index: {}]
  %s2 = inlined_call_operand.hbm [shape: f32[1,32], index: 2, kind: input, shape index: {}]
  %s3 = inlined_call_operand.hbm [shape: f32[32,32], index: 3, kind: input, shape index: {}]
  %s4 = inlined_call_operand.hbm [shape: f32[1,32], index: 4, kind: input, shape index: {}]
  %s5 = inlined_call_operand.hbm [shape: f32[32,32], index: 5, kind: input, shape index: {}]
  %s6 = inlined_call_operand.hbm [shape: f32[1,32], index: 6, kind: input, shape index: {}]
  %s7 = inlined_call_operand.hbm [shape: f32[32,32], index: 7, kind: input, shape index: {}]
  %s8 = inlined_call_operand.hbm [shape: f32[1,32], index: 8, kind: input, shape index: {}]
  %s9 = inlined_call_operand.hbm [shape: f32[32,32], index: 9, kind: input, shape index: {}]
  %s10 = inlined_call_operand.hbm [shape: f32[1,32], index: 10, kind: input, shape index: {}]
  %s11 = inlined_call_operand.hbm [shape: f32[1,32], index: 11, kind: input, shape index: {}]
  %s12 = inlined_call_operand.hbm [shape: f32[1,32], index: 12, kind: input, shape index: {}]
  %s13 = inlined_call_operand.hbm [shape: f32[32,128], index: 13, kind: input, shape index: {}]
  %s14 = inlined_call_operand.hbm [shape: f32[1,128], index: 14, kind: input, shape index: {}]
  %s15 = inlined_call_operand.hbm [shape: f32[128,32], index: 15, kind: input, shape index: {}]
  %s16 = inlined_call_operand.hbm [shape: f32[1,32], index: 16, kind: input, shape index: {}]
  %s17 = inlined_call_operand.hbm [shape: f32[2,8,32], index: 17, kind: output, shape index: {}]
  %s18 = sld [smem:[#allocation0]]
  $region173: #{tpu_custom_call.1} parent=0
    _
  %s20 = ssub.s32 1, %s18
  %s21 = scalar_select 0, %s20, %s18
  $region1: #{tpu_custom_call.1} parent=0
    #allocation4 [shape = 'u8[8192]{0}', space=vmem, size = 0x2000, scoped, tag = 'input window, operand 0']
    #allocation5 [shape = 's32[2]{0}', space=sflag, size = 0x8, scoped, tag = 'scoped memory for tpu_custom_call.1']
    #allocation6 [shape = 's32[2]{0}', space=sflag, size = 0x8, scoped, tag = 'scoped memory for tpu_custom_call.1']
    #allocation7 [shape = 'u8[512]{0}', space=vmem, size = 0x400, scoped, tag = 'input window, operand 1, single buffered']
    #allocation8 [shape = 's32[1]{0}', space=sflag, size = 0x4, scoped, tag = 'scoped memory for tpu_custom_call.1']
    #allocation9 [shape = 'u8[512]{0}', space=vmem, size = 0x400, scoped, tag = 'input window, operand 2, single buffered']
    #allocation10 [shape = 'u8[16384]{0}', space=vmem, size = 0x4000, scoped, tag = 'input window, operand 3, single buffered']
    #allocation11 [shape = 's32[1]{0}', space=sflag, size = 0x4, scoped, tag = 'scoped memory for tpu_custom_call.1']
    #allocation12 [shape = 'u8[512]{0}', space=vmem, size = 0x400, scoped, tag = 'input window, operand 4, single buffered']
    #allocation13 [shape = 'u8[16384]{0}', space=vmem, size = 0x4000, scoped, tag = 'input window, operand 5, single buffered']
    #allocation14 [shape = 's32[1]{0}', space=sflag, size = 0x4, scoped, tag = 'scoped memory for tpu_custom_call.1']
    #allocation15 [shape = 'u8[512]{0}', space=vmem, size = 0x400, scoped, tag = 'input window, operand 6, single buffered']
    #allocation16 [shape = 'u8[16384]{0}', space=vmem, size = 0x4000, scoped, tag = 'input window, operand 7, single buffered']
    #allocation17 [shape = 's32[1]{0}', space=sflag, size = 0x4, scoped, tag = 'scoped memory for tpu_custom_call.1']
    #allocation18 [shape = 'u8[512]{0}', space=vmem, size = 0x400, scoped, tag = 'input window, operand 8, single buffered']
    #allocation19 [shape = 'u8[16384]{0}', space=vmem, size = 0x4000, scoped, tag = 'input window, operand 9, single buffered']
    #allocation20 [shape = 's32[1]{0}', space=sflag, size = 0x4, scoped, tag = 'scoped memory for tpu_custom_call.1']
    #allocation21 [shape = 'u8[512]{0}', space=vmem, size = 0x400, scoped, tag = 'input window, operand 10, single buffered']
    #allocation22 [shape = 'u8[512]{0}', space=vmem, size = 0x400, scoped, tag = 'input window, operand 11, single buffered']
    #allocation23 [shape = 's32[1]{0}', space=sflag, size = 0x4, scoped, tag = 'scoped memory for tpu_custom_call.1']
    #allocation24 [shape = 'u8[512]{0}', space=vmem, size = 0x400, scoped, tag = 'input window, operand 12, single buffered']
    #allocation25 [shape = 'u8[16384]{0}', space=vmem, size = 0x4000, scoped, tag = 'input window, operand 13, single buffered']
    #allocation26 [shape = 's32[1]{0}', space=sflag, size = 0x4, scoped, tag = 'scoped memory for tpu_custom_call.1']
    #allocation27 [shape = 'u8[512]{0}', space=vmem, size = 0x400, scoped, tag = 'input window, operand 14, single buffered']
    #allocation28 [shape = 'u8[65536]{0}', space=vmem, size = 0x10000, scoped, tag = 'input window, operand 15, single buffered']
    #allocation29 [shape = 's32[1]{0}', space=sflag, size = 0x4, scoped, tag = 'scoped memory for tpu_custom_call.1']
    #allocation30 [shape = 'u8[512]{0}', space=vmem, size = 0x400, scoped, tag = 'input window, operand 16, single buffered']
    #allocation31 [shape = 'u8[8192]{0}', space=vmem, size = 0x2000, scoped, tag = 'output window, operand 0']
    %22 = vsyncpa [#allocation5], 0
    %s23 = scalar_lea.sflag [#allocation5], 1
    %24 = vsyncpa %s23, 0
    %25 = vsyncpa [#allocation8], 0
    %26 = vsyncpa [#allocation11], 0
    %27 = vsyncpa [#allocation14], 0
    %28 = vsyncpa [#allocation17], 0
    %29 = vsyncpa [#allocation20], 0
    %30 = vsyncpa [#allocation23], 0
    %31 = vsyncpa [#allocation26], 0
    %32 = vsyncpa [#allocation29], 0
    %33 = vsyncpa [#allocation6], 0
    %s34 = scalar_lea.sflag [#allocation6], 1
    %35 = vsyncpa %s34, 0
    loop: start=0, step=1, limit=4
    $region2: #{tpu_custom_call.1} parent=1 // loop_pre_header
      _
    $region3: #{tpu_custom_call.1} parent=1 // loop_header
      %s37 = sphi 0, %s41
      %p38 = scmp.ge.s32.totalorder %s37, 4
      %s44 = sphi 0, %s56
      %s45 = sphi 0, %s52
      %s46 = sphi 0, %s44
      %s47 = sphi 0, %s45
      %s48 = sphi 0, %s46
      %s49 = sphi 0, %s47
      %s59 = sphi 0, %s61
      %s62 = sphi 0, %s59
      %s63 = sphi 0, %s62
      %s79 = sphi 0, %s63
      %s83 = sphi 0, %s83
      %s85 = sphi 0, %s83
      %s86 = sphi 0, %s85
      %s100 = sphi 0, %s86
      %s104 = sphi 0, %s104
      %s106 = sphi 0, %s104
      %s107 = sphi 0, %s106
      %s121 = sphi 0, %s107
      %s125 = sphi 0, %s125
      %s127 = sphi 0, %s125
      %s128 = sphi 0, %s127
      %s142 = sphi 0, %s128
      %s146 = sphi 0, %s146
      %s148 = sphi 0, %s146
      %s149 = sphi 0, %s148
      %s163 = sphi 0, %s149
      %s167 = sphi 0, %s167
      %s169 = sphi 0, %s167
      %s170 = sphi 0, %s169
      %s184 = sphi 0, %s170
      %s188 = sphi 0, %s188
      %s190 = sphi 0, %s188
      %s191 = sphi 0, %s190
      %s205 = sphi 0, %s191
      %s209 = sphi 0, %s209
      %s211 = sphi 0, %s209
      %s212 = sphi 0, %s211
      %s226 = sphi 0, %s212
      %s230 = sphi 0, %s230
      %s232 = sphi 0, %s230
      %s233 = sphi 0, %s232
      %s247 = sphi 0, %s233
      %s251 = sphi 0, %s251
      %s253 = sphi 0, %s251
      %s254 = sphi 0, %s253
      %s268 = sphi 0, %s254
      %s272 = sphi 0, %s272
      %s274 = sphi 0, %s272
      %s275 = sphi 0, %s274
      %s289 = sphi 0, %s275
      %s293 = sphi 0, %s293
      %s295 = sphi 0, %s293
      %s296 = sphi 0, %s295
      %s310 = sphi 0, %s296
      %s314 = sphi 0, %s314
      %s316 = sphi 0, %s314
      %s317 = sphi 0, %s316
      %s331 = sphi 0, %s317
      %s335 = sphi 0, %s335
      %s337 = sphi 0, %s335
      %s338 = sphi 0, %s337
      %s352 = sphi 0, %s338
      %s356 = sphi 0, %s356
      %s358 = sphi 0, %s356
      %s359 = sphi 0, %s358
      %s373 = sphi 0, %s359
      %s377 = sphi 0, %s377
      %s379 = sphi 0, %s377
      %s380 = sphi 0, %s379
      %s394 = sphi 0, %s380
      %s398 = sphi 0, %s398
      %s400 = sphi 0, %s398
      %s401 = sphi 0, %s400
      %s415 = sphi 0, %s401
      %s423 = sphi 0, %s425
      %s426 = sphi 0, %s423
      %s427 = sphi 0, %s426
      %s443 = sphi 0, %s427
    $region4: #{tpu_custom_call.1} parent=1 // loop_header_branch
      %40 = sbr.rel (%p38) target = $region8
    $region5: #{tpu_custom_call.1} parent=1 // loop_body
      %s42 = ssub.s32 %s37, 1
      %s43 = ssub.s32 %s37, 2
      %s50 = sadd.s32 1, %s45
      %p51 = scmp.ge.s32.totalorder %s50, 1
      %s52 = scalar_select %p51, 0, %s50
      %s53 = sadd.s32 1, %s44
      %s54 = scalar_select %p51, %s53, %s44
      %p55 = scmp.ge.s32.totalorder %s54, 2
      %s56 = scalar_select %p55, 0, %s54
      %s57 = ssub.s32 %s44, %s56
      %p58 = scmp.eq.s32.totalorder %s57, 0
      %s60 = sadd.s32 %s59, 1
      %s61 = scalar_select %p58, %s59, %s60
      %p64 = pneg %p58
      %p65 = scmp.eq.s32.totalorder %s37, 1
      %p66 = por %p64, %p65
      %p67 = scmp.ne.s32.totalorder %s59, %s62
      %p68 = scmp.eq.s32.totalorder %s37, 0
      %p69 = por %p67, %p68
      %p70 = scmp.ne.s32.totalorder %s59, %s62
      %p71 = scmp.eq.s32.totalorder %s42, 1
      %p72 = por %p70, %p71
      %p73 = scmp.ne.s32.totalorder %s62, %s63
      %p74 = scmp.eq.s32.totalorder %s42, 0
      %p75 = por %p73, %p74
      %p76 = scmp.ne.s32.totalorder %s62, %s63
      %p77 = scmp.eq.s32.totalorder %s43, 1
      %p78 = por %p76, %p77
      %p80 = scmp.ne.s32.totalorder %s63, %s79
      %p81 = scmp.eq.s32.totalorder %s43, 0
      %p82 = por %p80, %p81
      %s84 = sadd.s32 %s83, 1
      %p87 = scmp.eq.s32.totalorder %s37, 1
      %p88 = scmp.ne.s32.totalorder %s83, %s85
      %p89 = scmp.eq.s32.totalorder %s37, 0
      %p90 = por %p88, %p89
      %p91 = scmp.ne.s32.totalorder %s83, %s85
      %p92 = scmp.eq.s32.totalorder %s42, 1
      %p93 = por %p91, %p92
      %p94 = scmp.ne.s32.totalorder %s85, %s86
      %p95 = scmp.eq.s32.totalorder %s42, 0
      %p96 = por %p94, %p95
      %p97 = scmp.ne.s32.totalorder %s85, %s86
      %p98 = scmp.eq.s32.totalorder %s43, 1
      %p99 = por %p97, %p98
      %p101 = scmp.ne.s32.totalorder %s86, %s100
      %p102 = scmp.eq.s32.totalorder %s43, 0
      %p103 = por %p101, %p102
      %s105 = sadd.s32 %s104, 1
      %p108 = scmp.eq.s32.totalorder %s37, 1
      %p109 = scmp.ne.s32.totalorder %s104, %s106
      %p110 = scmp.eq.s32.totalorder %s37, 0
      %p111 = por %p109, %p110
      %p112 = scmp.ne.s32.totalorder %s104, %s106
      %p113 = scmp.eq.s32.totalorder %s42, 1
      %p114 = por %p112, %p113
      %p115 = scmp.ne.s32.totalorder %s106, %s107
      %p116 = scmp.eq.s32.totalorder %s42, 0
      %p117 = por %p115, %p116
      %p118 = scmp.ne.s32.totalorder %s106, %s107
      %p119 = scmp.eq.s32.totalorder %s43, 1
      %p120 = por %p118, %p119
      %p122 = scmp.ne.s32.totalorder %s107, %s121
      %p123 = scmp.eq.s32.totalorder %s43, 0
      %p124 = por %p122, %p123
      %s126 = sadd.s32 %s125, 1
      %p129 = scmp.eq.s32.totalorder %s37, 1
      %p130 = scmp.ne.s32.totalorder %s125, %s127
      %p131 = scmp.eq.s32.totalorder %s37, 0
      %p132 = por %p130, %p131
      %p133 = scmp.ne.s32.totalorder %s125, %s127
      %p134 = scmp.eq.s32.totalorder %s42, 1
      %p135 = por %p133, %p134
      %p136 = scmp.ne.s32.totalorder %s127, %s128
      %p137 = scmp.eq.s32.totalorder %s42, 0
      %p138 = por %p136, %p137
      %p139 = scmp.ne.s32.totalorder %s127, %s128
      %p140 = scmp.eq.s32.totalorder %s43, 1
      %p141 = por %p139, %p140
      %p143 = scmp.ne.s32.totalorder %s128, %s142
      %p144 = scmp.eq.s32.totalorder %s43, 0
      %p145 = por %p143, %p144
      %s147 = sadd.s32 %s146, 1
      %p150 = scmp.eq.s32.totalorder %s37, 1
      %p151 = scmp.ne.s32.totalorder %s146, %s148
      %p152 = scmp.eq.s32.totalorder %s37, 0
      %p153 = por %p151, %p152
      %p154 = scmp.ne.s32.totalorder %s146, %s148
      %p155 = scmp.eq.s32.totalorder %s42, 1
      %p156 = por %p154, %p155
      %p157 = scmp.ne.s32.totalorder %s148, %s149
      %p158 = scmp.eq.s32.totalorder %s42, 0
      %p159 = por %p157, %p158
      %p160 = scmp.ne.s32.totalorder %s148, %s149
      %p161 = scmp.eq.s32.totalorder %s43, 1
      %p162 = por %p160, %p161
      %p164 = scmp.ne.s32.totalorder %s149, %s163
      %p165 = scmp.eq.s32.totalorder %s43, 0
      %p166 = por %p164, %p165
      %s168 = sadd.s32 %s167, 1
      %p171 = scmp.eq.s32.totalorder %s37, 1
      %p172 = scmp.ne.s32.totalorder %s167, %s169
      %p173 = scmp.eq.s32.totalorder %s37, 0
      %p174 = por %p172, %p173
      %p175 = scmp.ne.s32.totalorder %s167, %s169
      %p176 = scmp.eq.s32.totalorder %s42, 1
      %p177 = por %p175, %p176
      %p178 = scmp.ne.s32.totalorder %s169, %s170
      %p179 = scmp.eq.s32.totalorder %s42, 0
      %p180 = por %p178, %p179
      %p181 = scmp.ne.s32.totalorder %s169, %s170
      %p182 = scmp.eq.s32.totalorder %s43, 1
      %p183 = por %p181, %p182
      %p185 = scmp.ne.s32.totalorder %s170, %s184
      %p186 = scmp.eq.s32.totalorder %s43, 0
      %p187 = por %p185, %p186
      %s189 = sadd.s32 %s188, 1
      %p192 = scmp.eq.s32.totalorder %s37, 1
      %p193 = scmp.ne.s32.totalorder %s188, %s190
      %p194 = scmp.eq.s32.totalorder %s37, 0
      %p195 = por %p193, %p194
      %p196 = scmp.ne.s32.totalorder %s188, %s190
      %p197 = scmp.eq.s32.totalorder %s42, 1
      %p198 = por %p196, %p197
      %p199 = scmp.ne.s32.totalorder %s190, %s191
      %p200 = scmp.eq.s32.totalorder %s42, 0
      %p201 = por %p199, %p200
      %p202 = scmp.ne.s32.totalorder %s190, %s191
      %p203 = scmp.eq.s32.totalorder %s43, 1
      %p204 = por %p202, %p203
      %p206 = scmp.ne.s32.totalorder %s191, %s205
      %p207 = scmp.eq.s32.totalorder %s43, 0
      %p208 = por %p206, %p207
      %s210 = sadd.s32 %s209, 1
      %p213 = scmp.eq.s32.totalorder %s37, 1
      %p214 = scmp.ne.s32.totalorder %s209, %s211
      %p215 = scmp.eq.s32.totalorder %s37, 0
      %p216 = por %p214, %p215
      %p217 = scmp.ne.s32.totalorder %s209, %s211
      %p218 = scmp.eq.s32.totalorder %s42, 1
      %p219 = por %p217, %p218
      %p220 = scmp.ne.s32.totalorder %s211, %s212
      %p221 = scmp.eq.s32.totalorder %s42, 0
      %p222 = por %p220, %p221
      %p223 = scmp.ne.s32.totalorder %s211, %s212
      %p224 = scmp.eq.s32.totalorder %s43, 1
      %p225 = por %p223, %p224
      %p227 = scmp.ne.s32.totalorder %s212, %s226
      %p228 = scmp.eq.s32.totalorder %s43, 0
      %p229 = por %p227, %p228
      %s231 = sadd.s32 %s230, 1
      %p234 = scmp.eq.s32.totalorder %s37, 1
      %p235 = scmp.ne.s32.totalorder %s230, %s232
      %p236 = scmp.eq.s32.totalorder %s37, 0
      %p237 = por %p235, %p236
      %p238 = scmp.ne.s32.totalorder %s230, %s232
      %p239 = scmp.eq.s32.totalorder %s42, 1
      %p240 = por %p238, %p239
      %p241 = scmp.ne.s32.totalorder %s232, %s233
      %p242 = scmp.eq.s32.totalorder %s42, 0
      %p243 = por %p241, %p242
      %p244 = scmp.ne.s32.totalorder %s232, %s233
      %p245 = scmp.eq.s32.totalorder %s43, 1
      %p246 = por %p244, %p245
      %p248 = scmp.ne.s32.totalorder %s233, %s247
      %p249 = scmp.eq.s32.totalorder %s43, 0
      %p250 = por %p248, %p249
      %s252 = sadd.s32 %s251, 1
      %p255 = scmp.eq.s32.totalorder %s37, 1
      %p256 = scmp.ne.s32.totalorder %s251, %s253
      %p257 = scmp.eq.s32.totalorder %s37, 0
      %p258 = por %p256, %p257
      %p259 = scmp.ne.s32.totalorder %s251, %s253
      %p260 = scmp.eq.s32.totalorder %s42, 1
      %p261 = por %p259, %p260
      %p262 = scmp.ne.s32.totalorder %s253, %s254
      %p263 = scmp.eq.s32.totalorder %s42, 0
      %p264 = por %p262, %p263
      %p265 = scmp.ne.s32.totalorder %s253, %s254
      %p266 = scmp.eq.s32.totalorder %s43, 1
      %p267 = por %p265, %p266
      %p269 = scmp.ne.s32.totalorder %s254, %s268
      %p270 = scmp.eq.s32.totalorder %s43, 0
      %p271 = por %p269, %p270
      %s273 = sadd.s32 %s272, 1
      %p276 = scmp.eq.s32.totalorder %s37, 1
      %p277 = scmp.ne.s32.totalorder %s272, %s274
      %p278 = scmp.eq.s32.totalorder %s37, 0
      %p279 = por %p277, %p278
      %p280 = scmp.ne.s32.totalorder %s272, %s274
      %p281 = scmp.eq.s32.totalorder %s42, 1
      %p282 = por %p280, %p281
      %p283 = scmp.ne.s32.totalorder %s274, %s275
      %p284 = scmp.eq.s32.totalorder %s42, 0
      %p285 = por %p283, %p284
      %p286 = scmp.ne.s32.totalorder %s274, %s275
      %p287 = scmp.eq.s32.totalorder %s43, 1
      %p288 = por %p286, %p287
      %p290 = scmp.ne.s32.totalorder %s275, %s289
      %p291 = scmp.eq.s32.totalorder %s43, 0
      %p292 = por %p290, %p291
      %s294 = sadd.s32 %s293, 1
      %p297 = scmp.eq.s32.totalorder %s37, 1
      %p298 = scmp.ne.s32.totalorder %s293, %s295
      %p299 = scmp.eq.s32.totalorder %s37, 0
      %p300 = por %p298, %p299
      %p301 = scmp.ne.s32.totalorder %s293, %s295
      %p302 = scmp.eq.s32.totalorder %s42, 1
      %p303 = por %p301, %p302
      %p304 = scmp.ne.s32.totalorder %s295, %s296
      %p305 = scmp.eq.s32.totalorder %s42, 0
      %p306 = por %p304, %p305
      %p307 = scmp.ne.s32.totalorder %s295, %s296
      %p308 = scmp.eq.s32.totalorder %s43, 1
      %p309 = por %p307, %p308
      %p311 = scmp.ne.s32.totalorder %s296, %s310
      %p312 = scmp.eq.s32.totalorder %s43, 0
      %p313 = por %p311, %p312
      %s315 = sadd.s32 %s314, 1
      %p318 = scmp.eq.s32.totalorder %s37, 1
      %p319 = scmp.ne.s32.totalorder %s314, %s316
      %p320 = scmp.eq.s32.totalorder %s37, 0
      %p321 = por %p319, %p320
      %p322 = scmp.ne.s32.totalorder %s314, %s316
      %p323 = scmp.eq.s32.totalorder %s42, 1
      %p324 = por %p322, %p323
      %p325 = scmp.ne.s32.totalorder %s316, %s317
      %p326 = scmp.eq.s32.totalorder %s42, 0
      %p327 = por %p325, %p326
      %p328 = scmp.ne.s32.totalorder %s316, %s317
      %p329 = scmp.eq.s32.totalorder %s43, 1
      %p330 = por %p328, %p329
      %p332 = scmp.ne.s32.totalorder %s317, %s331
      %p333 = scmp.eq.s32.totalorder %s43, 0
      %p334 = por %p332, %p333
      %s336 = sadd.s32 %s335, 1
      %p339 = scmp.eq.s32.totalorder %s37, 1
      %p340 = scmp.ne.s32.totalorder %s335, %s337
      %p341 = scmp.eq.s32.totalorder %s37, 0
      %p342 = por %p340, %p341
      %p343 = scmp.ne.s32.totalorder %s335, %s337
      %p344 = scmp.eq.s32.totalorder %s42, 1
      %p345 = por %p343, %p344
      %p346 = scmp.ne.s32.totalorder %s337, %s338
      %p347 = scmp.eq.s32.totalorder %s42, 0
      %p348 = por %p346, %p347
      %p349 = scmp.ne.s32.totalorder %s337, %s338
      %p350 = scmp.eq.s32.totalorder %s43, 1
      %p351 = por %p349, %p350
      %p353 = scmp.ne.s32.totalorder %s338, %s352
      %p354 = scmp.eq.s32.totalorder %s43, 0
      %p355 = por %p353, %p354
      %s357 = sadd.s32 %s356, 1
      %p360 = scmp.eq.s32.totalorder %s37, 1
      %p361 = scmp.ne.s32.totalorder %s356, %s358
      %p362 = scmp.eq.s32.totalorder %s37, 0
      %p363 = por %p361, %p362
      %p364 = scmp.ne.s32.totalorder %s356, %s358
      %p365 = scmp.eq.s32.totalorder %s42, 1
      %p366 = por %p364, %p365
      %p367 = scmp.ne.s32.totalorder %s358, %s359
      %p368 = scmp.eq.s32.totalorder %s42, 0
      %p369 = por %p367, %p368
      %p370 = scmp.ne.s32.totalorder %s358, %s359
      %p371 = scmp.eq.s32.totalorder %s43, 1
      %p372 = por %p370, %p371
      %p374 = scmp.ne.s32.totalorder %s359, %s373
      %p375 = scmp.eq.s32.totalorder %s43, 0
      %p376 = por %p374, %p375
      %s378 = sadd.s32 %s377, 1
      %p381 = scmp.eq.s32.totalorder %s37, 1
      %p382 = scmp.ne.s32.totalorder %s377, %s379
      %p383 = scmp.eq.s32.totalorder %s37, 0
      %p384 = por %p382, %p383
      %p385 = scmp.ne.s32.totalorder %s377, %s379
      %p386 = scmp.eq.s32.totalorder %s42, 1
      %p387 = por %p385, %p386
      %p388 = scmp.ne.s32.totalorder %s379, %s380
      %p389 = scmp.eq.s32.totalorder %s42, 0
      %p390 = por %p388, %p389
      %p391 = scmp.ne.s32.totalorder %s379, %s380
      %p392 = scmp.eq.s32.totalorder %s43, 1
      %p393 = por %p391, %p392
      %p395 = scmp.ne.s32.totalorder %s380, %s394
      %p396 = scmp.eq.s32.totalorder %s43, 0
      %p397 = por %p395, %p396
      %s399 = sadd.s32 %s398, 1
      %p402 = scmp.eq.s32.totalorder %s37, 1
      %p403 = scmp.ne.s32.totalorder %s398, %s400
      %p404 = scmp.eq.s32.totalorder %s37, 0
      %p405 = por %p403, %p404
      %p406 = scmp.ne.s32.totalorder %s398, %s400
      %p407 = scmp.eq.s32.totalorder %s42, 1
      %p408 = por %p406, %p407
      %p409 = scmp.ne.s32.totalorder %s400, %s401
      %p410 = scmp.eq.s32.totalorder %s42, 0
      %p411 = por %p409, %p410
      %p412 = scmp.ne.s32.totalorder %s400, %s401
      %p413 = scmp.eq.s32.totalorder %s43, 1
      %p414 = por %p412, %p413
      %p416 = scmp.ne.s32.totalorder %s401, %s415
      %p417 = scmp.eq.s32.totalorder %s43, 0
      %p418 = por %p416, %p417
      %s419 = ssub.s32 %s44, %s56
      %s420 = ssub.s32 %s45, %s52
      %s421 = sor.u32 %s419, %s420
      %p422 = scmp.eq.s32.totalorder %s421, 0
      %s424 = sadd.s32 %s423, 1
      %s425 = scalar_select %p422, %s423, %s424
      %p428 = pneg %p422
      %p429 = scmp.eq.s32.totalorder %s37, 1
      %p430 = por %p428, %p429
      %p431 = scmp.ne.s32.totalorder %s423, %s426
      %p432 = scmp.eq.s32.totalorder %s37, 0
      %p433 = por %p431, %p432
      %p434 = scmp.ne.s32.totalorder %s423, %s426
      %p435 = scmp.eq.s32.totalorder %s42, 1
      %p436 = por %p434, %p435
      %p437 = scmp.ne.s32.totalorder %s426, %s427
      %p438 = scmp.eq.s32.totalorder %s42, 0
      %p439 = por %p437, %p438
      %p440 = scmp.ne.s32.totalorder %s426, %s427
      %p441 = scmp.eq.s32.totalorder %s43, 1
      %p442 = por %p440, %p441
      %p444 = scmp.ne.s32.totalorder %s427, %s443
      %p445 = scmp.eq.s32.totalorder %s43, 0
      %p446 = por %p444, %p445
      %p447 = scmp.le.s32.totalorder 1, %s37
      %p448 = scmp.lt.s32.totalorder %s37, 3
      %p449 = pnand %p447, %p448
      %p450 = pneg %p449
      // Predicated region
      $region9: #{tpu_custom_call.1} parent=5 // pred_check
        _
      $region10: #{tpu_custom_call.1} parent=5 // pred_check_branch
        %452 = sbr.rel (%p449) target = $region12
      $region11: #{tpu_custom_call.1} parent=5 // pred_region
        %s453 = ssub.s32 %s37, 1
        // Predicated region
        $region13: #{tpu_custom_call.1} parent=11 // pred_check
          %p454 = pneg %p96
        $region14: #{tpu_custom_call.1} parent=11 // pred_check_branch
          %456 = sbr.rel (%p454) target = $region16
        $region15: #{tpu_custom_call.1} parent=11 // pred_region
          %s458 = ssub.s32 16, 16
          %459 = vsyncadd [#allocation8], %s458
          %s461 = sshll.u32 [#allocation7], 4
          %s462 = int_to_ptr.vmem [resolvable:$true] %s461
          %464 = dma.hbm_to_vmem [thread:$0]  %s1, 16, %s462, [#allocation8]
        $region16: #{tpu_custom_call.1} parent=11 // pred_fallthru
          _
        // Predicated region
        $region17: #{tpu_custom_call.1} parent=11 // pred_check
          %p465 = pneg %p117
        $region18: #{tpu_custom_call.1} parent=11 // pred_check_branch
          %467 = sbr.rel (%p465) target = $region20
        $region19: #{tpu_custom_call.1} parent=11 // pred_region
          %s469 = ssub.s32 16, 16
          %470 = vsyncadd [#allocation8], %s469
          %s472 = sshll.u32 [#allocation9], 4
          %s473 = int_to_ptr.vmem [resolvable:$true] %s472
          %475 = dma.hbm_to_vmem [thread:$0]  %s2, 16, %s473, [#allocation8]
        $region20: #{tpu_custom_call.1} parent=11 // pred_fallthru
          _
        // Predicated region
        $region21: #{tpu_custom_call.1} parent=11 // pred_check
          %p476 = pneg %p138
        $region22: #{tpu_custom_call.1} parent=11 // pred_check_branch
          %478 = sbr.rel (%p476) target = $region24
        $region23: #{tpu_custom_call.1} parent=11 // pred_region
          %s480 = ssub.s32 512, 512
          %481 = vsyncadd [#allocation11], %s480
          %s482 = sshll.u32 [#allocation10], 4
          %s483 = int_to_ptr.vmem [resolvable:$true] %s482
          %488 = dma.hbm_to_vmem [thread:$0]  %s3, 512, %s483, [#allocation11], 128, 128, 8
        $region24: #{tpu_custom_call.1} parent=11 // pred_fallthru
          _
        // Predicated region
        $region25: #{tpu_custom_call.1} parent=11 // pred_check
          %p489 = pneg %p159
        $region26: #{tpu_custom_call.1} parent=11 // pred_check_branch
          %491 = sbr.rel (%p489) target = $region28
        $region27: #{tpu_custom_call.1} parent=11 // pred_region
          %s493 = ssub.s32 16, 16
          %494 = vsyncadd [#allocation11], %s493
          %s496 = sshll.u32 [#allocation12], 4
          %s497 = int_to_ptr.vmem [resolvable:$true] %s496
          %499 = dma.hbm_to_vmem [thread:$0]  %s4, 16, %s497, [#allocation11]
        $region28: #{tpu_custom_call.1} parent=11 // pred_fallthru
          _
        // Predicated region
        $region29: #{tpu_custom_call.1} parent=11 // pred_check
          %p500 = pneg %p180
        $region30: #{tpu_custom_call.1} parent=11 // pred_check_branch
          %502 = sbr.rel (%p500) target = $region32
        $region31: #{tpu_custom_call.1} parent=11 // pred_region
          %s504 = ssub.s32 512, 512
          %505 = vsyncadd [#allocation14], %s504
          %s506 = sshll.u32 [#allocation13], 4
          %s507 = int_to_ptr.vmem [resolvable:$true] %s506
          %512 = dma.hbm_to_vmem [thread:$0]  %s5, 512, %s507, [#allocation14], 128, 128, 8
        $region32: #{tpu_custom_call.1} parent=11 // pred_fallthru
          _
        // Predicated region
        $region33: #{tpu_custom_call.1} parent=11 // pred_check
          %p513 = pneg %p201
        $region34: #{tpu_custom_call.1} parent=11 // pred_check_branch
          %515 = sbr.rel (%p513) target = $region36
        $region35: #{tpu_custom_call.1} parent=11 // pred_region
          %s517 = ssub.s32 16, 16
          %518 = vsyncadd [#allocation14], %s517
          %s520 = sshll.u32 [#allocation15], 4
          %s521 = int_to_ptr.vmem [resolvable:$true] %s520
          %523 = dma.hbm_to_vmem [thread:$0]  %s6, 16, %s521, [#allocation14]
        $region36: #{tpu_custom_call.1} parent=11 // pred_fallthru
          _
        // Predicated region
        $region37: #{tpu_custom_call.1} parent=11 // pred_check
          %p524 = pneg %p222
        $region38: #{tpu_custom_call.1} parent=11 // pred_check_branch
          %526 = sbr.rel (%p524) target = $region40
        $region39: #{tpu_custom_call.1} parent=11 // pred_region
          %s528 = ssub.s32 512, 512
          %529 = vsyncadd [#allocation17], %s528
          %s530 = sshll.u32 [#allocation16], 4
          %s531 = int_to_ptr.vmem [resolvable:$true] %s530
          %536 = dma.hbm_to_vmem [thread:$0]  %s7, 512, %s531, [#allocation17], 128, 128, 8
        $region40: #{tpu_custom_call.1} parent=11 // pred_fallthru
          _
        // Predicated region
        $region41: #{tpu_custom_call.1} parent=11 // pred_check
          %p537 = pneg %p243
        $region42: #{tpu_custom_call.1} parent=11 // pred_check_branch
          %539 = sbr.rel (%p537) target = $region44
        $region43: #{tpu_custom_call.1} parent=11 // pred_region
          %s541 = ssub.s32 16, 16
          %542 = vsyncadd [#allocation17], %s541
          %s544 = sshll.u32 [#allocation18], 4
          %s545 = int_to_ptr.vmem [resolvable:$true] %s544
          %547 = dma.hbm_to_vmem [thread:$0]  %s8, 16, %s545, [#allocation17]
        $region44: #{tpu_custom_call.1} parent=11 // pred_fallthru
          _
        // Predicated region
        $region45: #{tpu_custom_call.1} parent=11 // pred_check
          %p548 = pneg %p264
        $region46: #{tpu_custom_call.1} parent=11 // pred_check_branch
          %550 = sbr.rel (%p548) target = $region48
        $region47: #{tpu_custom_call.1} parent=11 // pred_region
          %s552 = ssub.s32 512, 512
          %553 = vsyncadd [#allocation20], %s552
          %s554 = sshll.u32 [#allocation19], 4
          %s555 = int_to_ptr.vmem [resolvable:$true] %s554
          %560 = dma.hbm_to_vmem [thread:$0]  %s9, 512, %s555, [#allocation20], 128, 128, 8
        $region48: #{tpu_custom_call.1} parent=11 // pred_fallthru
          _
        // Predicated region
        $region49: #{tpu_custom_call.1} parent=11 // pred_check
          %p561 = pneg %p285
        $region50: #{tpu_custom_call.1} parent=11 // pred_check_branch
          %563 = sbr.rel (%p561) target = $region52
        $region51: #{tpu_custom_call.1} parent=11 // pred_region
          %s565 = ssub.s32 16, 16
          %566 = vsyncadd [#allocation20], %s565
          %s568 = sshll.u32 [#allocation21], 4
          %s569 = int_to_ptr.vmem [resolvable:$true] %s568
          %571 = dma.hbm_to_vmem [thread:$0]  %s10, 16, %s569, [#allocation20]
        $region52: #{tpu_custom_call.1} parent=11 // pred_fallthru
          _
        // Predicated region
        $region53: #{tpu_custom_call.1} parent=11 // pred_check
          %p572 = pneg %p306
        $region54: #{tpu_custom_call.1} parent=11 // pred_check_branch
          %574 = sbr.rel (%p572) target = $region56
        $region55: #{tpu_custom_call.1} parent=11 // pred_region
          %s576 = ssub.s32 16, 16
          %577 = vsyncadd [#allocation23], %s576
          %s579 = sshll.u32 [#allocation22], 4
          %s580 = int_to_ptr.vmem [resolvable:$true] %s579
          %582 = dma.hbm_to_vmem [thread:$0]  %s11, 16, %s580, [#allocation23]
        $region56: #{tpu_custom_call.1} parent=11 // pred_fallthru
          _
        // Predicated region
        $region57: #{tpu_custom_call.1} parent=11 // pred_check
          %p583 = pneg %p327
        $region58: #{tpu_custom_call.1} parent=11 // pred_check_branch
          %585 = sbr.rel (%p583) target = $region60
        $region59: #{tpu_custom_call.1} parent=11 // pred_region
          %s587 = ssub.s32 16, 16
          %588 = vsyncadd [#allocation23], %s587
          %s590 = sshll.u32 [#allocation24], 4
          %s591 = int_to_ptr.vmem [resolvable:$true] %s590
          %593 = dma.hbm_to_vmem [thread:$0]  %s12, 16, %s591, [#allocation23]
        $region60: #{tpu_custom_call.1} parent=11 // pred_fallthru
          _
        // Predicated region
        $region61: #{tpu_custom_call.1} parent=11 // pred_check
          %p594 = pneg %p348
        $region62: #{tpu_custom_call.1} parent=11 // pred_check_branch
          %596 = sbr.rel (%p594) target = $region64
        $region63: #{tpu_custom_call.1} parent=11 // pred_region
          %s598 = ssub.s32 512, 512
          %599 = vsyncadd [#allocation26], %s598
          %s600 = sshll.u32 [#allocation25], 4
          %s601 = int_to_ptr.vmem [resolvable:$true] %s600
          %606 = dma.hbm_to_vmem [thread:$0]  %s13, 512, %s601, [#allocation26], 128, 128, 8
        $region64: #{tpu_custom_call.1} parent=11 // pred_fallthru
          _
        // Predicated region
        $region65: #{tpu_custom_call.1} parent=11 // pred_check
          %p607 = pneg %p369
        $region66: #{tpu_custom_call.1} parent=11 // pred_check_branch
          %609 = sbr.rel (%p607) target = $region68
        $region67: #{tpu_custom_call.1} parent=11 // pred_region
          %s611 = ssub.s32 16, 16
          %612 = vsyncadd [#allocation26], %s611
          %s614 = sshll.u32 [#allocation27], 4
          %s615 = int_to_ptr.vmem [resolvable:$true] %s614
          %617 = dma.hbm_to_vmem [thread:$0]  %s14, 16, %s615, [#allocation26]
        $region68: #{tpu_custom_call.1} parent=11 // pred_fallthru
          _
        // Predicated region
        $region69: #{tpu_custom_call.1} parent=11 // pred_check
          %p618 = pneg %p390
        $region70: #{tpu_custom_call.1} parent=11 // pred_check_branch
          %620 = sbr.rel (%p618) target = $region72
        $region71: #{tpu_custom_call.1} parent=11 // pred_region
          %s622 = ssub.s32 2048, 2048
          %623 = vsyncadd [#allocation29], %s622
          %s624 = sshll.u32 [#allocation28], 4
          %s625 = int_to_ptr.vmem [resolvable:$true] %s624
          %630 = dma.hbm_to_vmem [thread:$0]  %s15, 2048, %s625, [#allocation29], 128, 128, 8
        $region72: #{tpu_custom_call.1} parent=11 // pred_fallthru
          _
        // Predicated region
        $region73: #{tpu_custom_call.1} parent=11 // pred_check
          %p631 = pneg %p411
        $region74: #{tpu_custom_call.1} parent=11 // pred_check_branch
          %633 = sbr.rel (%p631) target = $region76
        $region75: #{tpu_custom_call.1} parent=11 // pred_region
          %s635 = ssub.s32 16, 16
          %636 = vsyncadd [#allocation29], %s635
          %s638 = sshll.u32 [#allocation30], 4
          %s639 = int_to_ptr.vmem [resolvable:$true] %s638
          %641 = dma.hbm_to_vmem [thread:$0]  %s16, 16, %s639, [#allocation29]
        $region76: #{tpu_custom_call.1} parent=11 // pred_fallthru
          _
      $region12: #{tpu_custom_call.1} parent=5 // pred_fallthru
        _
      %p642 = scmp.lt.s32.totalorder %s37, 2
      // Predicated region
      $region77: #{tpu_custom_call.1} parent=5 // pred_check
        %p643 = pneg %p642
      $region78: #{tpu_custom_call.1} parent=5 // pred_check_branch
        %645 = sbr.rel (%p643) target = $region80
      $region79: #{tpu_custom_call.1} parent=5 // pred_region
        // Predicated region
        $region81: #{tpu_custom_call.1} parent=79 // pred_check
          %p646 = pneg %p69
        $region82: #{tpu_custom_call.1} parent=79 // pred_check_branch
          %648 = sbr.rel (%p646) target = $region84
        $region83: #{tpu_custom_call.1} parent=79 // pred_region
          %s649 = sand.u32 %s59, 1
          %s650 = scalar_lea.sflag [#allocation5], %s649
          %s651 = sand.u32 %s59, 1
          %s652 = smul.addr %s651, 8
          %s653 = scalar_lea.vmem [#allocation4], %s652
          %s655 = ssub.s32 128, 128
          %656 = vsyncadd %s650, %s655
          %s657 = smul.addr %s44, 128
          %s658 = scalar_lea.hbm %s0, %s657
          %s660 = sshll.u32 %s653, 4
          %s661 = int_to_ptr.vmem [resolvable:$true] %s660
          %663 = dma.hbm_to_vmem [thread:$0]  %s658, 128, %s661, %s650
        $region84: #{tpu_custom_call.1} parent=79 // pred_fallthru
          _
      $region80: #{tpu_custom_call.1} parent=5 // pred_fallthru
        _
      %p664 = scmp.le.s32.totalorder 1, %s37
      %p665 = scmp.lt.s32.totalorder %s37, 3
      %p666 = pnand %p664, %p665
      %p667 = pneg %p666
      // Predicated region
      $region85: #{tpu_custom_call.1} parent=5 // pred_check
        _
      $region86: #{tpu_custom_call.1} parent=5 // pred_check_branch
        %669 = sbr.rel (%p666) target = $region88
      $region87: #{tpu_custom_call.1} parent=5 // pred_region
        %s670 = ssub.s32 %s37, 1
        %s671 = sand.u32 %s62, 1
        %s672 = scalar_lea.sflag [#allocation5], %s671
        %s673 = sand.u32 %s62, 1
        %s674 = smul.addr %s673, 8
        %s675 = scalar_lea.vmem [#allocation4], %s674
        // Predicated region
        $region89: #{tpu_custom_call.1} parent=87 // pred_check
          %p676 = pneg %p75
        $region90: #{tpu_custom_call.1} parent=87 // pred_check_branch
          %678 = sbr.rel (%p676) target = $region92
        $region91: #{tpu_custom_call.1} parent=87 // pred_region
          %679 = dma.done %s672, 128
        $region92: #{tpu_custom_call.1} parent=87 // pred_fallthru
          _
        // Predicated region
        $region93: #{tpu_custom_call.1} parent=87 // pred_check
          %p680 = pneg %p96
        $region94: #{tpu_custom_call.1} parent=87 // pred_check_branch
          %682 = sbr.rel (%p680) target = $region96
        $region95: #{tpu_custom_call.1} parent=87 // pred_region
          %683 = dma.done [#allocation8], 16
        $region96: #{tpu_custom_call.1} parent=87 // pred_fallthru
          _
        // Predicated region
        $region97: #{tpu_custom_call.1} parent=87 // pred_check
          %p684 = pneg %p117
        $region98: #{tpu_custom_call.1} parent=87 // pred_check_branch
          %686 = sbr.rel (%p684) target = $region100
        $region99: #{tpu_custom_call.1} parent=87 // pred_region
          %687 = dma.done [#allocation8], 16
        $region100: #{tpu_custom_call.1} parent=87 // pred_fallthru
          _
        // Predicated region
        $region101: #{tpu_custom_call.1} parent=87 // pred_check
          %p688 = pneg %p138
        $region102: #{tpu_custom_call.1} parent=87 // pred_check_branch
          %690 = sbr.rel (%p688) target = $region104
        $region103: #{tpu_custom_call.1} parent=87 // pred_region
          %691 = dma.done [#allocation11], 512
        $region104: #{tpu_custom_call.1} parent=87 // pred_fallthru
          _
        // Predicated region
        $region105: #{tpu_custom_call.1} parent=87 // pred_check
          %p692 = pneg %p159
        $region106: #{tpu_custom_call.1} parent=87 // pred_check_branch
          %694 = sbr.rel (%p692) target = $region108
        $region107: #{tpu_custom_call.1} parent=87 // pred_region
          %695 = dma.done [#allocation11], 16
        $region108: #{tpu_custom_call.1} parent=87 // pred_fallthru
          _
        // Predicated region
        $region109: #{tpu_custom_call.1} parent=87 // pred_check
          %p696 = pneg %p180
        $region110: #{tpu_custom_call.1} parent=87 // pred_check_branch
          %698 = sbr.rel (%p696) target = $region112
        $region111: #{tpu_custom_call.1} parent=87 // pred_region
          %699 = dma.done [#allocation14], 512
        $region112: #{tpu_custom_call.1} parent=87 // pred_fallthru
          _
        // Predicated region
        $region113: #{tpu_custom_call.1} parent=87 // pred_check
          %p700 = pneg %p201
        $region114: #{tpu_custom_call.1} parent=87 // pred_check_branch
          %702 = sbr.rel (%p700) target = $region116
        $region115: #{tpu_custom_call.1} parent=87 // pred_region
          %703 = dma.done [#allocation14], 16
        $region116: #{tpu_custom_call.1} parent=87 // pred_fallthru
          _
        // Predicated region
        $region117: #{tpu_custom_call.1} parent=87 // pred_check
          %p704 = pneg %p222
        $region118: #{tpu_custom_call.1} parent=87 // pred_check_branch
          %706 = sbr.rel (%p704) target = $region120
        $region119: #{tpu_custom_call.1} parent=87 // pred_region
          %707 = dma.done [#allocation17], 512
        $region120: #{tpu_custom_call.1} parent=87 // pred_fallthru
          _
        // Predicated region
        $region121: #{tpu_custom_call.1} parent=87 // pred_check
          %p708 = pneg %p243
        $region122: #{tpu_custom_call.1} parent=87 // pred_check_branch
          %710 = sbr.rel (%p708) target = $region124
        $region123: #{tpu_custom_call.1} parent=87 // pred_region
          %711 = dma.done [#allocation17], 16
        $region124: #{tpu_custom_call.1} parent=87 // pred_fallthru
          _
        // Predicated region
        $region125: #{tpu_custom_call.1} parent=87 // pred_check
          %p712 = pneg %p264
        $region126: #{tpu_custom_call.1} parent=87 // pred_check_branch
          %714 = sbr.rel (%p712) target = $region128
        $region127: #{tpu_custom_call.1} parent=87 // pred_region
          %715 = dma.done [#allocation20], 512
        $region128: #{tpu_custom_call.1} parent=87 // pred_fallthru
          _
        // Predicated region
        $region129: #{tpu_custom_call.1} parent=87 // pred_check
          %p716 = pneg %p285
        $region130: #{tpu_custom_call.1} parent=87 // pred_check_branch
          %718 = sbr.rel (%p716) target = $region132
        $region131: #{tpu_custom_call.1} parent=87 // pred_region
          %719 = dma.done [#allocation20], 16
        $region132: #{tpu_custom_call.1} parent=87 // pred_fallthru
          _
        // Predicated region
        $region133: #{tpu_custom_call.1} parent=87 // pred_check
          %p720 = pneg %p306
        $region134: #{tpu_custom_call.1} parent=87 // pred_check_branch
          %722 = sbr.rel (%p720) target = $region136
        $region135: #{tpu_custom_call.1} parent=87 // pred_region
          %723 = dma.done [#allocation23], 16
        $region136: #{tpu_custom_call.1} parent=87 // pred_fallthru
          _
        // Predicated region
        $region137: #{tpu_custom_call.1} parent=87 // pred_check
          %p724 = pneg %p327
        $region138: #{tpu_custom_call.1} parent=87 // pred_check_branch
          %726 = sbr.rel (%p724) target = $region140
        $region139: #{tpu_custom_call.1} parent=87 // pred_region
          %727 = dma.done [#allocation23], 16
        $region140: #{tpu_custom_call.1} parent=87 // pred_fallthru
          _
        // Predicated region
        $region141: #{tpu_custom_call.1} parent=87 // pred_check
          %p728 = pneg %p348
        $region142: #{tpu_custom_call.1} parent=87 // pred_check_branch
          %730 = sbr.rel (%p728) target = $region144
        $region143: #{tpu_custom_call.1} parent=87 // pred_region
          %731 = dma.done [#allocation26], 512
        $region144: #{tpu_custom_call.1} parent=87 // pred_fallthru
          _
        // Predicated region
        $region145: #{tpu_custom_call.1} parent=87 // pred_check
          %p732 = pneg %p369
        $region146: #{tpu_custom_call.1} parent=87 // pred_check_branch
          %734 = sbr.rel (%p732) target = $region148
        $region147: #{tpu_custom_call.1} parent=87 // pred_region
          %735 = dma.done [#allocation26], 16
        $region148: #{tpu_custom_call.1} parent=87 // pred_fallthru
          _
        // Predicated region
        $region149: #{tpu_custom_call.1} parent=87 // pred_check
          %p736 = pneg %p390
        $region150: #{tpu_custom_call.1} parent=87 // pred_check_branch
          %738 = sbr.rel (%p736) target = $region152
        $region151: #{tpu_custom_call.1} parent=87 // pred_region
          %739 = dma.done [#allocation29], 2048
        $region152: #{tpu_custom_call.1} parent=87 // pred_fallthru
          _
        // Predicated region
        $region153: #{tpu_custom_call.1} parent=87 // pred_check
          %p740 = pneg %p411
        $region154: #{tpu_custom_call.1} parent=87 // pred_check_branch
          %742 = sbr.rel (%p740) target = $region156
        $region155: #{tpu_custom_call.1} parent=87 // pred_region
          %743 = dma.done [#allocation29], 16
        $region156: #{tpu_custom_call.1} parent=87 // pred_fallthru
          _
        %s744 = sand.u32 %s62, 1
        %s745 = scalar_lea.sflag [#allocation5], %s744
        %s746 = sand.u32 %s62, 1
        %s747 = smul.addr %s746, 8
        %s748 = scalar_lea.vmem [#allocation4], %s747
        %p749 = pneg %p75
        %p750 = pneg %p72
        %p751 = pneg %p96
        %p752 = pneg %p93
        %p753 = pneg %p117
        %p754 = pneg %p114
        %p755 = pneg %p138
        %p756 = pneg %p135
        %p757 = pneg %p159
        %p758 = pneg %p156
        %p759 = pneg %p180
        %p760 = pneg %p177
        %p761 = pneg %p201
        %p762 = pneg %p198
        %p763 = pneg %p222
        %p764 = pneg %p219
        %p765 = pneg %p243
        %p766 = pneg %p240
        %p767 = pneg %p264
        %p768 = pneg %p261
        %p769 = pneg %p285
        %p770 = pneg %p282
        %p771 = pneg %p306
        %p772 = pneg %p303
        %p773 = pneg %p327
        %p774 = pneg %p324
        %p775 = pneg %p348
        %p776 = pneg %p345
        %p777 = pneg %p369
        %p778 = pneg %p366
        %p779 = pneg %p390
        %p780 = pneg %p387
        %p781 = pneg %p411
        %p782 = pneg %p408
        %p783 = pneg %p439
        %p784 = pneg %p436
        %s785 = sand.u32 %s426, 1
        %s786 = scalar_lea.sflag [#allocation6], %s785
        %s787 = sand.u32 %s426, 1
        %s788 = smul.addr %s787, 8
        %s789 = scalar_lea.vmem [#allocation31], %s788
        %v790 = vld [vmem:[#allocation7] sm:$0x1]
        %v791 = vld [vmem:[#allocation9] sm:$0x1]
        %p792 = scmp.eq.s32.totalorder %s47, 0
        // Predicated region
        $region157: #{tpu_custom_call.1} parent=87 // pred_check
          %p793 = pneg %p792
        $region158: #{tpu_custom_call.1} parent=87 // pred_check_branch
          %795 = sbr.rel (%p793) target = $region160
        $region159: #{tpu_custom_call.1} parent=87 // pred_region
          %v796 = vld [vmem:[%s675] sm:$0xff]
          %vm797 = vcmask 261120
          %v798 = vsel %vm797, %v796, 0.0
          %799 = vadd.xlane.f32.xlu0 %v798
          %v800 = vpop.xlane.xlu0 %799
          %v801 = vrcp.pop 32.0
          %v802 = vmul.f32 %v800, %v801
          %v803 = vsub.f32 %v796, %v802
          %v804 = vmul.f32 %v803, %v803
          %v805 = vsel %vm797, %v804, 0.0
          %806 = vadd.xlane.f32.xlu0 %v805
          %v807 = vpop.xlane.xlu0 %806
          %v808 = vmul.f32 %v807, %v801
          %v809 = vadd.f32 %v808, 1e-05
          %v810 = vrsqrt.pop %v809
          %v811 = vmul.f32 %v803, %v810
          %v813 = vlaneseq
          %v814 = vshrl.u32 %v813, 7
          %v815 = vsub.s32 0, %v814
          %v816 = vrot.slane %v790, %v815
          %v818 = vmul.f32 %v811, %v816
          %v820 = vlaneseq
          %v821 = vshrl.u32 %v820, 7
          %v822 = vsub.s32 0, %v821
          %v823 = vrot.slane %v791, %v822
          %v825 = vadd.f32 %v818, %v823
          %v826 = vld [vmem:[#allocation13] sm:$0xff]
          %v827 = vld [vmem:[#allocation13 + $0x8] sm:$0xff]
          %v828 = vld [vmem:[#allocation13 + $0x10] sm:$0xff]
          %v829 = vld [vmem:[#allocation13 + $0x18] sm:$0xff]
          %v830 = vld [vmem:[#allocation15] sm:$0x1]
          %v832 = vlaneseq
          %v833 = vshrl.u32 %v832, 7
          %v834 = vsub.s32 0, %v833
          %v835 = vrot.slane %v830, %v834
          %v838 = vsel %vm797, %v825, 0
          %840 = vmatprep.subr.mxu0 0.0
          %841 = vmatpush1.msra.mxu0 %v826
          %842 = vmatprep.subr.mxu0 0.0
          %843 = vmatpush1.msra.mxu0 %v827
          %844 = vmatprep.subr.mxu0 0.0
          %845 = vmatpush1.msra.mxu0 %v828
          %846 = vmatprep.subr.mxu0 0.0
          %847 = vmatpush1.msra.mxu0 %v829
          %848 = vmatprep.subr.mxu0 0.0
          %849 = vmatpush1.msra.mxu0 0.0
          %850 = vmatprep.subr.mxu0 0.0
          %851 = vmatpush1.msra.mxu0 0.0
          %852 = vmatprep.subr.mxu0 0.0
          %853 = vmatpush1.msra.mxu0 0.0
          %854 = vmatprep.subr.mxu0 0.0
          %855 = vmatpush1.msra.mxu0 0.0
          %856 = vmatprep.subr.mxu0 0.0
          %857 = vmatpush1.msra.mxu0 0.0
          %858 = vmatprep.subr.mxu0 0.0
          %859 = vmatpush1.msra.mxu0 0.0
          %860 = vmatprep.subr.mxu0 0.0
          %861 = vmatpush1.msra.mxu0 0.0
          %862 = vmatprep.subr.mxu0 0.0
          %863 = vmatpush1.msra.mxu0 0.0
          %864 = vmatprep.subr.mxu0 0.0
          %865 = vmatpush1.msra.mxu0 0.0
          %866 = vmatprep.subr.mxu0 0.0
          %867 = vmatpush1.msra.mxu0 0.0
          %868 = vmatprep.subr.mxu0 0.0
          %869 = vmatpush1.msra.mxu0 0.0
          %870 = vmatprep.subr.mxu0 0.0
          %871 = vmatpush1.msra.mxu0 0.0
          %872 = vmatprep.subr.mxu0 0.0
          %873 = vmatpush1.msra.mxu0 0.0
          %874 = vmatprep.subr.mxu0 0.0
          %875 = vmatpush1.msra.mxu0 0.0
          %876 = vmatprep.subr.mxu0 0.0
          %877 = vmatpush1.msra.mxu0 0.0
          %878 = vmatprep.subr.mxu0 0.0
          %879 = vmatpush1.msra.mxu0 0.0
          %880 = vmatprep.subr.mxu0 0.0
          %881 = vmatpush1.msra.mxu0 0.0
          %882 = vmatprep.subr.mxu0 0.0
          %883 = vmatpush1.msra.mxu0 0.0
          %884 = vmatprep.subr.mxu0 0.0
          %885 = vmatpush1.msra.mxu0 0.0
          %886 = vmatprep.subr.mxu0 0.0
          %887 = vmatpush1.msra.mxu0 0.0
          %888 = vmatprep.subr.mxu0 0.0
          %889 = vmatpush1.msra.mxu0 0.0
          %890 = vmatprep.subr.mxu0 0.0
          %891 = vmatpush1.msra.mxu0 0.0
          %892 = vmatprep.subr.mxu0 0.0
          %893 = vmatpush1.msra.mxu0 0.0
          %894 = vmatprep.subr.mxu0 0.0
          %895 = vmatpush1.msra.mxu0 0.0
          %896 = vmatprep.subr.mxu0 0.0
          %897 = vmatpush1.msra.mxu0 0.0
          %898 = vmatprep.subr.mxu0 0.0
          %899 = vmatpush1.msra.mxu0 0.0
          %900 = vmatprep.subr.mxu0 0.0
          %901 = vmatpush1.msra.mxu0 0.0
          %902 = vmatprep.subr.mxu0 0.0
          %903 = vmatpush1.msra.mxu0 0.0
          %904 = vmatprep.mubr.f32.mxu0 0.0
          %905 = vmatmul.mubr.f32.gmra.mrb[0].mxu0 %v838
          %v906 = vpop.f32.mrb[0].mxu0
          %v907 = vadd.f32 %v835, %v906
          %v908 = vpop.f32.mrb[0].mxu0
          %909 = vdwg.mxu0
          %v910 = vld [vmem:[#allocation16] sm:$0xff]
          %v911 = vld [vmem:[#allocation16 + $0x8] sm:$0xff]
          %v912 = vld [vmem:[#allocation16 + $0x10] sm:$0xff]
          %v913 = vld [vmem:[#allocation16 + $0x18] sm:$0xff]
          %v914 = vld [vmem:[#allocation18] sm:$0x1]
          %v916 = vlaneseq
          %v917 = vshrl.u32 %v916, 7
          %v918 = vsub.s32 0, %v917
          %v919 = vrot.slane %v914, %v918
          %921 = vmatprep.subr.mxu0 0.0
          %922 = vmatpush1.msra.mxu0 %v910
          %923 = vmatprep.subr.mxu0 0.0
          %924 = vmatpush1.msra.mxu0 %v911
          %925 = vmatprep.subr.mxu0 0.0
          %926 = vmatpush1.msra.mxu0 %v912
          %927 = vmatprep.subr.mxu0 0.0
          %928 = vmatpush1.msra.mxu0 %v913
          %929 = vmatprep.subr.mxu0 0.0
          %930 = vmatpush1.msra.mxu0 0.0
          %931 = vmatprep.subr.mxu0 0.0
          %932 = vmatpush1.msra.mxu0 0.0
          %933 = vmatprep.subr.mxu0 0.0
          %934 = vmatpush1.msra.mxu0 0.0
          %935 = vmatprep.subr.mxu0 0.0
          %936 = vmatpush1.msra.mxu0 0.0
          %937 = vmatprep.subr.mxu0 0.0
          %938 = vmatpush1.msra.mxu0 0.0
          %939 = vmatprep.subr.mxu0 0.0
          %940 = vmatpush1.msra.mxu0 0.0
          %941 = vmatprep.subr.mxu0 0.0
          %942 = vmatpush1.msra.mxu0 0.0
          %943 = vmatprep.subr.mxu0 0.0
          %944 = vmatpush1.msra.mxu0 0.0
          %945 = vmatprep.subr.mxu0 0.0
          %946 = vmatpush1.msra.mxu0 0.0
          %947 = vmatprep.subr.mxu0 0.0
          %948 = vmatpush1.msra.mxu0 0.0
          %949 = vmatprep.subr.mxu0 0.0
          %950 = vmatpush1.msra.mxu0 0.0
          %951 = vmatprep.subr.mxu0 0.0
          %952 = vmatpush1.msra.mxu0 0.0
          %953 = vmatprep.subr.mxu0 0.0
          %954 = vmatpush1.msra.mxu0 0.0
          %955 = vmatprep.subr.mxu0 0.0
          %956 = vmatpush1.msra.mxu0 0.0
          %957 = vmatprep.subr.mxu0 0.0
          %958 = vmatpush1.msra.mxu0 0.0
          %959 = vmatprep.subr.mxu0 0.0
          %960 = vmatpush1.msra.mxu0 0.0
          %961 = vmatprep.subr.mxu0 0.0
          %962 = vmatpush1.msra.mxu0 0.0
          %963 = vmatprep.subr.mxu0 0.0
          %964 = vmatpush1.msra.mxu0 0.0
          %965 = vmatprep.subr.mxu0 0.0
          %966 = vmatpush1.msra.mxu0 0.0
          %967 = vmatprep.subr.mxu0 0.0
          %968 = vmatpush1.msra.mxu0 0.0
          %969 = vmatprep.subr.mxu0 0.0
          %970 = vmatpush1.msra.mxu0 0.0
          %971 = vmatprep.subr.mxu0 0.0
          %972 = vmatpush1.msra.mxu0 0.0
          %973 = vmatprep.subr.mxu0 0.0
          %974 = vmatpush1.msra.mxu0 0.0
          %975 = vmatprep.subr.mxu0 0.0
          %976 = vmatpush1.msra.mxu0 0.0
          %977 = vmatprep.subr.mxu0 0.0
          %978 = vmatpush1.msra.mxu0 0.0
          %979 = vmatprep.subr.mxu0 0.0
          %980 = vmatpush1.msra.mxu0 0.0
          %981 = vmatprep.subr.mxu0 0.0
          %982 = vmatpush1.msra.mxu0 0.0
          %983 = vmatprep.subr.mxu0 0.0
          %984 = vmatpush1.msra.mxu0 0.0
          %985 = vmatprep.mubr.f32.mxu0 0.0
          %986 = vmatmul.mubr.f32.gmra.mrb[0].mxu0 %v838
          %v987 = vpop.f32.mrb[0].mxu0
          %v988 = vadd.f32 %v919, %v987
          %v989 = vpop.f32.mrb[0].mxu0
          %990 = vdwg.mxu0
          %992 = vrot.lane.b32.xlu0 %v907, 120
          %v993 = vpop.permute.xlu0 %992
          %995 = vrot.lane.b32.xlu0 %v907, 112
          %v996 = vpop.permute.xlu0 %995
          %998 = vrot.lane.b32.xlu0 %v907, 104
          %v999 = vpop.permute.xlu0 %998
          %v1001 = vcombine.low %v907, %v996
          %v1002 = vcombine.high %v907, %v996
          %v1004 = vunpack.c.l.s4 1983009808
          %v1005 = vunpack.c.0.s8 %v1004
          %v1006 = vlaneseq
          %v1007 = vshrl.u32 %v1006, 7
          %v1008 = vsub.s32 %v1005, %v1007
          %v1009 = vrot.slane %v1001, %v1008
          %v1011 = vunpack.c.l.s4 1983009808
          %v1012 = vunpack.c.0.s8 %v1011
          %v1013 = vlaneseq
          %v1014 = vshrl.u32 %v1013, 7
          %v1015 = vsub.s32 %v1012, %v1014
          %v1016 = vrot.slane %v1002, %v1015
          %v1017 = vcombine.low %v993, %v999
          %v1018 = vcombine.high %v993, %v999
          %v1020 = vunpack.c.l.s4 1983009808
          %v1021 = vunpack.c.0.s8 %v1020
          %v1022 = vlaneseq
          %v1023 = vshrl.u32 %v1022, 7
          %v1024 = vsub.s32 %v1021, %v1023
          %v1025 = vrot.slane %v1017, %v1024
          %v1027 = vunpack.c.l.s4 1983009808
          %v1028 = vunpack.c.0.s8 %v1027
          %v1029 = vlaneseq
          %v1030 = vshrl.u32 %v1029, 7
          %v1031 = vsub.s32 %v1028, %v1030
          %v1032 = vrot.slane %v1018, %v1031
          %v1033 = vcombine.low %v1009, %v1025
          %v1034 = vcombine.high %v1009, %v1025
          %v1036 = vunpack.c.l.s4 1934713408
          %v1037 = vunpack.c.0.s8 %v1036
          %v1038 = vlaneseq
          %v1039 = vshrl.u32 %v1038, 7
          %v1040 = vsub.s32 %v1037, %v1039
          %v1041 = vrot.slane %v1033, %v1040
          %v1043 = vunpack.c.l.s4 1934713408
          %v1044 = vunpack.c.0.s8 %v1043
          %v1045 = vlaneseq
          %v1046 = vshrl.u32 %v1045, 7
          %v1047 = vsub.s32 %v1044, %v1046
          %v1048 = vrot.slane %v1034, %v1047
          %v1049 = vcombine.low %v1016, %v1032
          %v1050 = vcombine.high %v1016, %v1032
          %v1052 = vunpack.c.l.s4 1934713408
          %v1053 = vunpack.c.0.s8 %v1052
          %v1054 = vlaneseq
          %v1055 = vshrl.u32 %v1054, 7
          %v1056 = vsub.s32 %v1053, %v1055
          %v1057 = vrot.slane %v1049, %v1056
          %v1059 = vunpack.c.l.s4 1934713408
          %v1060 = vunpack.c.0.s8 %v1059
          %v1061 = vlaneseq
          %v1062 = vshrl.u32 %v1061, 7
          %v1063 = vsub.s32 %v1060, %v1062
          %v1064 = vrot.slane %v1050, %v1063
          %v1065 = vcombine.high %v1041, 0.0
          %v1066 = vcombine.high %v1048, 0.0
          %v1067 = vcombine.high %v1057, 0.0
          %v1068 = vcombine.high %v1064, 0.0
          %v1069 = vcombine.low %v1041, %v1048
          %v1071 = vunpack.c.l.s4 1983009808
          %v1072 = vunpack.c.0.s8 %v1071
          %v1073 = vlaneseq
          %v1074 = vshrl.u32 %v1073, 7
          %v1075 = vsub.s32 %v1072, %v1074
          %v1076 = vrot.slane %v1069, %v1075
          %v1077 = vcombine.low %v1065, %v1066
          %v1079 = vunpack.c.l.s4 1983009808
          %v1080 = vunpack.c.0.s8 %v1079
          %v1081 = vlaneseq
          %v1082 = vshrl.u32 %v1081, 7
          %v1083 = vsub.s32 %v1080, %v1082
          %v1084 = vrot.slane %v1077, %v1083
          %v1085 = vcombine.low %v1057, %v1064
          %v1087 = vunpack.c.l.s4 1983009808
          %v1088 = vunpack.c.0.s8 %v1087
          %v1089 = vlaneseq
          %v1090 = vshrl.u32 %v1089, 7
          %v1091 = vsub.s32 %v1088, %v1090
          %v1092 = vrot.slane %v1085, %v1091
          %v1093 = vcombine.low %v1067, %v1068
          %v1095 = vunpack.c.l.s4 1983009808
          %v1096 = vunpack.c.0.s8 %v1095
          %v1097 = vlaneseq
          %v1098 = vshrl.u32 %v1097, 7
          %v1099 = vsub.s32 %v1096, %v1098
          %v1100 = vrot.slane %v1093, %v1099
          %v1101 = vcombine.low %v1076, %v1084
          %v1102 = vcombine.high %v1076, %v1084
          %v1104 = vunpack.c.l.s4 1934713408
          %v1105 = vunpack.c.0.s8 %v1104
          %v1106 = vlaneseq
          %v1107 = vshrl.u32 %v1106, 7
          %v1108 = vsub.s32 %v1105, %v1107
          %v1109 = vrot.slane %v1101, %v1108
          %v1111 = vunpack.c.l.s4 1934713408
          %v1112 = vunpack.c.0.s8 %v1111
          %v1113 = vlaneseq
          %v1114 = vshrl.u32 %v1113, 7
          %v1115 = vsub.s32 %v1112, %v1114
          %v1116 = vrot.slane %v1102, %v1115
          %v1117 = vcombine.low %v1092, %v1100
          %v1118 = vcombine.high %v1092, %v1100
          %v1120 = vunpack.c.l.s4 1934713408
          %v1121 = vunpack.c.0.s8 %v1120
          %v1122 = vlaneseq
          %v1123 = vshrl.u32 %v1122, 7
          %v1124 = vsub.s32 %v1121, %v1123
          %v1125 = vrot.slane %v1117, %v1124
          %v1127 = vunpack.c.l.s4 1934713408
          %v1128 = vunpack.c.0.s8 %v1127
          %v1129 = vlaneseq
          %v1130 = vshrl.u32 %v1129, 7
          %v1131 = vsub.s32 %v1128, %v1130
          %v1132 = vrot.slane %v1118, %v1131
          %v1133 = vcombine.low %v1109, %v1125
          %v1134 = vcombine.high %v1109, %v1125
          %v1135 = vcombine.low %v1116, %v1132
          %v1136 = vcombine.high %v1116, %v1132
          %vm1137 = vcmask 64512
          %1138 = vst.msk [vmem:[#allocation2] sm:$0xff] %vm1137, %v1133
          %1139 = vst.msk [vmem:[#allocation2 + $0x8] sm:$0xff] %vm1137, %v1134
          %1140 = vst.msk [vmem:[#allocation2 + $0x10] sm:$0xff] %vm1137, %v1135
          %1141 = vst.msk [vmem:[#allocation2 + $0x18] sm:$0xff] %vm1137, %v1136
          %1143 = vrot.lane.b32.xlu0 %v988, 120
          %v1144 = vpop.permute.xlu0 %1143
          %1146 = vrot.lane.b32.xlu0 %v988, 112
          %v1147 = vpop.permute.xlu0 %1146
          %1149 = vrot.lane.b32.xlu0 %v988, 104
          %v1150 = vpop.permute.xlu0 %1149
          %v1152 = vcombine.low %v988, %v1147
          %v1153 = vcombine.high %v988, %v1147
          %v1155 = vunpack.c.l.s4 1983009808
          %v1156 = vunpack.c.0.s8 %v1155
          %v1157 = vlaneseq
          %v1158 = vshrl.u32 %v1157, 7
          %v1159 = vsub.s32 %v1156, %v1158
          %v1160 = vrot.slane %v1152, %v1159
          %v1162 = vunpack.c.l.s4 1983009808
          %v1163 = vunpack.c.0.s8 %v1162
          %v1164 = vlaneseq
          %v1165 = vshrl.u32 %v1164, 7
          %v1166 = vsub.s32 %v1163, %v1165
          %v1167 = vrot.slane %v1153, %v1166
          %v1168 = vcombine.low %v1144, %v1150
          %v1169 = vcombine.high %v1144, %v1150
          %v1171 = vunpack.c.l.s4 1983009808
          %v1172 = vunpack.c.0.s8 %v1171
          %v1173 = vlaneseq
          %v1174 = vshrl.u32 %v1173, 7
          %v1175 = vsub.s32 %v1172, %v1174
          %v1176 = vrot.slane %v1168, %v1175
          %v1178 = vunpack.c.l.s4 1983009808
          %v1179 = vunpack.c.0.s8 %v1178
          %v1180 = vlaneseq
          %v1181 = vshrl.u32 %v1180, 7
          %v1182 = vsub.s32 %v1179, %v1181
          %v1183 = vrot.slane %v1169, %v1182
          %v1184 = vcombine.low %v1160, %v1176
          %v1185 = vcombine.high %v1160, %v1176
          %v1187 = vunpack.c.l.s4 1934713408
          %v1188 = vunpack.c.0.s8 %v1187
          %v1189 = vlaneseq
          %v1190 = vshrl.u32 %v1189, 7
          %v1191 = vsub.s32 %v1188, %v1190
          %v1192 = vrot.slane %v1184, %v1191
          %v1194 = vunpack.c.l.s4 1934713408
          %v1195 = vunpack.c.0.s8 %v1194
          %v1196 = vlaneseq
          %v1197 = vshrl.u32 %v1196, 7
          %v1198 = vsub.s32 %v1195, %v1197
          %v1199 = vrot.slane %v1185, %v1198
          %v1200 = vcombine.low %v1167, %v1183
          %v1201 = vcombine.high %v1167, %v1183
          %v1203 = vunpack.c.l.s4 1934713408
          %v1204 = vunpack.c.0.s8 %v1203
          %v1205 = vlaneseq
          %v1206 = vshrl.u32 %v1205, 7
          %v1207 = vsub.s32 %v1204, %v1206
          %v1208 = vrot.slane %v1200, %v1207
          %v1210 = vunpack.c.l.s4 1934713408
          %v1211 = vunpack.c.0.s8 %v1210
          %v1212 = vlaneseq
          %v1213 = vshrl.u32 %v1212, 7
          %v1214 = vsub.s32 %v1211, %v1213
          %v1215 = vrot.slane %v1201, %v1214
          %v1216 = vcombine.high %v1192, 0.0
          %v1217 = vcombine.high %v1199, 0.0
          %v1218 = vcombine.high %v1208, 0.0
          %v1219 = vcombine.high %v1215, 0.0
          %v1220 = vcombine.low %v1192, %v1199
          %v1222 = vunpack.c.l.s4 1983009808
          %v1223 = vunpack.c.0.s8 %v1222
          %v1224 = vlaneseq
          %v1225 = vshrl.u32 %v1224, 7
          %v1226 = vsub.s32 %v1223, %v1225
          %v1227 = vrot.slane %v1220, %v1226
          %v1228 = vcombine.low %v1216, %v1217
          %v1230 = vunpack.c.l.s4 1983009808
          %v1231 = vunpack.c.0.s8 %v1230
          %v1232 = vlaneseq
          %v1233 = vshrl.u32 %v1232, 7
          %v1234 = vsub.s32 %v1231, %v1233
          %v1235 = vrot.slane %v1228, %v1234
          %v1236 = vcombine.low %v1208, %v1215
          %v1238 = vunpack.c.l.s4 1983009808
          %v1239 = vunpack.c.0.s8 %v1238
          %v1240 = vlaneseq
          %v1241 = vshrl.u32 %v1240, 7
          %v1242 = vsub.s32 %v1239, %v1241
          %v1243 = vrot.slane %v1236, %v1242
          %v1244 = vcombine.low %v1218, %v1219
          %v1246 = vunpack.c.l.s4 1983009808
          %v1247 = vunpack.c.0.s8 %v1246
          %v1248 = vlaneseq
          %v1249 = vshrl.u32 %v1248, 7
          %v1250 = vsub.s32 %v1247, %v1249
          %v1251 = vrot.slane %v1244, %v1250
          %v1252 = vcombine.low %v1227, %v1235
          %v1253 = vcombine.high %v1227, %v1235
          %v1255 = vunpack.c.l.s4 1934713408
          %v1256 = vunpack.c.0.s8 %v1255
          %v1257 = vlaneseq
          %v1258 = vshrl.u32 %v1257, 7
          %v1259 = vsub.s32 %v1256, %v1258
          %v1260 = vrot.slane %v1252, %v1259
          %v1262 = vunpack.c.l.s4 1934713408
          %v1263 = vunpack.c.0.s8 %v1262
          %v1264 = vlaneseq
          %v1265 = vshrl.u32 %v1264, 7
          %v1266 = vsub.s32 %v1263, %v1265
          %v1267 = vrot.slane %v1253, %v1266
          %v1268 = vcombine.low %v1243, %v1251
          %v1269 = vcombine.high %v1243, %v1251
          %v1271 = vunpack.c.l.s4 1934713408
          %v1272 = vunpack.c.0.s8 %v1271
          %v1273 = vlaneseq
          %v1274 = vshrl.u32 %v1273, 7
          %v1275 = vsub.s32 %v1272, %v1274
          %v1276 = vrot.slane %v1268, %v1275
          %v1278 = vunpack.c.l.s4 1934713408
          %v1279 = vunpack.c.0.s8 %v1278
          %v1280 = vlaneseq
          %v1281 = vshrl.u32 %v1280, 7
          %v1282 = vsub.s32 %v1279, %v1281
          %v1283 = vrot.slane %v1269, %v1282
          %v1284 = vcombine.low %v1260, %v1276
          %v1285 = vcombine.high %v1260, %v1276
          %v1286 = vcombine.low %v1267, %v1283
          %v1287 = vcombine.high %v1267, %v1283
          %1288 = vst.msk [vmem:[#allocation3] sm:$0xff] %vm1137, %v1284
          %1289 = vst.msk [vmem:[#allocation3 + $0x8] sm:$0xff] %vm1137, %v1285
          %1290 = vst.msk [vmem:[#allocation3 + $0x10] sm:$0xff] %vm1137, %v1286
          %1291 = vst.msk [vmem:[#allocation3 + $0x18] sm:$0xff] %vm1137, %v1287
        $region160: #{tpu_custom_call.1} parent=87 // pred_fallthru
          _
        %s1292 = smul.u32 %s47, 8
        %s1293 = scalar_lea.vmem %s675, %s1292 [#allocation4]
        %v1294 = vld [vmem:[%s1293] sm:$0xff]
        %vm1295 = vcmask 261120
        %v1296 = vsel %vm1295, %v1294, 0.0
        %1297 = vadd.xlane.f32.xlu0 %v1296
        %v1298 = vpop.xlane.xlu0 %1297
        %v1299 = vrcp.pop 32.0
        %v1300 = vmul.f32 %v1298, %v1299
        %v1301 = vsub.f32 %v1294, %v1300
        %v1302 = vmul.f32 %v1301, %v1301
        %v1303 = vsel %vm1295, %v1302, 0.0
        %1304 = vadd.xlane.f32.xlu0 %v1303
        %v1305 = vpop.xlane.xlu0 %1304
        %v1306 = vmul.f32 %v1305, %v1299
        %v1307 = vadd.f32 %v1306, 1e-05
        %v1308 = vrsqrt.pop %v1307
        %v1309 = vmul.f32 %v1301, %v1308
        %v1311 = vlaneseq
        %v1312 = vshrl.u32 %v1311, 7
        %v1313 = vsub.s32 0, %v1312
        %v1314 = vrot.slane %v790, %v1313
        %v1316 = vmul.f32 %v1309, %v1314
        %v1318 = vlaneseq
        %v1319 = vshrl.u32 %v1318, 7
        %v1320 = vsub.s32 0, %v1319
        %v1321 = vrot.slane %v791, %v1320
        %v1323 = vadd.f32 %v1316, %v1321
        %v1324 = vld [vmem:[#allocation10] sm:$0xff]
        %v1325 = vld [vmem:[#allocation10 + $0x8] sm:$0xff]
        %v1326 = vld [vmem:[#allocation10 + $0x10] sm:$0xff]
        %v1327 = vld [vmem:[#allocation10 + $0x18] sm:$0xff]
        %v1328 = vld [vmem:[#allocation12] sm:$0x1]
        %v1330 = vlaneseq
        %v1331 = vshrl.u32 %v1330, 7
        %v1332 = vsub.s32 0, %v1331
        %v1333 = vrot.slane %v1328, %v1332
        %v1336 = vsel %vm1295, %v1323, 0
        %1338 = vmatprep.subr.mxu0 0.0
        %1339 = vmatpush1.msra.mxu0 %v1324
        %1340 = vmatprep.subr.mxu0 0.0
        %1341 = vmatpush1.msra.mxu0 %v1325
        %1342 = vmatprep.subr.mxu0 0.0
        %1343 = vmatpush1.msra.mxu0 %v1326
        %1344 = vmatprep.subr.mxu0 0.0
        %1345 = vmatpush1.msra.mxu0 %v1327
        %1346 = vmatprep.subr.mxu0 0.0
        %1347 = vmatpush1.msra.mxu0 0.0
        %1348 = vmatprep.subr.mxu0 0.0
        %1349 = vmatpush1.msra.mxu0 0.0
        %1350 = vmatprep.subr.mxu0 0.0
        %1351 = vmatpush1.msra.mxu0 0.0
        %1352 = vmatprep.subr.mxu0 0.0
        %1353 = vmatpush1.msra.mxu0 0.0
        %1354 = vmatprep.subr.mxu0 0.0
        %1355 = vmatpush1.msra.mxu0 0.0
        %1356 = vmatprep.subr.mxu0 0.0
        %1357 = vmatpush1.msra.mxu0 0.0
        %1358 = vmatprep.subr.mxu0 0.0
        %1359 = vmatpush1.msra.mxu0 0.0
        %1360 = vmatprep.subr.mxu0 0.0
        %1361 = vmatpush1.msra.mxu0 0.0
        %1362 = vmatprep.subr.mxu0 0.0
        %1363 = vmatpush1.msra.mxu0 0.0
        %1364 = vmatprep.subr.mxu0 0.0
        %1365 = vmatpush1.msra.mxu0 0.0
        %1366 = vmatprep.subr.mxu0 0.0
        %1367 = vmatpush1.msra.mxu0 0.0
        %1368 = vmatprep.subr.mxu0 0.0
        %1369 = vmatpush1.msra.mxu0 0.0
        %1370 = vmatprep.subr.mxu0 0.0
        %1371 = vmatpush1.msra.mxu0 0.0
        %1372 = vmatprep.subr.mxu0 0.0
        %1373 = vmatpush1.msra.mxu0 0.0
        %1374 = vmatprep.subr.mxu0 0.0
        %1375 = vmatpush1.msra.mxu0 0.0
        %1376 = vmatprep.subr.mxu0 0.0
        %1377 = vmatpush1.msra.mxu0 0.0
        %1378 = vmatprep.subr.mxu0 0.0
        %1379 = vmatpush1.msra.mxu0 0.0
        %1380 = vmatprep.subr.mxu0 0.0
        %1381 = vmatpush1.msra.mxu0 0.0
        %1382 = vmatprep.subr.mxu0 0.0
        %1383 = vmatpush1.msra.mxu0 0.0
        %1384 = vmatprep.subr.mxu0 0.0
        %1385 = vmatpush1.msra.mxu0 0.0
        %1386 = vmatprep.subr.mxu0 0.0
        %1387 = vmatpush1.msra.mxu0 0.0
        %1388 = vmatprep.subr.mxu0 0.0
        %1389 = vmatpush1.msra.mxu0 0.0
        %1390 = vmatprep.subr.mxu0 0.0
        %1391 = vmatpush1.msra.mxu0 0.0
        %1392 = vmatprep.subr.mxu0 0.0
        %1393 = vmatpush1.msra.mxu0 0.0
        %1394 = vmatprep.subr.mxu0 0.0
        %1395 = vmatpush1.msra.mxu0 0.0
        %1396 = vmatprep.subr.mxu0 0.0
        %1397 = vmatpush1.msra.mxu0 0.0
        %1398 = vmatprep.subr.mxu0 0.0
        %1399 = vmatpush1.msra.mxu0 0.0
        %1400 = vmatprep.subr.mxu0 0.0
        %1401 = vmatpush1.msra.mxu0 0.0
        %1402 = vmatprep.mubr.f32.mxu0 0.0
        %1403 = vmatmul.mubr.f32.gmra.mrb[0].mxu0 %v1336
        %v1404 = vpop.f32.mrb[0].mxu0
        %v1405 = vadd.f32 %v1333, %v1404
        %v1406 = vpop.f32.mrb[0].mxu0
        %1407 = vdwg.mxu0
        %1409 = vrot.lane.b32.xlu0 %v1405, 120
        %v1410 = vpop.permute.xlu0 %1409
        %1412 = vrot.lane.b32.xlu0 %v1405, 112
        %v1413 = vpop.permute.xlu0 %1412
        %1415 = vrot.lane.b32.xlu0 %v1405, 104
        %v1416 = vpop.permute.xlu0 %1415
        %v1418 = vcombine.low %v1405, %v1413
        %v1419 = vcombine.high %v1405, %v1413
        %v1421 = vunpack.c.l.s4 1983009808
        %v1422 = vunpack.c.0.s8 %v1421
        %v1423 = vlaneseq
        %v1424 = vshrl.u32 %v1423, 7
        %v1425 = vsub.s32 %v1422, %v1424
        %v1426 = vrot.slane %v1418, %v1425
        %v1428 = vunpack.c.l.s4 1983009808
        %v1429 = vunpack.c.0.s8 %v1428
        %v1430 = vlaneseq
        %v1431 = vshrl.u32 %v1430, 7
        %v1432 = vsub.s32 %v1429, %v1431
        %v1433 = vrot.slane %v1419, %v1432
        %v1434 = vcombine.low %v1410, %v1416
        %v1435 = vcombine.high %v1410, %v1416
        %v1437 = vunpack.c.l.s4 1983009808
        %v1438 = vunpack.c.0.s8 %v1437
        %v1439 = vlaneseq
        %v1440 = vshrl.u32 %v1439, 7
        %v1441 = vsub.s32 %v1438, %v1440
        %v1442 = vrot.slane %v1434, %v1441
        %v1444 = vunpack.c.l.s4 1983009808
        %v1445 = vunpack.c.0.s8 %v1444
        %v1446 = vlaneseq
        %v1447 = vshrl.u32 %v1446, 7
        %v1448 = vsub.s32 %v1445, %v1447
        %v1449 = vrot.slane %v1435, %v1448
        %v1450 = vcombine.low %v1426, %v1442
        %v1451 = vcombine.high %v1426, %v1442
        %v1453 = vunpack.c.l.s4 1934713408
        %v1454 = vunpack.c.0.s8 %v1453
        %v1455 = vlaneseq
        %v1456 = vshrl.u32 %v1455, 7
        %v1457 = vsub.s32 %v1454, %v1456
        %v1458 = vrot.slane %v1450, %v1457
        %v1460 = vunpack.c.l.s4 1934713408
        %v1461 = vunpack.c.0.s8 %v1460
        %v1462 = vlaneseq
        %v1463 = vshrl.u32 %v1462, 7
        %v1464 = vsub.s32 %v1461, %v1463
        %v1465 = vrot.slane %v1451, %v1464
        %v1466 = vcombine.low %v1433, %v1449
        %v1467 = vcombine.high %v1433, %v1449
        %v1469 = vunpack.c.l.s4 1934713408
        %v1470 = vunpack.c.0.s8 %v1469
        %v1471 = vlaneseq
        %v1472 = vshrl.u32 %v1471, 7
        %v1473 = vsub.s32 %v1470, %v1472
        %v1474 = vrot.slane %v1466, %v1473
        %v1476 = vunpack.c.l.s4 1934713408
        %v1477 = vunpack.c.0.s8 %v1476
        %v1478 = vlaneseq
        %v1479 = vshrl.u32 %v1478, 7
        %v1480 = vsub.s32 %v1477, %v1479
        %v1481 = vrot.slane %v1467, %v1480
        %v1482 = vcombine.high %v1458, 0.0
        %v1483 = vcombine.high %v1465, 0.0
        %v1484 = vcombine.high %v1474, 0.0
        %v1485 = vcombine.high %v1481, 0.0
        %v1486 = vcombine.low %v1458, %v1465
        %v1488 = vunpack.c.l.s4 1983009808
        %v1489 = vunpack.c.0.s8 %v1488
        %v1490 = vlaneseq
        %v1491 = vshrl.u32 %v1490, 7
        %v1492 = vsub.s32 %v1489, %v1491
        %v1493 = vrot.slane %v1486, %v1492
        %v1494 = vcombine.low %v1482, %v1483
        %v1496 = vunpack.c.l.s4 1983009808
        %v1497 = vunpack.c.0.s8 %v1496
        %v1498 = vlaneseq
        %v1499 = vshrl.u32 %v1498, 7
        %v1500 = vsub.s32 %v1497, %v1499
        %v1501 = vrot.slane %v1494, %v1500
        %v1502 = vcombine.low %v1474, %v1481
        %v1504 = vunpack.c.l.s4 1983009808
        %v1505 = vunpack.c.0.s8 %v1504
        %v1506 = vlaneseq
        %v1507 = vshrl.u32 %v1506, 7
        %v1508 = vsub.s32 %v1505, %v1507
        %v1509 = vrot.slane %v1502, %v1508
        %v1510 = vcombine.low %v1484, %v1485
        %v1512 = vunpack.c.l.s4 1983009808
        %v1513 = vunpack.c.0.s8 %v1512
        %v1514 = vlaneseq
        %v1515 = vshrl.u32 %v1514, 7
        %v1516 = vsub.s32 %v1513, %v1515
        %v1517 = vrot.slane %v1510, %v1516
        %v1518 = vcombine.low %v1493, %v1501
        %v1519 = vcombine.high %v1493, %v1501
        %v1521 = vunpack.c.l.s4 1934713408
        %v1522 = vunpack.c.0.s8 %v1521
        %v1523 = vlaneseq
        %v1524 = vshrl.u32 %v1523, 7
        %v1525 = vsub.s32 %v1522, %v1524
        %v1526 = vrot.slane %v1518, %v1525
        %v1528 = vunpack.c.l.s4 1934713408
        %v1529 = vunpack.c.0.s8 %v1528
        %v1530 = vlaneseq
        %v1531 = vshrl.u32 %v1530, 7
        %v1532 = vsub.s32 %v1529, %v1531
        %v1533 = vrot.slane %v1519, %v1532
        %v1534 = vcombine.low %v1509, %v1517
        %v1535 = vcombine.high %v1509, %v1517
        %v1537 = vunpack.c.l.s4 1934713408
        %v1538 = vunpack.c.0.s8 %v1537
        %v1539 = vlaneseq
        %v1540 = vshrl.u32 %v1539, 7
        %v1541 = vsub.s32 %v1538, %v1540
        %v1542 = vrot.slane %v1534, %v1541
        %v1544 = vunpack.c.l.s4 1934713408
        %v1545 = vunpack.c.0.s8 %v1544
        %v1546 = vlaneseq
        %v1547 = vshrl.u32 %v1546, 7
        %v1548 = vsub.s32 %v1545, %v1547
        %v1549 = vrot.slane %v1535, %v1548
        %v1550 = vcombine.low %v1526, %v1542
        %v1551 = vcombine.high %v1526, %v1542
        %v1552 = vcombine.low %v1533, %v1549
        %v1553 = vcombine.high %v1533, %v1549
        %v1554 = vld [vmem:[#allocation2] sm:$0xff]
        %v1555 = vld [vmem:[#allocation2 + $0x8] sm:$0xff]
        %v1556 = vld [vmem:[#allocation2 + $0x10] sm:$0xff]
        %v1557 = vld [vmem:[#allocation2 + $0x18] sm:$0xff]
        %v1558 = vld [vmem:[#allocation3] sm:$0xff]
        %v1559 = vld [vmem:[#allocation3 + $0x8] sm:$0xff]
        %v1560 = vld [vmem:[#allocation3 + $0x10] sm:$0xff]
        %v1561 = vld [vmem:[#allocation3 + $0x18] sm:$0xff]
        %vm1562 = vcmask 64512
        %v1564 = vsel %vm1562, %v1550, 0
        %v1567 = vsel %vm1562, %v1554, 0
        %1569 = vmatprep.subr.mxu0 0.0
        %1570 = vmatpush1.xpose.msra.mxu0 %v1567
        %1571 = vmatprep.subr.mxu0 0.0
        %1572 = vmatpush1.xpose.msra.mxu0 0.0
        %1573 = vmatprep.subr.mxu0 0.0
        %1574 = vmatpush1.xpose.msra.mxu0 0.0
        %1575 = vmatprep.subr.mxu0 0.0
        %1576 = vmatpush1.xpose.msra.mxu0 0.0
        %1577 = vmatprep.subr.mxu0 0.0
        %1578 = vmatpush1.xpose.msra.mxu0 0.0
        %1579 = vmatprep.subr.mxu0 0.0
        %1580 = vmatpush1.xpose.msra.mxu0 0.0
        %1581 = vmatprep.subr.mxu0 0.0
        %1582 = vmatpush1.xpose.msra.mxu0 0.0
        %1583 = vmatprep.subr.mxu0 0.0
        %1584 = vmatpush1.xpose.msra.mxu0 0.0
        %1585 = vmatprep.subr.mxu0 0.0
        %1586 = vmatpush1.xpose.msra.mxu0 0.0
        %1587 = vmatprep.subr.mxu0 0.0
        %1588 = vmatpush1.xpose.msra.mxu0 0.0
        %1589 = vmatprep.subr.mxu0 0.0
        %1590 = vmatpush1.xpose.msra.mxu0 0.0
        %1591 = vmatprep.subr.mxu0 0.0
        %1592 = vmatpush1.xpose.msra.mxu0 0.0
        %1593 = vmatprep.subr.mxu0 0.0
        %1594 = vmatpush1.xpose.msra.mxu0 0.0
        %1595 = vmatprep.subr.mxu0 0.0
        %1596 = vmatpush1.xpose.msra.mxu0 0.0
        %1597 = vmatprep.subr.mxu0 0.0
        %1598 = vmatpush1.xpose.msra.mxu0 0.0
        %1599 = vmatprep.subr.mxu0 0.0
        %1600 = vmatpush1.xpose.msra.mxu0 0.0
        %1601 = vmatprep.subr.mxu0 0.0
        %1602 = vmatpush1.xpose.msra.mxu0 0.0
        %1603 = vmatprep.subr.mxu0 0.0
        %1604 = vmatpush1.xpose.msra.mxu0 0.0
        %1605 = vmatprep.subr.mxu0 0.0
        %1606 = vmatpush1.xpose.msra.mxu0 0.0
        %1607 = vmatprep.subr.mxu0 0.0
        %1608 = vmatpush1.xpose.msra.mxu0 0.0
        %1609 = vmatprep.subr.mxu0 0.0
        %1610 = vmatpush1.xpose.msra.mxu0 0.0
        %1611 = vmatprep.subr.mxu0 0.0
        %1612 = vmatpush1.xpose.msra.mxu0 0.0
        %1613 = vmatprep.subr.mxu0 0.0
        %1614 = vmatpush1.xpose.msra.mxu0 0.0
        %1615 = vmatprep.subr.mxu0 0.0
        %1616 = vmatpush1.xpose.msra.mxu0 0.0
        %1617 = vmatprep.subr.mxu0 0.0
        %1618 = vmatpush1.xpose.msra.mxu0 0.0
        %1619 = vmatprep.subr.mxu0 0.0
        %1620 = vmatpush1.xpose.msra.mxu0 0.0
        %1621 = vmatprep.subr.mxu0 0.0
        %1622 = vmatpush1.xpose.msra.mxu0 0.0
        %1623 = vmatprep.subr.mxu0 0.0
        %1624 = vmatpush1.xpose.msra.mxu0 0.0
        %1625 = vmatprep.subr.mxu0 0.0
        %1626 = vmatpush1.xpose.msra.mxu0 0.0
        %1627 = vmatprep.subr.mxu0 0.0
        %1628 = vmatpush1.xpose.msra.mxu0 0.0
        %1629 = vmatprep.subr.mxu0 0.0
        %1630 = vmatpush1.xpose.msra.mxu0 0.0
        %1631 = vmatprep.subr.mxu0 0.0
        %1632 = vmatpush1.xpose.msra.mxu0 0.0
        %1633 = vmatprep.mubr.f32.mxu0 0.0
        %1634 = vmatmul.mubr.f32.gmra.mrb[0].mxu0 %v1564
        %v1635 = vpop.f32.mrb[0].mxu0
        %v1636 = vadd.f32 0.0, %v1635
        %v1637 = vpop.f32.mrb[0].mxu0
        %1638 = vdwg.mxu0
        %v1640 = vsel %vm1562, %v1551, 0
        %v1643 = vsel %vm1562, %v1555, 0
        %1645 = vmatprep.subr.mxu0 0.0
        %1646 = vmatpush1.xpose.msra.mxu0 %v1643
        %1647 = vmatprep.subr.mxu0 0.0
        %1648 = vmatpush1.xpose.msra.mxu0 0.0
        %1649 = vmatprep.subr.mxu0 0.0
        %1650 = vmatpush1.xpose.msra.mxu0 0.0
        %1651 = vmatprep.subr.mxu0 0.0
        %1652 = vmatpush1.xpose.msra.mxu0 0.0
        %1653 = vmatprep.subr.mxu0 0.0
        %1654 = vmatpush1.xpose.msra.mxu0 0.0
        %1655 = vmatprep.subr.mxu0 0.0
        %1656 = vmatpush1.xpose.msra.mxu0 0.0
        %1657 = vmatprep.subr.mxu0 0.0
        %1658 = vmatpush1.xpose.msra.mxu0 0.0
        %1659 = vmatprep.subr.mxu0 0.0
        %1660 = vmatpush1.xpose.msra.mxu0 0.0
        %1661 = vmatprep.subr.mxu0 0.0
        %1662 = vmatpush1.xpose.msra.mxu0 0.0
        %1663 = vmatprep.subr.mxu0 0.0
        %1664 = vmatpush1.xpose.msra.mxu0 0.0
        %1665 = vmatprep.subr.mxu0 0.0
        %1666 = vmatpush1.xpose.msra.mxu0 0.0
        %1667 = vmatprep.subr.mxu0 0.0
        %1668 = vmatpush1.xpose.msra.mxu0 0.0
        %1669 = vmatprep.subr.mxu0 0.0
        %1670 = vmatpush1.xpose.msra.mxu0 0.0
        %1671 = vmatprep.subr.mxu0 0.0
        %1672 = vmatpush1.xpose.msra.mxu0 0.0
        %1673 = vmatprep.subr.mxu0 0.0
        %1674 = vmatpush1.xpose.msra.mxu0 0.0
        %1675 = vmatprep.subr.mxu0 0.0
        %1676 = vmatpush1.xpose.msra.mxu0 0.0
        %1677 = vmatprep.subr.mxu0 0.0
        %1678 = vmatpush1.xpose.msra.mxu0 0.0
        %1679 = vmatprep.subr.mxu0 0.0
        %1680 = vmatpush1.xpose.msra.mxu0 0.0
        %1681 = vmatprep.subr.mxu0 0.0
        %1682 = vmatpush1.xpose.msra.mxu0 0.0
        %1683 = vmatprep.subr.mxu0 0.0
        %1684 = vmatpush1.xpose.msra.mxu0 0.0
        %1685 = vmatprep.subr.mxu0 0.0
        %1686 = vmatpush1.xpose.msra.mxu0 0.0
        %1687 = vmatprep.subr.mxu0 0.0
        %1688 = vmatpush1.xpose.msra.mxu0 0.0
        %1689 = vmatprep.subr.mxu0 0.0
        %1690 = vmatpush1.xpose.msra.mxu0 0.0
        %1691 = vmatprep.subr.mxu0 0.0
        %1692 = vmatpush1.xpose.msra.mxu0 0.0
        %1693 = vmatprep.subr.mxu0 0.0
        %1694 = vmatpush1.xpose.msra.mxu0 0.0
        %1695 = vmatprep.subr.mxu0 0.0
        %1696 = vmatpush1.xpose.msra.mxu0 0.0
        %1697 = vmatprep.subr.mxu0 0.0
        %1698 = vmatpush1.xpose.msra.mxu0 0.0
        %1699 = vmatprep.subr.mxu0 0.0
        %1700 = vmatpush1.xpose.msra.mxu0 0.0
        %1701 = vmatprep.subr.mxu0 0.0
        %1702 = vmatpush1.xpose.msra.mxu0 0.0
        %1703 = vmatprep.subr.mxu0 0.0
        %1704 = vmatpush1.xpose.msra.mxu0 0.0
        %1705 = vmatprep.subr.mxu0 0.0
        %1706 = vmatpush1.xpose.msra.mxu0 0.0
        %1707 = vmatprep.subr.mxu0 0.0
        %1708 = vmatpush1.xpose.msra.mxu0 0.0
        %1709 = vmatprep.mubr.f32.mxu0 0.0
        %1710 = vmatmul.mubr.f32.gmra.mrb[0].mxu0 %v1640
        %v1711 = vpop.f32.mrb[0].mxu0
        %v1712 = vadd.f32 0.0, %v1711
        %v1713 = vpop.f32.mrb[0].mxu0
        %1714 = vdwg.mxu0
        %v1716 = vsel %vm1562, %v1552, 0
        %v1719 = vsel %vm1562, %v1556, 0
        %1721 = vmatprep.subr.mxu0 0.0
        %1722 = vmatpush1.xpose.msra.mxu0 %v1719
        %1723 = vmatprep.subr.mxu0 0.0
        %1724 = vmatpush1.xpose.msra.mxu0 0.0
        %1725 = vmatprep.subr.mxu0 0.0
        %1726 = vmatpush1.xpose.msra.mxu0 0.0
        %1727 = vmatprep.subr.mxu0 0.0
        %1728 = vmatpush1.xpose.msra.mxu0 0.0
        %1729 = vmatprep.subr.mxu0 0.0
        %1730 = vmatpush1.xpose.msra.mxu0 0.0
        %1731 = vmatprep.subr.mxu0 0.0
        %1732 = vmatpush1.xpose.msra.mxu0 0.0
        %1733 = vmatprep.subr.mxu0 0.0
        %1734 = vmatpush1.xpose.msra.mxu0 0.0
        %1735 = vmatprep.subr.mxu0 0.0
        %1736 = vmatpush1.xpose.msra.mxu0 0.0
        %1737 = vmatprep.subr.mxu0 0.0
        %1738 = vmatpush1.xpose.msra.mxu0 0.0
        %1739 = vmatprep.subr.mxu0 0.0
        %1740 = vmatpush1.xpose.msra.mxu0 0.0
        %1741 = vmatprep.subr.mxu0 0.0
        %1742 = vmatpush1.xpose.msra.mxu0 0.0
        %1743 = vmatprep.subr.mxu0 0.0
        %1744 = vmatpush1.xpose.msra.mxu0 0.0
        %1745 = vmatprep.subr.mxu0 0.0
        %1746 = vmatpush1.xpose.msra.mxu0 0.0
        %1747 = vmatprep.subr.mxu0 0.0
        %1748 = vmatpush1.xpose.msra.mxu0 0.0
        %1749 = vmatprep.subr.mxu0 0.0
        %1750 = vmatpush1.xpose.msra.mxu0 0.0
        %1751 = vmatprep.subr.mxu0 0.0
        %1752 = vmatpush1.xpose.msra.mxu0 0.0
        %1753 = vmatprep.subr.mxu0 0.0
        %1754 = vmatpush1.xpose.msra.mxu0 0.0
        %1755 = vmatprep.subr.mxu0 0.0
        %1756 = vmatpush1.xpose.msra.mxu0 0.0
        %1757 = vmatprep.subr.mxu0 0.0
        %1758 = vmatpush1.xpose.msra.mxu0 0.0
        %1759 = vmatprep.subr.mxu0 0.0
        %1760 = vmatpush1.xpose.msra.mxu0 0.0
        %1761 = vmatprep.subr.mxu0 0.0
        %1762 = vmatpush1.xpose.msra.mxu0 0.0
        %1763 = vmatprep.subr.mxu0 0.0
        %1764 = vmatpush1.xpose.msra.mxu0 0.0
        %1765 = vmatprep.subr.mxu0 0.0
        %1766 = vmatpush1.xpose.msra.mxu0 0.0
        %1767 = vmatprep.subr.mxu0 0.0
        %1768 = vmatpush1.xpose.msra.mxu0 0.0
        %1769 = vmatprep.subr.mxu0 0.0
        %1770 = vmatpush1.xpose.msra.mxu0 0.0
        %1771 = vmatprep.subr.mxu0 0.0
        %1772 = vmatpush1.xpose.msra.mxu0 0.0
        %1773 = vmatprep.subr.mxu0 0.0
        %1774 = vmatpush1.xpose.msra.mxu0 0.0
        %1775 = vmatprep.subr.mxu0 0.0
        %1776 = vmatpush1.xpose.msra.mxu0 0.0
        %1777 = vmatprep.subr.mxu0 0.0
        %1778 = vmatpush1.xpose.msra.mxu0 0.0
        %1779 = vmatprep.subr.mxu0 0.0
        %1780 = vmatpush1.xpose.msra.mxu0 0.0
        %1781 = vmatprep.subr.mxu0 0.0
        %1782 = vmatpush1.xpose.msra.mxu0 0.0
        %1783 = vmatprep.subr.mxu0 0.0
        %1784 = vmatpush1.xpose.msra.mxu0 0.0
        %1785 = vmatprep.mubr.f32.mxu0 0.0
        %1786 = vmatmul.mubr.f32.gmra.mrb[0].mxu0 %v1716
        %v1787 = vpop.f32.mrb[0].mxu0
        %v1788 = vadd.f32 0.0, %v1787
        %v1789 = vpop.f32.mrb[0].mxu0
        %1790 = vdwg.mxu0
        %v1792 = vsel %vm1562, %v1553, 0
        %v1795 = vsel %vm1562, %v1557, 0
        %1797 = vmatprep.subr.mxu0 0.0
        %1798 = vmatpush1.xpose.msra.mxu0 %v1795
        %1799 = vmatprep.subr.mxu0 0.0
        %1800 = vmatpush1.xpose.msra.mxu0 0.0
        %1801 = vmatprep.subr.mxu0 0.0
        %1802 = vmatpush1.xpose.msra.mxu0 0.0
        %1803 = vmatprep.subr.mxu0 0.0
        %1804 = vmatpush1.xpose.msra.mxu0 0.0
        %1805 = vmatprep.subr.mxu0 0.0
        %1806 = vmatpush1.xpose.msra.mxu0 0.0
        %1807 = vmatprep.subr.mxu0 0.0
        %1808 = vmatpush1.xpose.msra.mxu0 0.0
        %1809 = vmatprep.subr.mxu0 0.0
        %1810 = vmatpush1.xpose.msra.mxu0 0.0
        %1811 = vmatprep.subr.mxu0 0.0
        %1812 = vmatpush1.xpose.msra.mxu0 0.0
        %1813 = vmatprep.subr.mxu0 0.0
        %1814 = vmatpush1.xpose.msra.mxu0 0.0
        %1815 = vmatprep.subr.mxu0 0.0
        %1816 = vmatpush1.xpose.msra.mxu0 0.0
        %1817 = vmatprep.subr.mxu0 0.0
        %1818 = vmatpush1.xpose.msra.mxu0 0.0
        %1819 = vmatprep.subr.mxu0 0.0
        %1820 = vmatpush1.xpose.msra.mxu0 0.0
        %1821 = vmatprep.subr.mxu0 0.0
        %1822 = vmatpush1.xpose.msra.mxu0 0.0
        %1823 = vmatprep.subr.mxu0 0.0
        %1824 = vmatpush1.xpose.msra.mxu0 0.0
        %1825 = vmatprep.subr.mxu0 0.0
        %1826 = vmatpush1.xpose.msra.mxu0 0.0
        %1827 = vmatprep.subr.mxu0 0.0
        %1828 = vmatpush1.xpose.msra.mxu0 0.0
        %1829 = vmatprep.subr.mxu0 0.0
        %1830 = vmatpush1.xpose.msra.mxu0 0.0
        %1831 = vmatprep.subr.mxu0 0.0
        %1832 = vmatpush1.xpose.msra.mxu0 0.0
        %1833 = vmatprep.subr.mxu0 0.0
        %1834 = vmatpush1.xpose.msra.mxu0 0.0
        %1835 = vmatprep.subr.mxu0 0.0
        %1836 = vmatpush1.xpose.msra.mxu0 0.0
        %1837 = vmatprep.subr.mxu0 0.0
        %1838 = vmatpush1.xpose.msra.mxu0 0.0
        %1839 = vmatprep.subr.mxu0 0.0
        %1840 = vmatpush1.xpose.msra.mxu0 0.0
        %1841 = vmatprep.subr.mxu0 0.0
        %1842 = vmatpush1.xpose.msra.mxu0 0.0
        %1843 = vmatprep.subr.mxu0 0.0
        %1844 = vmatpush1.xpose.msra.mxu0 0.0
        %1845 = vmatprep.subr.mxu0 0.0
        %1846 = vmatpush1.xpose.msra.mxu0 0.0
        %1847 = vmatprep.subr.mxu0 0.0
        %1848 = vmatpush1.xpose.msra.mxu0 0.0
        %1849 = vmatprep.subr.mxu0 0.0
        %1850 = vmatpush1.xpose.msra.mxu0 0.0
        %1851 = vmatprep.subr.mxu0 0.0
        %1852 = vmatpush1.xpose.msra.mxu0 0.0
        %1853 = vmatprep.subr.mxu0 0.0
        %1854 = vmatpush1.xpose.msra.mxu0 0.0
        %1855 = vmatprep.subr.mxu0 0.0
        %1856 = vmatpush1.xpose.msra.mxu0 0.0
        %1857 = vmatprep.subr.mxu0 0.0
        %1858 = vmatpush1.xpose.msra.mxu0 0.0
        %1859 = vmatprep.subr.mxu0 0.0
        %1860 = vmatpush1.xpose.msra.mxu0 0.0
        %1861 = vmatprep.mubr.f32.mxu0 0.0
        %1862 = vmatmul.mubr.f32.gmra.mrb[0].mxu0 %v1792
        %v1863 = vpop.f32.mrb[0].mxu0
        %v1864 = vadd.f32 0.0, %v1863
        %v1865 = vpop.f32.mrb[0].mxu0
        %1866 = vdwg.mxu0
        %v1867 = vsel %vm1562, %v1636, -inf
        %1868 = vmax.xlane.f32.xlu0 %v1867
        %v1869 = vpop.xlane.xlu0 %1868
        %v1870 = vsel %vm1562, %v1712, -inf
        %1871 = vmax.xlane.f32.xlu0 %v1870
        %v1872 = vpop.xlane.xlu0 %1871
        %v1873 = vsel %vm1562, %v1788, -inf
        %1874 = vmax.xlane.f32.xlu0 %v1873
        %v1875 = vpop.xlane.xlu0 %1874
        %v1876 = vsel %vm1562, %v1864, -inf
        %1877 = vmax.xlane.f32.xlu0 %v1876
        %v1878 = vpop.xlane.xlu0 %1877
        %v1879 = vsub.f32 -inf, %v1869
        %v1880 = vsub.f32 -inf, %v1872
        %v1881 = vsub.f32 -inf, %v1875
        %v1882 = vsub.f32 -inf, %v1878
        %v1883 = vmul.f32 %v1879, 1.442695
        %v1884 = vpow.pop %v1883
        %v1885 = vmul.f32 %v1880, 1.442695
        %v1886 = vpow.pop %v1885
        %v1887 = vmul.f32 %v1881, 1.442695
        %v1888 = vpow.pop %v1887
        %v1889 = vmul.f32 %v1882, 1.442695
        %v1890 = vpow.pop %v1889
        %v1891 = vsub.f32 %v1636, %v1869
        %v1892 = vsub.f32 %v1712, %v1872
        %v1893 = vsub.f32 %v1788, %v1875
        %v1894 = vsub.f32 %v1864, %v1878
        %v1895 = vmul.f32 %v1891, 1.442695
        %v1896 = vpow.pop %v1895
        %v1897 = vmul.f32 %v1892, 1.442695
        %v1898 = vpow.pop %v1897
        %v1899 = vmul.f32 %v1893, 1.442695
        %v1900 = vpow.pop %v1899
        %v1901 = vmul.f32 %v1894, 1.442695
        %v1902 = vpow.pop %v1901
        %v1903 = vmul.f32 %v1884, 0.0
        %v1904 = vmul.f32 %v1886, 0.0
        %v1905 = vmul.f32 %v1888, 0.0
        %v1906 = vmul.f32 %v1890, 0.0
        %v1907 = vsel %vm1562, %v1896, 0.0
        %1908 = vadd.xlane.f32.xlu0 %v1907
        %v1909 = vpop.xlane.xlu0 %1908
        %v1910 = vsel %vm1562, %v1898, 0.0
        %1911 = vadd.xlane.f32.xlu0 %v1910
        %v1912 = vpop.xlane.xlu0 %1911
        %v1913 = vsel %vm1562, %v1900, 0.0
        %1914 = vadd.xlane.f32.xlu0 %v1913
        %v1915 = vpop.xlane.xlu0 %1914
        %v1916 = vsel %vm1562, %v1902, 0.0
        %1917 = vadd.xlane.f32.xlu0 %v1916
        %v1918 = vpop.xlane.xlu0 %1917
        %v1919 = vadd.f32 %v1903, %v1909
        %v1920 = vadd.f32 %v1904, %v1912
        %v1921 = vadd.f32 %v1905, %v1915
        %v1922 = vadd.f32 %v1906, %v1918
        %v1924 = vsel %vm1562, %v1896, 0
        %1926 = vmatprep.subr.mxu0 0.0
        %1927 = vmatpush1.msra.mxu0 %v1558
        %1928 = vmatprep.subr.mxu0 0.0
        %1929 = vmatpush1.msra.mxu0 0.0
        %1930 = vmatprep.subr.mxu0 0.0
        %1931 = vmatpush1.msra.mxu0 0.0
        %1932 = vmatprep.subr.mxu0 0.0
        %1933 = vmatpush1.msra.mxu0 0.0
        %1934 = vmatprep.subr.mxu0 0.0
        %1935 = vmatpush1.msra.mxu0 0.0
        %1936 = vmatprep.subr.mxu0 0.0
        %1937 = vmatpush1.msra.mxu0 0.0
        %1938 = vmatprep.subr.mxu0 0.0
        %1939 = vmatpush1.msra.mxu0 0.0
        %1940 = vmatprep.subr.mxu0 0.0
        %1941 = vmatpush1.msra.mxu0 0.0
        %1942 = vmatprep.subr.mxu0 0.0
        %1943 = vmatpush1.msra.mxu0 0.0
        %1944 = vmatprep.subr.mxu0 0.0
        %1945 = vmatpush1.msra.mxu0 0.0
        %1946 = vmatprep.subr.mxu0 0.0
        %1947 = vmatpush1.msra.mxu0 0.0
        %1948 = vmatprep.subr.mxu0 0.0
        %1949 = vmatpush1.msra.mxu0 0.0
        %1950 = vmatprep.subr.mxu0 0.0
        %1951 = vmatpush1.msra.mxu0 0.0
        %1952 = vmatprep.subr.mxu0 0.0
        %1953 = vmatpush1.msra.mxu0 0.0
        %1954 = vmatprep.subr.mxu0 0.0
        %1955 = vmatpush1.msra.mxu0 0.0
        %1956 = vmatprep.subr.mxu0 0.0
        %1957 = vmatpush1.msra.mxu0 0.0
        %1958 = vmatprep.subr.mxu0 0.0
        %1959 = vmatpush1.msra.mxu0 0.0
        %1960 = vmatprep.subr.mxu0 0.0
        %1961 = vmatpush1.msra.mxu0 0.0
        %1962 = vmatprep.subr.mxu0 0.0
        %1963 = vmatpush1.msra.mxu0 0.0
        %1964 = vmatprep.subr.mxu0 0.0
        %1965 = vmatpush1.msra.mxu0 0.0
        %1966 = vmatprep.subr.mxu0 0.0
        %1967 = vmatpush1.msra.mxu0 0.0
        %1968 = vmatprep.subr.mxu0 0.0
        %1969 = vmatpush1.msra.mxu0 0.0
        %1970 = vmatprep.subr.mxu0 0.0
        %1971 = vmatpush1.msra.mxu0 0.0
        %1972 = vmatprep.subr.mxu0 0.0
        %1973 = vmatpush1.msra.mxu0 0.0
        %1974 = vmatprep.subr.mxu0 0.0
        %1975 = vmatpush1.msra.mxu0 0.0
        %1976 = vmatprep.subr.mxu0 0.0
        %1977 = vmatpush1.msra.mxu0 0.0
        %1978 = vmatprep.subr.mxu0 0.0
        %1979 = vmatpush1.msra.mxu0 0.0
        %1980 = vmatprep.subr.mxu0 0.0
        %1981 = vmatpush1.msra.mxu0 0.0
        %1982 = vmatprep.subr.mxu0 0.0
        %1983 = vmatpush1.msra.mxu0 0.0
        %1984 = vmatprep.subr.mxu0 0.0
        %1985 = vmatpush1.msra.mxu0 0.0
        %1986 = vmatprep.subr.mxu0 0.0
        %1987 = vmatpush1.msra.mxu0 0.0
        %1988 = vmatprep.subr.mxu0 0.0
        %1989 = vmatpush1.msra.mxu0 0.0
        %1990 = vmatprep.mubr.f32.mxu0 0.0
        %1991 = vmatmul.mubr.f32.gmra.mrb[0].mxu0 %v1924
        %v1992 = vpop.f32.mrb[0].mxu0
        %v1993 = vadd.f32 0.0, %v1992
        %v1994 = vpop.f32.mrb[0].mxu0
        %1995 = vdwg.mxu0
        %v1997 = vsel %vm1562, %v1898, 0
        %1999 = vmatprep.subr.mxu0 0.0
        %2000 = vmatpush1.msra.mxu0 %v1559
        %2001 = vmatprep.subr.mxu0 0.0
        %2002 = vmatpush1.msra.mxu0 0.0
        %2003 = vmatprep.subr.mxu0 0.0
        %2004 = vmatpush1.msra.mxu0 0.0
        %2005 = vmatprep.subr.mxu0 0.0
        %2006 = vmatpush1.msra.mxu0 0.0
        %2007 = vmatprep.subr.mxu0 0.0
        %2008 = vmatpush1.msra.mxu0 0.0
        %2009 = vmatprep.subr.mxu0 0.0
        %2010 = vmatpush1.msra.mxu0 0.0
        %2011 = vmatprep.subr.mxu0 0.0
        %2012 = vmatpush1.msra.mxu0 0.0
        %2013 = vmatprep.subr.mxu0 0.0
        %2014 = vmatpush1.msra.mxu0 0.0
        %2015 = vmatprep.subr.mxu0 0.0
        %2016 = vmatpush1.msra.mxu0 0.0
        %2017 = vmatprep.subr.mxu0 0.0
        %2018 = vmatpush1.msra.mxu0 0.0
        %2019 = vmatprep.subr.mxu0 0.0
        %2020 = vmatpush1.msra.mxu0 0.0
        %2021 = vmatprep.subr.mxu0 0.0
        %2022 = vmatpush1.msra.mxu0 0.0
        %2023 = vmatprep.subr.mxu0 0.0
        %2024 = vmatpush1.msra.mxu0 0.0
        %2025 = vmatprep.subr.mxu0 0.0
        %2026 = vmatpush1.msra.mxu0 0.0
        %2027 = vmatprep.subr.mxu0 0.0
        %2028 = vmatpush1.msra.mxu0 0.0
        %2029 = vmatprep.subr.mxu0 0.0
        %2030 = vmatpush1.msra.mxu0 0.0
        %2031 = vmatprep.subr.mxu0 0.0
        %2032 = vmatpush1.msra.mxu0 0.0
        %2033 = vmatprep.subr.mxu0 0.0
        %2034 = vmatpush1.msra.mxu0 0.0
        %2035 = vmatprep.subr.mxu0 0.0
        %2036 = vmatpush1.msra.mxu0 0.0
        %2037 = vmatprep.subr.mxu0 0.0
        %2038 = vmatpush1.msra.mxu0 0.0
        %2039 = vmatprep.subr.mxu0 0.0
        %2040 = vmatpush1.msra.mxu0 0.0
        %2041 = vmatprep.subr.mxu0 0.0
        %2042 = vmatpush1.msra.mxu0 0.0
        %2043 = vmatprep.subr.mxu0 0.0
        %2044 = vmatpush1.msra.mxu0 0.0
        %2045 = vmatprep.subr.mxu0 0.0
        %2046 = vmatpush1.msra.mxu0 0.0
        %2047 = vmatprep.subr.mxu0 0.0
        %2048 = vmatpush1.msra.mxu0 0.0
        %2049 = vmatprep.subr.mxu0 0.0
        %2050 = vmatpush1.msra.mxu0 0.0
        %2051 = vmatprep.subr.mxu0 0.0
        %2052 = vmatpush1.msra.mxu0 0.0
        %2053 = vmatprep.subr.mxu0 0.0
        %2054 = vmatpush1.msra.mxu0 0.0
        %2055 = vmatprep.subr.mxu0 0.0
        %2056 = vmatpush1.msra.mxu0 0.0
        %2057 = vmatprep.subr.mxu0 0.0
        %2058 = vmatpush1.msra.mxu0 0.0
        %2059 = vmatprep.subr.mxu0 0.0
        %2060 = vmatpush1.msra.mxu0 0.0
        %2061 = vmatprep.subr.mxu0 0.0
        %2062 = vmatpush1.msra.mxu0 0.0
        %2063 = vmatprep.mubr.f32.mxu0 0.0
        %2064 = vmatmul.mubr.f32.gmra.mrb[0].mxu0 %v1997
        %v2065 = vpop.f32.mrb[0].mxu0
        %v2066 = vadd.f32 0.0, %v2065
        %v2067 = vpop.f32.mrb[0].mxu0
        %2068 = vdwg.mxu0
        %v2070 = vsel %vm1562, %v1900, 0
        %2072 = vmatprep.subr.mxu0 0.0
        %2073 = vmatpush1.msra.mxu0 %v1560
        %2074 = vmatprep.subr.mxu0 0.0
        %2075 = vmatpush1.msra.mxu0 0.0
        %2076 = vmatprep.subr.mxu0 0.0
        %2077 = vmatpush1.msra.mxu0 0.0
        %2078 = vmatprep.subr.mxu0 0.0
        %2079 = vmatpush1.msra.mxu0 0.0
        %2080 = vmatprep.subr.mxu0 0.0
        %2081 = vmatpush1.msra.mxu0 0.0
        %2082 = vmatprep.subr.mxu0 0.0
        %2083 = vmatpush1.msra.mxu0 0.0
        %2084 = vmatprep.subr.mxu0 0.0
        %2085 = vmatpush1.msra.mxu0 0.0
        %2086 = vmatprep.subr.mxu0 0.0
        %2087 = vmatpush1.msra.mxu0 0.0
        %2088 = vmatprep.subr.mxu0 0.0
        %2089 = vmatpush1.msra.mxu0 0.0
        %2090 = vmatprep.subr.mxu0 0.0
        %2091 = vmatpush1.msra.mxu0 0.0
        %2092 = vmatprep.subr.mxu0 0.0
        %2093 = vmatpush1.msra.mxu0 0.0
        %2094 = vmatprep.subr.mxu0 0.0
        %2095 = vmatpush1.msra.mxu0 0.0
        %2096 = vmatprep.subr.mxu0 0.0
        %2097 = vmatpush1.msra.mxu0 0.0
        %2098 = vmatprep.subr.mxu0 0.0
        %2099 = vmatpush1.msra.mxu0 0.0
        %2100 = vmatprep.subr.mxu0 0.0
        %2101 = vmatpush1.msra.mxu0 0.0
        %2102 = vmatprep.subr.mxu0 0.0
        %2103 = vmatpush1.msra.mxu0 0.0
        %2104 = vmatprep.subr.mxu0 0.0
        %2105 = vmatpush1.msra.mxu0 0.0
        %2106 = vmatprep.subr.mxu0 0.0
        %2107 = vmatpush1.msra.mxu0 0.0
        %2108 = vmatprep.subr.mxu0 0.0
        %2109 = vmatpush1.msra.mxu0 0.0
        %2110 = vmatprep.subr.mxu0 0.0
        %2111 = vmatpush1.msra.mxu0 0.0
        %2112 = vmatprep.subr.mxu0 0.0
        %2113 = vmatpush1.msra.mxu0 0.0
        %2114 = vmatprep.subr.mxu0 0.0
        %2115 = vmatpush1.msra.mxu0 0.0
        %2116 = vmatprep.subr.mxu0 0.0
        %2117 = vmatpush1.msra.mxu0 0.0
        %2118 = vmatprep.subr.mxu0 0.0
        %2119 = vmatpush1.msra.mxu0 0.0
        %2120 = vmatprep.subr.mxu0 0.0
        %2121 = vmatpush1.msra.mxu0 0.0
        %2122 = vmatprep.subr.mxu0 0.0
        %2123 = vmatpush1.msra.mxu0 0.0
        %2124 = vmatprep.subr.mxu0 0.0
        %2125 = vmatpush1.msra.mxu0 0.0
        %2126 = vmatprep.subr.mxu0 0.0
        %2127 = vmatpush1.msra.mxu0 0.0
        %2128 = vmatprep.subr.mxu0 0.0
        %2129 = vmatpush1.msra.mxu0 0.0
        %2130 = vmatprep.subr.mxu0 0.0
        %2131 = vmatpush1.msra.mxu0 0.0
        %2132 = vmatprep.subr.mxu0 0.0
        %2133 = vmatpush1.msra.mxu0 0.0
        %2134 = vmatprep.subr.mxu0 0.0
        %2135 = vmatpush1.msra.mxu0 0.0
        %2136 = vmatprep.mubr.f32.mxu0 0.0
        %2137 = vmatmul.mubr.f32.gmra.mrb[0].mxu0 %v2070
        %v2138 = vpop.f32.mrb[0].mxu0
        %v2139 = vadd.f32 0.0, %v2138
        %v2140 = vpop.f32.mrb[0].mxu0
        %2141 = vdwg.mxu0
        %v2143 = vsel %vm1562, %v1902, 0
        %2145 = vmatprep.subr.mxu0 0.0
        %2146 = vmatpush1.msra.mxu0 %v1561
        %2147 = vmatprep.subr.mxu0 0.0
        %2148 = vmatpush1.msra.mxu0 0.0
        %2149 = vmatprep.subr.mxu0 0.0
        %2150 = vmatpush1.msra.mxu0 0.0
        %2151 = vmatprep.subr.mxu0 0.0
        %2152 = vmatpush1.msra.mxu0 0.0
        %2153 = vmatprep.subr.mxu0 0.0
        %2154 = vmatpush1.msra.mxu0 0.0
        %2155 = vmatprep.subr.mxu0 0.0
        %2156 = vmatpush1.msra.mxu0 0.0
        %2157 = vmatprep.subr.mxu0 0.0
        %2158 = vmatpush1.msra.mxu0 0.0
        %2159 = vmatprep.subr.mxu0 0.0
        %2160 = vmatpush1.msra.mxu0 0.0
        %2161 = vmatprep.subr.mxu0 0.0
        %2162 = vmatpush1.msra.mxu0 0.0
        %2163 = vmatprep.subr.mxu0 0.0
        %2164 = vmatpush1.msra.mxu0 0.0
        %2165 = vmatprep.subr.mxu0 0.0
        %2166 = vmatpush1.msra.mxu0 0.0
        %2167 = vmatprep.subr.mxu0 0.0
        %2168 = vmatpush1.msra.mxu0 0.0
        %2169 = vmatprep.subr.mxu0 0.0
        %2170 = vmatpush1.msra.mxu0 0.0
        %2171 = vmatprep.subr.mxu0 0.0
        %2172 = vmatpush1.msra.mxu0 0.0
        %2173 = vmatprep.subr.mxu0 0.0
        %2174 = vmatpush1.msra.mxu0 0.0
        %2175 = vmatprep.subr.mxu0 0.0
        %2176 = vmatpush1.msra.mxu0 0.0
        %2177 = vmatprep.subr.mxu0 0.0
        %2178 = vmatpush1.msra.mxu0 0.0
        %2179 = vmatprep.subr.mxu0 0.0
        %2180 = vmatpush1.msra.mxu0 0.0
        %2181 = vmatprep.subr.mxu0 0.0
        %2182 = vmatpush1.msra.mxu0 0.0
        %2183 = vmatprep.subr.mxu0 0.0
        %2184 = vmatpush1.msra.mxu0 0.0
        %2185 = vmatprep.subr.mxu0 0.0
        %2186 = vmatpush1.msra.mxu0 0.0
        %2187 = vmatprep.subr.mxu0 0.0
        %2188 = vmatpush1.msra.mxu0 0.0
        %2189 = vmatprep.subr.mxu0 0.0
        %2190 = vmatpush1.msra.mxu0 0.0
        %2191 = vmatprep.subr.mxu0 0.0
        %2192 = vmatpush1.msra.mxu0 0.0
        %2193 = vmatprep.subr.mxu0 0.0
        %2194 = vmatpush1.msra.mxu0 0.0
        %2195 = vmatprep.subr.mxu0 0.0
        %2196 = vmatpush1.msra.mxu0 0.0
        %2197 = vmatprep.subr.mxu0 0.0
        %2198 = vmatpush1.msra.mxu0 0.0
        %2199 = vmatprep.subr.mxu0 0.0
        %2200 = vmatpush1.msra.mxu0 0.0
        %2201 = vmatprep.subr.mxu0 0.0
        %2202 = vmatpush1.msra.mxu0 0.0
        %2203 = vmatprep.subr.mxu0 0.0
        %2204 = vmatpush1.msra.mxu0 0.0
        %2205 = vmatprep.subr.mxu0 0.0
        %2206 = vmatpush1.msra.mxu0 0.0
        %2207 = vmatprep.subr.mxu0 0.0
        %2208 = vmatpush1.msra.mxu0 0.0
        %2209 = vmatprep.mubr.f32.mxu0 0.0
        %2210 = vmatmul.mubr.f32.gmra.mrb[0].mxu0 %v2143
        %v2211 = vpop.f32.mrb[0].mxu0
        %v2212 = vadd.f32 0.0, %v2211
        %v2213 = vpop.f32.mrb[0].mxu0
        %2214 = vdwg.mxu0
        %v2215 = vadd.f32 %v1903, %v1993
        %v2216 = vadd.f32 %v1904, %v2066
        %v2217 = vadd.f32 %v1905, %v2139
        %v2218 = vadd.f32 %v1906, %v2212
        %v2219 = vrcp.pop %v1919
        %v2220 = vrcp.pop %v1920
        %v2221 = vrcp.pop %v1921
        %v2222 = vrcp.pop %v1922
        %v2223 = vmul.f32 %v2215, %v2219
        %v2224 = vmul.f32 %v2216, %v2220
        %v2225 = vmul.f32 %v2217, %v2221
        %v2226 = vmul.f32 %v2218, %v2222
        %v2227 = vcombine.low %v2223, %v2225
        %v2228 = vcombine.high %v2223, %v2225
        %v2230 = vunpack.c.l.s4 1983009808
        %v2231 = vunpack.c.0.s8 %v2230
        %v2232 = vlaneseq
        %v2233 = vshrl.u32 %v2232, 7
        %v2234 = vsub.s32 %v2231, %v2233
        %v2235 = vrot.slane %v2227, %v2234
        %v2237 = vunpack.c.l.s4 1983009808
        %v2238 = vunpack.c.0.s8 %v2237
        %v2239 = vlaneseq
        %v2240 = vshrl.u32 %v2239, 7
        %v2241 = vsub.s32 %v2238, %v2240
        %v2242 = vrot.slane %v2228, %v2241
        %v2243 = vcombine.low %v2224, %v2226
        %v2244 = vcombine.high %v2224, %v2226
        %v2246 = vunpack.c.l.s4 1983009808
        %v2247 = vunpack.c.0.s8 %v2246
        %v2248 = vlaneseq
        %v2249 = vshrl.u32 %v2248, 7
        %v2250 = vsub.s32 %v2247, %v2249
        %v2251 = vrot.slane %v2243, %v2250
        %v2253 = vunpack.c.l.s4 1983009808
        %v2254 = vunpack.c.0.s8 %v2253
        %v2255 = vlaneseq
        %v2256 = vshrl.u32 %v2255, 7
        %v2257 = vsub.s32 %v2254, %v2256
        %v2258 = vrot.slane %v2244, %v2257
        %v2259 = vcombine.low %v2235, %v2251
        %v2260 = vcombine.high %v2235, %v2251
        %v2262 = vunpack.c.l.s4 1934713408
        %v2263 = vunpack.c.0.s8 %v2262
        %v2264 = vlaneseq
        %v2265 = vshrl.u32 %v2264, 7
        %v2266 = vsub.s32 %v2263, %v2265
        %v2267 = vrot.slane %v2259, %v2266
        %v2269 = vunpack.c.l.s4 1934713408
        %v2270 = vunpack.c.0.s8 %v2269
        %v2271 = vlaneseq
        %v2272 = vshrl.u32 %v2271, 7
        %v2273 = vsub.s32 %v2270, %v2272
        %v2274 = vrot.slane %v2260, %v2273
        %v2275 = vcombine.low %v2242, %v2258
        %v2276 = vcombine.high %v2242, %v2258
        %v2278 = vunpack.c.l.s4 1934713408
        %v2279 = vunpack.c.0.s8 %v2278
        %v2280 = vlaneseq
        %v2281 = vshrl.u32 %v2280, 7
        %v2282 = vsub.s32 %v2279, %v2281
        %v2283 = vrot.slane %v2275, %v2282
        %v2285 = vunpack.c.l.s4 1934713408
        %v2286 = vunpack.c.0.s8 %v2285
        %v2287 = vlaneseq
        %v2288 = vshrl.u32 %v2287, 7
        %v2289 = vsub.s32 %v2286, %v2288
        %v2290 = vrot.slane %v2276, %v2289
        %v2291 = vcombine.high %v2267, 0.0
        %v2292 = vcombine.high %v2274, 0.0
        %v2293 = vcombine.high %v2283, 0.0
        %v2294 = vcombine.high %v2290, 0.0
        %v2295 = vcombine.low %v2267, %v2274
        %v2297 = vunpack.c.l.s4 1983009808
        %v2298 = vunpack.c.0.s8 %v2297
        %v2299 = vlaneseq
        %v2300 = vshrl.u32 %v2299, 7
        %v2301 = vsub.s32 %v2298, %v2300
        %v2302 = vrot.slane %v2295, %v2301
        %v2303 = vcombine.low %v2291, %v2292
        %v2305 = vunpack.c.l.s4 1983009808
        %v2306 = vunpack.c.0.s8 %v2305
        %v2307 = vlaneseq
        %v2308 = vshrl.u32 %v2307, 7
        %v2309 = vsub.s32 %v2306, %v2308
        %v2310 = vrot.slane %v2303, %v2309
        %v2311 = vcombine.low %v2283, %v2290
        %v2313 = vunpack.c.l.s4 1983009808
        %v2314 = vunpack.c.0.s8 %v2313
        %v2315 = vlaneseq
        %v2316 = vshrl.u32 %v2315, 7
        %v2317 = vsub.s32 %v2314, %v2316
        %v2318 = vrot.slane %v2311, %v2317
        %v2319 = vcombine.low %v2293, %v2294
        %v2321 = vunpack.c.l.s4 1983009808
        %v2322 = vunpack.c.0.s8 %v2321
        %v2323 = vlaneseq
        %v2324 = vshrl.u32 %v2323, 7
        %v2325 = vsub.s32 %v2322, %v2324
        %v2326 = vrot.slane %v2319, %v2325
        %v2327 = vcombine.low %v2302, %v2310
        %v2328 = vcombine.high %v2302, %v2310
        %v2330 = vunpack.c.l.s4 1934713408
        %v2331 = vunpack.c.0.s8 %v2330
        %v2332 = vlaneseq
        %v2333 = vshrl.u32 %v2332, 7
        %v2334 = vsub.s32 %v2331, %v2333
        %v2335 = vrot.slane %v2327, %v2334
        %v2337 = vunpack.c.l.s4 1934713408
        %v2338 = vunpack.c.0.s8 %v2337
        %v2339 = vlaneseq
        %v2340 = vshrl.u32 %v2339, 7
        %v2341 = vsub.s32 %v2338, %v2340
        %v2342 = vrot.slane %v2328, %v2341
        %v2343 = vcombine.low %v2318, %v2326
        %v2344 = vcombine.high %v2318, %v2326
        %v2346 = vunpack.c.l.s4 1934713408
        %v2347 = vunpack.c.0.s8 %v2346
        %v2348 = vlaneseq
        %v2349 = vshrl.u32 %v2348, 7
        %v2350 = vsub.s32 %v2347, %v2349
        %v2351 = vrot.slane %v2343, %v2350
        %v2353 = vunpack.c.l.s4 1934713408
        %v2354 = vunpack.c.0.s8 %v2353
        %v2355 = vlaneseq
        %v2356 = vshrl.u32 %v2355, 7
        %v2357 = vsub.s32 %v2354, %v2356
        %v2358 = vrot.slane %v2344, %v2357
        %v2359 = vcombine.low %v2335, %v2351
        %v2360 = vcombine.high %v2335, %v2351
        %v2361 = vcombine.low %v2342, %v2358
        %v2362 = vcombine.high %v2342, %v2358
        %2364 = vrot.lane.b32.xlu0 %v2360, 8
        %v2365 = vpop.permute.xlu0 %2364
        %2368 = vrot.lane.b32.xlu0 %v2361, 16
        %v2369 = vpop.permute.xlu0 %2368
        %2372 = vrot.lane.b32.xlu0 %v2362, 24
        %v2373 = vpop.permute.xlu0 %2372
        %v2375 = vsel %vm1562, %v2359, %v2365
        %vm2376 = vcmask 130048
        %v2377 = vsel %vm2376, %v2375, %v2369
        %vm2378 = vcmask 195584
        %v2379 = vsel %vm2378, %v2377, %v2373
        %v2380 = vld [vmem:[#allocation19] sm:$0xff]
        %v2381 = vld [vmem:[#allocation19 + $0x8] sm:$0xff]
        %v2382 = vld [vmem:[#allocation19 + $0x10] sm:$0xff]
        %v2383 = vld [vmem:[#allocation19 + $0x18] sm:$0xff]
        %v2384 = vld [vmem:[#allocation21] sm:$0x1]
        %v2386 = vlaneseq
        %v2387 = vshrl.u32 %v2386, 7
        %v2388 = vsub.s32 0, %v2387
        %v2389 = vrot.slane %v2384, %v2388
        %v2392 = vsel %vm1295, %v2379, 0
        %2394 = vmatprep.subr.mxu0 0.0
        %2395 = vmatpush1.msra.mxu0 %v2380
        %2396 = vmatprep.subr.mxu0 0.0
        %2397 = vmatpush1.msra.mxu0 %v2381
        %2398 = vmatprep.subr.mxu0 0.0
        %2399 = vmatpush1.msra.mxu0 %v2382
        %2400 = vmatprep.subr.mxu0 0.0
        %2401 = vmatpush1.msra.mxu0 %v2383
        %2402 = vmatprep.subr.mxu0 0.0
        %2403 = vmatpush1.msra.mxu0 0.0
        %2404 = vmatprep.subr.mxu0 0.0
        %2405 = vmatpush1.msra.mxu0 0.0
        %2406 = vmatprep.subr.mxu0 0.0
        %2407 = vmatpush1.msra.mxu0 0.0
        %2408 = vmatprep.subr.mxu0 0.0
        %2409 = vmatpush1.msra.mxu0 0.0
        %2410 = vmatprep.subr.mxu0 0.0
        %2411 = vmatpush1.msra.mxu0 0.0
        %2412 = vmatprep.subr.mxu0 0.0
        %2413 = vmatpush1.msra.mxu0 0.0
        %2414 = vmatprep.subr.mxu0 0.0
        %2415 = vmatpush1.msra.mxu0 0.0
        %2416 = vmatprep.subr.mxu0 0.0
        %2417 = vmatpush1.msra.mxu0 0.0
        %2418 = vmatprep.subr.mxu0 0.0
        %2419 = vmatpush1.msra.mxu0 0.0
        %2420 = vmatprep.subr.mxu0 0.0
        %2421 = vmatpush1.msra.mxu0 0.0
        %2422 = vmatprep.subr.mxu0 0.0
        %2423 = vmatpush1.msra.mxu0 0.0
        %2424 = vmatprep.subr.mxu0 0.0
        %2425 = vmatpush1.msra.mxu0 0.0
        %2426 = vmatprep.subr.mxu0 0.0
        %2427 = vmatpush1.msra.mxu0 0.0
        %2428 = vmatprep.subr.mxu0 0.0
        %2429 = vmatpush1.msra.mxu0 0.0
        %2430 = vmatprep.subr.mxu0 0.0
        %2431 = vmatpush1.msra.mxu0 0.0
        %2432 = vmatprep.subr.mxu0 0.0
        %2433 = vmatpush1.msra.mxu0 0.0
        %2434 = vmatprep.subr.mxu0 0.0
        %2435 = vmatpush1.msra.mxu0 0.0
        %2436 = vmatprep.subr.mxu0 0.0
        %2437 = vmatpush1.msra.mxu0 0.0
        %2438 = vmatprep.subr.mxu0 0.0
        %2439 = vmatpush1.msra.mxu0 0.0
        %2440 = vmatprep.subr.mxu0 0.0
        %2441 = vmatpush1.msra.mxu0 0.0
        %2442 = vmatprep.subr.mxu0 0.0
        %2443 = vmatpush1.msra.mxu0 0.0
        %2444 = vmatprep.subr.mxu0 0.0
        %2445 = vmatpush1.msra.mxu0 0.0
        %2446 = vmatprep.subr.mxu0 0.0
        %2447 = vmatpush1.msra.mxu0 0.0
        %2448 = vmatprep.subr.mxu0 0.0
        %2449 = vmatpush1.msra.mxu0 0.0
        %2450 = vmatprep.subr.mxu0 0.0
        %2451 = vmatpush1.msra.mxu0 0.0
        %2452 = vmatprep.subr.mxu0 0.0
        %2453 = vmatpush1.msra.mxu0 0.0
        %2454 = vmatprep.subr.mxu0 0.0
        %2455 = vmatpush1.msra.mxu0 0.0
        %2456 = vmatprep.subr.mxu0 0.0
        %2457 = vmatpush1.msra.mxu0 0.0
        %2458 = vmatprep.mubr.f32.mxu0 0.0
        %2459 = vmatmul.mubr.f32.gmra.mrb[0].mxu0 %v2392
        %v2460 = vpop.f32.mrb[0].mxu0
        %v2461 = vadd.f32 %v2389, %v2460
        %v2462 = vpop.f32.mrb[0].mxu0
        %2463 = vdwg.mxu0
        %v2464 = vadd.f32 %v2461, %v1294
        %v2465 = vld [vmem:[#allocation22] sm:$0x1]
        %v2466 = vld [vmem:[#allocation24] sm:$0x1]
        %v2467 = vsel %vm1295, %v2464, 0.0
        %2468 = vadd.xlane.f32.xlu0 %v2467
        %v2469 = vpop.xlane.xlu0 %2468
        %v2470 = vmul.f32 %v2469, %v1299
        %v2471 = vsub.f32 %v2464, %v2470
        %v2472 = vmul.f32 %v2471, %v2471
        %v2473 = vsel %vm1295, %v2472, 0.0
        %2474 = vadd.xlane.f32.xlu0 %v2473
        %v2475 = vpop.xlane.xlu0 %2474
        %v2476 = vmul.f32 %v2475, %v1299
        %v2477 = vadd.f32 %v2476, 1e-05
        %v2478 = vrsqrt.pop %v2477
        %v2479 = vmul.f32 %v2471, %v2478
        %v2481 = vlaneseq
        %v2482 = vshrl.u32 %v2481, 7
        %v2483 = vsub.s32 0, %v2482
        %v2484 = vrot.slane %v2465, %v2483
        %v2486 = vmul.f32 %v2479, %v2484
        %v2488 = vlaneseq
        %v2489 = vshrl.u32 %v2488, 7
        %v2490 = vsub.s32 0, %v2489
        %v2491 = vrot.slane %v2466, %v2490
        %v2493 = vadd.f32 %v2486, %v2491
        %v2494 = vld [vmem:[#allocation25] sm:$0xff]
        %v2495 = vld [vmem:[#allocation25 + $0x8] sm:$0xff]
        %v2496 = vld [vmem:[#allocation25 + $0x10] sm:$0xff]
        %v2497 = vld [vmem:[#allocation25 + $0x18] sm:$0xff]
        %v2498 = vld [vmem:[#allocation27] sm:$0x1]
        %v2500 = vlaneseq
        %v2501 = vshrl.u32 %v2500, 7
        %v2502 = vsub.s32 0, %v2501
        %v2503 = vrot.slane %v2498, %v2502
        %v2506 = vsel %vm1295, %v2493, 0
        %2508 = vmatprep.subr.mxu0 0.0
        %2509 = vmatpush1.msra.mxu0 %v2494
        %2510 = vmatprep.subr.mxu0 0.0
        %2511 = vmatpush1.msra.mxu0 %v2495
        %2512 = vmatprep.subr.mxu0 0.0
        %2513 = vmatpush1.msra.mxu0 %v2496
        %2514 = vmatprep.subr.mxu0 0.0
        %2515 = vmatpush1.msra.mxu0 %v2497
        %2516 = vmatprep.subr.mxu0 0.0
        %2517 = vmatpush1.msra.mxu0 0.0
        %2518 = vmatprep.subr.mxu0 0.0
        %2519 = vmatpush1.msra.mxu0 0.0
        %2520 = vmatprep.subr.mxu0 0.0
        %2521 = vmatpush1.msra.mxu0 0.0
        %2522 = vmatprep.subr.mxu0 0.0
        %2523 = vmatpush1.msra.mxu0 0.0
        %2524 = vmatprep.subr.mxu0 0.0
        %2525 = vmatpush1.msra.mxu0 0.0
        %2526 = vmatprep.subr.mxu0 0.0
        %2527 = vmatpush1.msra.mxu0 0.0
        %2528 = vmatprep.subr.mxu0 0.0
        %2529 = vmatpush1.msra.mxu0 0.0
        %2530 = vmatprep.subr.mxu0 0.0
        %2531 = vmatpush1.msra.mxu0 0.0
        %2532 = vmatprep.subr.mxu0 0.0
        %2533 = vmatpush1.msra.mxu0 0.0
        %2534 = vmatprep.subr.mxu0 0.0
        %2535 = vmatpush1.msra.mxu0 0.0
        %2536 = vmatprep.subr.mxu0 0.0
        %2537 = vmatpush1.msra.mxu0 0.0
        %2538 = vmatprep.subr.mxu0 0.0
        %2539 = vmatpush1.msra.mxu0 0.0
        %2540 = vmatprep.subr.mxu0 0.0
        %2541 = vmatpush1.msra.mxu0 0.0
        %2542 = vmatprep.subr.mxu0 0.0
        %2543 = vmatpush1.msra.mxu0 0.0
        %2544 = vmatprep.subr.mxu0 0.0
        %2545 = vmatpush1.msra.mxu0 0.0
        %2546 = vmatprep.subr.mxu0 0.0
        %2547 = vmatpush1.msra.mxu0 0.0
        %2548 = vmatprep.subr.mxu0 0.0
        %2549 = vmatpush1.msra.mxu0 0.0
        %2550 = vmatprep.subr.mxu0 0.0
        %2551 = vmatpush1.msra.mxu0 0.0
        %2552 = vmatprep.subr.mxu0 0.0
        %2553 = vmatpush1.msra.mxu0 0.0
        %2554 = vmatprep.subr.mxu0 0.0
        %2555 = vmatpush1.msra.mxu0 0.0
        %2556 = vmatprep.subr.mxu0 0.0
        %2557 = vmatpush1.msra.mxu0 0.0
        %2558 = vmatprep.subr.mxu0 0.0
        %2559 = vmatpush1.msra.mxu0 0.0
        %2560 = vmatprep.subr.mxu0 0.0
        %2561 = vmatpush1.msra.mxu0 0.0
        %2562 = vmatprep.subr.mxu0 0.0
        %2563 = vmatpush1.msra.mxu0 0.0
        %2564 = vmatprep.subr.mxu0 0.0
        %2565 = vmatpush1.msra.mxu0 0.0
        %2566 = vmatprep.subr.mxu0 0.0
        %2567 = vmatpush1.msra.mxu0 0.0
        %2568 = vmatprep.subr.mxu0 0.0
        %2569 = vmatpush1.msra.mxu0 0.0
        %2570 = vmatprep.subr.mxu0 0.0
        %2571 = vmatpush1.msra.mxu0 0.0
        %2572 = vmatprep.mubr.f32.mxu0 0.0
        %2573 = vmatmul.mubr.f32.gmra.mrb[0].mxu0 %v2506
        %v2574 = vpop.f32.mrb[0].mxu0
        %v2575 = vadd.f32 %v2503, %v2574
        %v2576 = vpop.f32.mrb[0].mxu0
        %2577 = vdwg.mxu0
        %v2578 = vmax.f32 %v2575, 0.0
        %v2579 = vld [vmem:[#allocation28] sm:$0xff]
        %v2580 = vld [vmem:[#allocation28 + $0x8] sm:$0xff]
        %v2581 = vld [vmem:[#allocation28 + $0x10] sm:$0xff]
        %v2582 = vld [vmem:[#allocation28 + $0x18] sm:$0xff]
        %v2583 = vld [vmem:[#allocation28 + $0x20] sm:$0xff]
        %v2584 = vld [vmem:[#allocation28 + $0x28] sm:$0xff]
        %v2585 = vld [vmem:[#allocation28 + $0x30] sm:$0xff]
        %v2586 = vld [vmem:[#allocation28 + $0x38] sm:$0xff]
        %v2587 = vld [vmem:[#allocation28 + $0x40] sm:$0xff]
        %v2588 = vld [vmem:[#allocation28 + $0x48] sm:$0xff]
        %v2589 = vld [vmem:[#allocation28 + $0x50] sm:$0xff]
        %v2590 = vld [vmem:[#allocation28 + $0x58] sm:$0xff]
        %v2591 = vld [vmem:[#allocation28 + $0x60] sm:$0xff]
        %v2592 = vld [vmem:[#allocation28 + $0x68] sm:$0xff]
        %v2593 = vld [vmem:[#allocation28 + $0x70] sm:$0xff]
        %v2594 = vld [vmem:[#allocation28 + $0x78] sm:$0xff]
        %v2595 = vld [vmem:[#allocation30] sm:$0x1]
        %v2597 = vlaneseq
        %v2598 = vshrl.u32 %v2597, 7
        %v2599 = vsub.s32 0, %v2598
        %v2600 = vrot.slane %v2595, %v2599
        %2602 = vmatprep.subr.mxu0 0.0
        %2603 = vmatpush1.msra.mxu0 %v2579
        %2604 = vmatprep.subr.mxu0 0.0
        %2605 = vmatpush1.msra.mxu0 %v2580
        %2606 = vmatprep.subr.mxu0 0.0
        %2607 = vmatpush1.msra.mxu0 %v2581
        %2608 = vmatprep.subr.mxu0 0.0
        %2609 = vmatpush1.msra.mxu0 %v2582
        %2610 = vmatprep.subr.mxu0 0.0
        %2611 = vmatpush1.msra.mxu0 %v2583
        %2612 = vmatprep.subr.mxu0 0.0
        %2613 = vmatpush1.msra.mxu0 %v2584
        %2614 = vmatprep.subr.mxu0 0.0
        %2615 = vmatpush1.msra.mxu0 %v2585
        %2616 = vmatprep.subr.mxu0 0.0
        %2617 = vmatpush1.msra.mxu0 %v2586
        %2618 = vmatprep.subr.mxu0 0.0
        %2619 = vmatpush1.msra.mxu0 %v2587
        %2620 = vmatprep.subr.mxu0 0.0
        %2621 = vmatpush1.msra.mxu0 %v2588
        %2622 = vmatprep.subr.mxu0 0.0
        %2623 = vmatpush1.msra.mxu0 %v2589
        %2624 = vmatprep.subr.mxu0 0.0
        %2625 = vmatpush1.msra.mxu0 %v2590
        %2626 = vmatprep.subr.mxu0 0.0
        %2627 = vmatpush1.msra.mxu0 %v2591
        %2628 = vmatprep.subr.mxu0 0.0
        %2629 = vmatpush1.msra.mxu0 %v2592
        %2630 = vmatprep.subr.mxu0 0.0
        %2631 = vmatpush1.msra.mxu0 %v2593
        %2632 = vmatprep.subr.mxu0 0.0
        %2633 = vmatpush1.msra.mxu0 %v2594
        %2634 = vmatprep.subr.mxu0 0.0
        %2635 = vmatpush1.msra.mxu0 0.0
        %2636 = vmatprep.subr.mxu0 0.0
        %2637 = vmatpush1.msra.mxu0 0.0
        %2638 = vmatprep.subr.mxu0 0.0
        %2639 = vmatpush1.msra.mxu0 0.0
        %2640 = vmatprep.subr.mxu0 0.0
        %2641 = vmatpush1.msra.mxu0 0.0
        %2642 = vmatprep.subr.mxu0 0.0
        %2643 = vmatpush1.msra.mxu0 0.0
        %2644 = vmatprep.subr.mxu0 0.0
        %2645 = vmatpush1.msra.mxu0 0.0
        %2646 = vmatprep.subr.mxu0 0.0
        %2647 = vmatpush1.msra.mxu0 0.0
        %2648 = vmatprep.subr.mxu0 0.0
        %2649 = vmatpush1.msra.mxu0 0.0
        %2650 = vmatprep.subr.mxu0 0.0
        %2651 = vmatpush1.msra.mxu0 0.0
        %2652 = vmatprep.subr.mxu0 0.0
        %2653 = vmatpush1.msra.mxu0 0.0
        %2654 = vmatprep.subr.mxu0 0.0
        %2655 = vmatpush1.msra.mxu0 0.0
        %2656 = vmatprep.subr.mxu0 0.0
        %2657 = vmatpush1.msra.mxu0 0.0
        %2658 = vmatprep.subr.mxu0 0.0
        %2659 = vmatpush1.msra.mxu0 0.0
        %2660 = vmatprep.subr.mxu0 0.0
        %2661 = vmatpush1.msra.mxu0 0.0
        %2662 = vmatprep.subr.mxu0 0.0
        %2663 = vmatpush1.msra.mxu0 0.0
        %2664 = vmatprep.subr.mxu0 0.0
        %2665 = vmatpush1.msra.mxu0 0.0
        %2666 = vmatprep.mubr.f32.mxu0 0.0
        %2667 = vmatmul.mubr.f32.gmra.mrb[0].mxu0 %v2578
        %v2668 = vpop.f32.mrb[0].mxu0
        %v2669 = vadd.f32 %v2600, %v2668
        %v2670 = vpop.f32.mrb[0].mxu0
        %2671 = vdwg.mxu0
        %v2672 = vadd.f32 %v2669, %v2464
        %2673 = vst.msk [vmem:[%s789] sm:$0xff] %vm1295, %v2672
        %s2674 = sand.u32 %s426, 1
        %s2675 = scalar_lea.sflag [#allocation6], %s2674
        %s2676 = sand.u32 %s426, 1
        %s2677 = smul.addr %s2676, 8
        %s2678 = scalar_lea.vmem [#allocation31], %s2677
        // Predicated region
        $region161: #{tpu_custom_call.1} parent=87 // pred_check
          %p2679 = pneg %p436
        $region162: #{tpu_custom_call.1} parent=87 // pred_check_branch
          %2681 = sbr.rel (%p2679) target = $region164
        $region163: #{tpu_custom_call.1} parent=87 // pred_region
          %s2683 = ssub.s32 128, 128
          %2684 = vsyncadd %s2675, %s2683
          %s2685 = sadd.s32 %s47, %s46
          %s2686 = smul.addr %s2685, 128
          %s2687 = scalar_lea.hbm %s17, %s2686
          %s2689 = sshll.u32 %s2678, 4
          %s2690 = int_to_ptr.vmem [resolvable:$true] %s2689
          %2692 = dma.vmem_to_hbm [thread:$0]  %s2690, 128, %s2687, %s2675
        $region164: #{tpu_custom_call.1} parent=87 // pred_fallthru
          _
      $region88: #{tpu_custom_call.1} parent=5 // pred_fallthru
        _
      %p2693 = scmp.le.s32.totalorder 2, %s37
      // Predicated region
      $region165: #{tpu_custom_call.1} parent=5 // pred_check
        %p2694 = pneg %p2693
      $region166: #{tpu_custom_call.1} parent=5 // pred_check_branch
        %2696 = sbr.rel (%p2694) target = $region168
      $region167: #{tpu_custom_call.1} parent=5 // pred_region
        %s2697 = ssub.s32 %s37, 2
        // Predicated region
        $region169: #{tpu_custom_call.1} parent=167 // pred_check
          %p2698 = pneg %p442
        $region170: #{tpu_custom_call.1} parent=167 // pred_check_branch
          %2700 = sbr.rel (%p2698) target = $region172
        $region171: #{tpu_custom_call.1} parent=167 // pred_region
          %s2701 = sand.u32 %s427, 1
          %s2702 = scalar_lea.sflag [#allocation6], %s2701
          %s2703 = sand.u32 %s427, 1
          %s2704 = smul.addr %s2703, 8
          %s2705 = scalar_lea.vmem [#allocation31], %s2704
          %2706 = dma.done %s2702, 128
        $region172: #{tpu_custom_call.1} parent=167 // pred_fallthru
          _
      $region168: #{tpu_custom_call.1} parent=5 // pred_fallthru
        _
    $region6: #{tpu_custom_call.1} parent=1 // loop_footer
      %s41 = sadd.s32 1, %s37
    $region7: #{tpu_custom_call.1} parent=1 // loop_footer_branch
      %36 = sbr.rel target = $region3
    $region8: #{tpu_custom_call.1} parent=1 // loop_exit
      _
    %2707 = vsyncpa [#allocation5], 1
    %s2708 = scalar_lea.sflag [#allocation5], 1
    %2709 = vsyncpa %s2708, 1
    %2710 = vsyncpa [#allocation8], 1
    %2711 = vsyncpa [#allocation11], 1
    %2712 = vsyncpa [#allocation14], 1
    %2713 = vsyncpa [#allocation17], 1
    %2714 = vsyncpa [#allocation20], 1
    %2715 = vsyncpa [#allocation23], 1
    %2716 = vsyncpa [#allocation26], 1
    %2717 = vsyncpa [#allocation29], 1
    %2718 = vsyncpa [#allocation6], 1
    %s2719 = scalar_lea.sflag [#allocation6], 1
    %2720 = vsyncpa %s2719, 1

</llo_original>
